<compile_context>
chip_gen: v7x
topology: tpu7x:2x2x1
jax: 0.10.0
libtpu: 0.0.40
codegen_flags: <defaults>
</compile_context>

<pallas_src>
import functools

import jax
import jax.numpy as jnp
import numpy as np
from jax.experimental import pallas as pl
from jax.experimental.pallas import tpu as pltpu


def _attention_kernel(x_ref, wqkv_ref, wproj_ref, bias_ref, o_ref, *,
                      num_heads, matmul_dtype):
    H = num_heads
    B, N, C = x_ref.shape
    D = C // H
    BN = B * N

    # All batches in one step: (B, N, C) -> (B*N, C), one wide QKV matmul.
    x2d = x_ref[...].reshape(BN, C).astype(matmul_dtype)
    qkv = jnp.dot(x2d, wqkv_ref[...].astype(matmul_dtype),
                  preferred_element_type=jnp.float32)            # (B*N, 3C) f32

    # Head-major column layout (matches torch reshape (B, N, 3, H, D)).
    # The softmax scale is already folded into the Q columns of w_qkv.
    q_all = qkv[:, 0 * C:1 * C]                                  # (B*N, C)
    k_all = qkv[:, 1 * C:2 * C]
    v_all = qkv[:, 2 * C:3 * C]

    # Per-head attention, batched over B (one einsum pair per head). Each
    # head's context is assembled immediately (registers, no VMEM scratch).
    ctx_parts = []
    for h in range(H):
        lo, hi = h * D, (h + 1) * D
        qh = q_all[:, lo:hi].reshape(B, N, D)
        kh = k_all[:, lo:hi].reshape(B, N, D)
        vh = v_all[:, lo:hi].reshape(B, N, D)

        s = jnp.einsum('bqd,bkd->bqk',
                       qh.astype(matmul_dtype), kh.astype(matmul_dtype),
                       preferred_element_type=jnp.float32)       # (B, N, N) f32
        s = s - jnp.max(s, axis=-1, keepdims=True)
        p = jnp.exp(s)
        # EUP approximate reciprocal instead of a VALU divide.
        p = p * pl.reciprocal(jnp.sum(p, axis=-1, keepdims=True), approx=True)

        ctx_h = jnp.einsum('bqk,bkd->bqd',
                           p.astype(matmul_dtype), vh.astype(matmul_dtype),
                           preferred_element_type=jnp.float32)   # (B, N, D)
        ctx_parts.append(ctx_h.reshape(BN, D))

    # Head-major concat along lanes -> (B*N, C); matches torch's
    # (attn @ v).transpose(1, 2).reshape(B, N, C).
    ctx = jnp.concatenate(ctx_parts, axis=-1)

    # Single fused output projection + bias, stored exactly once.
    y = jnp.dot(ctx.astype(matmul_dtype), wproj_ref[...].astype(matmul_dtype),
                preferred_element_type=jnp.float32)
    y = y + bias_ref[...]
    o_ref[...] = y.reshape(B, N, C).astype(o_ref.dtype)


def fold_scale_into_qkv_weight(w_qkv, num_heads):
    """One-time parameter prep: fold the softmax scale into the Q columns."""
    C = w_qkv.shape[0]
    D = C // num_heads
    scale = float(D) ** -0.5
    return w_qkv.at[:, :C].multiply(scale)


def attention_pallas(x, w_qkv_scaled, w_proj, b_proj, num_heads,
                     matmul_dtype=jnp.float32):
    """x: (B, N, C) f32. w_qkv_scaled: (C, 3C) with scale folded into Q cols.
    w_proj: (C, C). b_proj: (C,)."""
    B, N, C = x.shape
    bias = b_proj.reshape(1, C)

    kernel = functools.partial(_attention_kernel, num_heads=num_heads,
                               matmul_dtype=matmul_dtype)

    return pl.pallas_call(
        kernel,
        out_shape=jax.ShapeDtypeStruct((B, N, C), jnp.float32),
        grid_spec=pltpu.PrefetchScalarGridSpec(
            num_scalar_prefetch=0,
            grid=(1,),                                   # single step: all batches
            in_specs=[
                pl.BlockSpec((B, N, C), lambda i: (0, 0, 0)),   # x (all batches)
                pl.BlockSpec((C, 3 * C), lambda i: (0, 0)),     # fused qkv W
                pl.BlockSpec((C, C), lambda i: (0, 0)),         # proj W
                pl.BlockSpec((1, C), lambda i: (0, 0)),         # proj bias
            ],
            out_specs=pl.BlockSpec((B, N, C), lambda i: (0, 0, 0)),
        ),
        compiler_params=pltpu.CompilerParams(
            dimension_semantics=("arbitrary",)),
    )(x, w_qkv_scaled, w_proj, bias)


def attention_reference(x, w_qkv, w_proj, b_proj, num_heads):
    """Pure-JAX reference mirroring the PyTorch forward exactly (unscaled W)."""
    B, N, C = x.shape
    H = num_heads
    D = C // H
    scale = float(D) ** -0.5
    qkv = (x @ w_qkv).reshape(B, N, 3, H, D).transpose(2, 0, 3, 1, 4)
    q, k, v = qkv[0], qkv[1], qkv[2]                       # (B, H, N, D)
    attn = (q @ jnp.swapaxes(k, -2, -1)) * scale           # (B, H, N, N)
    attn = jax.nn.softmax(attn, axis=-1)
    out = (attn @ v).transpose(0, 2, 1, 3).reshape(B, N, C)
    return out @ w_proj + b_proj


if __name__ == "__main__":
    # Small shapes consistent with the module: dim=32, num_heads=8 -> head_dim=4.
    B, N, C, H = 2, 8, 32, 8

    key = jax.random.PRNGKey(0)
    kx, kqkv, kp, kb = jax.random.split(key, 4)
    x = jax.random.normal(kx, (B, N, C), dtype=jnp.float32)
    w_qkv = jax.random.normal(kqkv, (C, 3 * C), dtype=jnp.float32) * 0.1
    w_proj = jax.random.normal(kp, (C, C), dtype=jnp.float32) * 0.1
    b_proj = jax.random.normal(kb, (C,), dtype=jnp.float32) * 0.1

    # One-time parameter preparation (outside the per-call path).
    w_qkv_scaled = fold_scale_into_qkv_weight(w_qkv, num_heads=H)

    out = attention_pallas(x, w_qkv_scaled, w_proj, b_proj, num_heads=H)
    out = jax.block_until_ready(out)

    ref = attention_reference(x, w_qkv, w_proj, b_proj, num_heads=H)
    # Tolerance covers the EUP approximate-reciprocal softmax normalization
    # (~2^-12 relative); everything else is f32-exact at matmul_dtype=f32.
    np.testing.assert_allclose(np.asarray(out), np.asarray(ref),
                               rtol=2e-3, atol=2e-3)
    print("KERNEL_OK")
</pallas_src>

<mosaic_0001>
module attributes {stable_mosaic.version = 11 : i64} {
  func.func @_attention_kernel(%arg0: i32, %arg1: memref<2x8x32xf32, #tpu.memory_space<vmem>>, %arg2: memref<32x96xf32, #tpu.memory_space<vmem>>, %arg3: memref<32x32xf32, #tpu.memory_space<vmem>>, %arg4: memref<1x32xf32, #tpu.memory_space<vmem>>, %arg5: memref<2x8x32xf32, #tpu.memory_space<vmem>>) attributes {dimension_semantics = [#tpu.dimension_semantics<arbitrary>], iteration_bounds = array<i64: 1>, scalar_prefetch = 0 : i64, scratch_operands = 0 : i64, tpu.core_type = #tpu.core_type<tc>, window_params = [{pipeline_mode = #tpu.pipeline_mode<synchronous>, transform_indices = @transform_0, window_bounds = array<i64: 2, 8, 32>}, {pipeline_mode = #tpu.pipeline_mode<synchronous>, transform_indices = @transform_1, window_bounds = array<i64: 32, 96>}, {pipeline_mode = #tpu.pipeline_mode<synchronous>, transform_indices = @transform_2, window_bounds = array<i64: 32, 32>}, {pipeline_mode = #tpu.pipeline_mode<synchronous>, transform_indices = @transform_3, window_bounds = array<i64: 1, 32>}, {pipeline_mode = #tpu.pipeline_mode<synchronous>, transform_indices = @transform_4, window_bounds = array<i64: 2, 8, 32>}]} {
    %c0 = arith.constant 0 : index
    %c0_0 = arith.constant 0 : index
    %c0_1 = arith.constant 0 : index
    %0 = vector.load %arg1[%c0, %c0_0, %c0_1] : memref<2x8x32xf32, #tpu.memory_space<vmem>>, vector<2x8x32xf32>
    %1 = vector.shape_cast %0 : vector<2x8x32xf32> to vector<16x32xf32>
    %c0_2 = arith.constant 0 : index
    %c0_3 = arith.constant 0 : index
    %2 = vector.load %arg2[%c0_2, %c0_3] : memref<32x96xf32, #tpu.memory_space<vmem>>, vector<32x96xf32>
    %cst = arith.constant dense<0.000000e+00> : vector<16x96xf32>
    %3 = tpu.matmul %1, %2, %cst {dimension_numbers = #tpu.dot_dimension_numbers<[1], [0], [0], [1], [0, 0, 1, 1], [], []>} : vector<16x32xf32>, vector<32x96xf32>, vector<16x96xf32> -> vector<16x96xf32>
    %4 = vector.extract_strided_slice %3 {offsets = [0, 0], sizes = [16, 32], strides = [1, 1]} : vector<16x96xf32> to vector<16x32xf32>
    %5 = vector.extract_strided_slice %3 {offsets = [0, 32], sizes = [16, 32], strides = [1, 1]} : vector<16x96xf32> to vector<16x32xf32>
    %6 = vector.extract_strided_slice %3 {offsets = [0, 64], sizes = [16, 32], strides = [1, 1]} : vector<16x96xf32> to vector<16x32xf32>
    %7 = vector.extract_strided_slice %4 {offsets = [0, 0], sizes = [16, 4], strides = [1, 1]} : vector<16x32xf32> to vector<16x4xf32>
    %8 = vector.shape_cast %7 : vector<16x4xf32> to vector<2x8x4xf32>
    %9 = vector.extract_strided_slice %5 {offsets = [0, 0], sizes = [16, 4], strides = [1, 1]} : vector<16x32xf32> to vector<16x4xf32>
    %10 = vector.shape_cast %9 : vector<16x4xf32> to vector<2x8x4xf32>
    %11 = vector.extract_strided_slice %6 {offsets = [0, 0], sizes = [16, 4], strides = [1, 1]} : vector<16x32xf32> to vector<16x4xf32>
    %12 = vector.shape_cast %11 : vector<16x4xf32> to vector<2x8x4xf32>
    "tpu.trace_start"() <{level = 10 : i32, message = "bqd,bkd->bqk"}> : () -> ()
    %cst_4 = arith.constant dense<0.000000e+00> : vector<2x8x8xf32>
    %13 = tpu.matmul %8, %10, %cst_4 {dimension_numbers = #tpu.dot_dimension_numbers<[2], [2], [1], [1], [0, 0, 0, 1, 1, 1], [0], [0]>} : vector<2x8x4xf32>, vector<2x8x4xf32>, vector<2x8x8xf32> -> vector<2x8x8xf32>
    "tpu.trace_stop"() : () -> ()
    %cst_5 = arith.constant dense<0xFF800000> : vector<2x8xf32>
    %14 = vector.multi_reduction <maximumf>, %13, %cst_5 [2] : vector<2x8x8xf32> to vector<2x8xf32>
    %15 = vector.shape_cast %14 : vector<2x8xf32> to vector<2x8x1xf32>
    %16 = vector.broadcast %15 : vector<2x8x1xf32> to vector<2x8x8xf32>
    %17 = arith.subf %13, %16 : vector<2x8x8xf32>
    %18 = math.exp %17 : vector<2x8x8xf32>
    %cst_6 = arith.constant dense<0.000000e+00> : vector<2x8xf32>
    %19 = vector.multi_reduction <add>, %18, %cst_6 [2] : vector<2x8x8xf32> to vector<2x8xf32>
    %20 = vector.shape_cast %19 : vector<2x8xf32> to vector<2x8x1xf32>
    %21 = tpu.reciprocal %20 {approx = true} : vector<2x8x1xf32> -> vector<2x8x1xf32>
    %22 = vector.broadcast %21 : vector<2x8x1xf32> to vector<2x8x8xf32>
    %23 = arith.mulf %18, %22 : vector<2x8x8xf32>
    "tpu.trace_start"() <{level = 10 : i32, message = "bqk,bkd->bqd"}> : () -> ()
    %cst_7 = arith.constant dense<0.000000e+00> : vector<2x8x4xf32>
    %24 = tpu.matmul %23, %12, %cst_7 {dimension_numbers = #tpu.dot_dimension_numbers<[2], [1], [1], [2], [0, 0, 0, 1, 1, 2], [0], [0]>} : vector<2x8x8xf32>, vector<2x8x4xf32>, vector<2x8x4xf32> -> vector<2x8x4xf32>
    "tpu.trace_stop"() : () -> ()
    %25 = vector.shape_cast %24 : vector<2x8x4xf32> to vector<16x4xf32>
    %26 = vector.extract_strided_slice %4 {offsets = [0, 4], sizes = [16, 4], strides = [1, 1]} : vector<16x32xf32> to vector<16x4xf32>
    %27 = vector.shape_cast %26 : vector<16x4xf32> to vector<2x8x4xf32>
    %28 = vector.extract_strided_slice %5 {offsets = [0, 4], sizes = [16, 4], strides = [1, 1]} : vector<16x32xf32> to vector<16x4xf32>
    %29 = vector.shape_cast %28 : vector<16x4xf32> to vector<2x8x4xf32>
    %30 = vector.extract_strided_slice %6 {offsets = [0, 4], sizes = [16, 4], strides = [1, 1]} : vector<16x32xf32> to vector<16x4xf32>
    %31 = vector.shape_cast %30 : vector<16x4xf32> to vector<2x8x4xf32>
    "tpu.trace_start"() <{level = 10 : i32, message = "bqd,bkd->bqk"}> : () -> ()
    %cst_8 = arith.constant dense<0.000000e+00> : vector<2x8x8xf32>
    %32 = tpu.matmul %27, %29, %cst_8 {dimension_numbers = #tpu.dot_dimension_numbers<[2], [2], [1], [1], [0, 0, 0, 1, 1, 1], [0], [0]>} : vector<2x8x4xf32>, vector<2x8x4xf32>, vector<2x8x8xf32> -> vector<2x8x8xf32>
    "tpu.trace_stop"() : () -> ()
    %cst_9 = arith.constant dense<0xFF800000> : vector<2x8xf32>
    %33 = vector.multi_reduction <maximumf>, %32, %cst_9 [2] : vector<2x8x8xf32> to vector<2x8xf32>
    %34 = vector.shape_cast %33 : vector<2x8xf32> to vector<2x8x1xf32>
    %35 = vector.broadcast %34 : vector<2x8x1xf32> to vector<2x8x8xf32>
    %36 = arith.subf %32, %35 : vector<2x8x8xf32>
    %37 = math.exp %36 : vector<2x8x8xf32>
    %cst_10 = arith.constant dense<0.000000e+00> : vector<2x8xf32>
    %38 = vector.multi_reduction <add>, %37, %cst_10 [2] : vector<2x8x8xf32> to vector<2x8xf32>
    %39 = vector.shape_cast %38 : vector<2x8xf32> to vector<2x8x1xf32>
    %40 = tpu.reciprocal %39 {approx = true} : vector<2x8x1xf32> -> vector<2x8x1xf32>
    %41 = vector.broadcast %40 : vector<2x8x1xf32> to vector<2x8x8xf32>
    %42 = arith.mulf %37, %41 : vector<2x8x8xf32>
    "tpu.trace_start"() <{level = 10 : i32, message = "bqk,bkd->bqd"}> : () -> ()
    %cst_11 = arith.constant dense<0.000000e+00> : vector<2x8x4xf32>
    %43 = tpu.matmul %42, %31, %cst_11 {dimension_numbers = #tpu.dot_dimension_numbers<[2], [1], [1], [2], [0, 0, 0, 1, 1, 2], [0], [0]>} : vector<2x8x8xf32>, vector<2x8x4xf32>, vector<2x8x4xf32> -> vector<2x8x4xf32>
    "tpu.trace_stop"() : () -> ()
    %44 = vector.shape_cast %43 : vector<2x8x4xf32> to vector<16x4xf32>
    %45 = vector.extract_strided_slice %4 {offsets = [0, 8], sizes = [16, 4], strides = [1, 1]} : vector<16x32xf32> to vector<16x4xf32>
    %46 = vector.shape_cast %45 : vector<16x4xf32> to vector<2x8x4xf32>
    %47 = vector.extract_strided_slice %5 {offsets = [0, 8], sizes = [16, 4], strides = [1, 1]} : vector<16x32xf32> to vector<16x4xf32>
    %48 = vector.shape_cast %47 : vector<16x4xf32> to vector<2x8x4xf32>
    %49 = vector.extract_strided_slice %6 {offsets = [0, 8], sizes = [16, 4], strides = [1, 1]} : vector<16x32xf32> to vector<16x4xf32>
    %50 = vector.shape_cast %49 : vector<16x4xf32> to vector<2x8x4xf32>
    "tpu.trace_start"() <{level = 10 : i32, message = "bqd,bkd->bqk"}> : () -> ()
    %cst_12 = arith.constant dense<0.000000e+00> : vector<2x8x8xf32>
    %51 = tpu.matmul %46, %48, %cst_12 {dimension_numbers = #tpu.dot_dimension_numbers<[2], [2], [1], [1], [0, 0, 0, 1, 1, 1], [0], [0]>} : vector<2x8x4xf32>, vector<2x8x4xf32>, vector<2x8x8xf32> -> vector<2x8x8xf32>
    "tpu.trace_stop"() : () -> ()
    %cst_13 = arith.constant dense<0xFF800000> : vector<2x8xf32>
    %52 = vector.multi_reduction <maximumf>, %51, %cst_13 [2] : vector<2x8x8xf32> to vector<2x8xf32>
    %53 = vector.shape_cast %52 : vector<2x8xf32> to vector<2x8x1xf32>
    %54 = vector.broadcast %53 : vector<2x8x1xf32> to vector<2x8x8xf32>
    %55 = arith.subf %51, %54 : vector<2x8x8xf32>
    %56 = math.exp %55 : vector<2x8x8xf32>
    %cst_14 = arith.constant dense<0.000000e+00> : vector<2x8xf32>
    %57 = vector.multi_reduction <add>, %56, %cst_14 [2] : vector<2x8x8xf32> to vector<2x8xf32>
    %58 = vector.shape_cast %57 : vector<2x8xf32> to vector<2x8x1xf32>
    %59 = tpu.reciprocal %58 {approx = true} : vector<2x8x1xf32> -> vector<2x8x1xf32>
    %60 = vector.broadcast %59 : vector<2x8x1xf32> to vector<2x8x8xf32>
    %61 = arith.mulf %56, %60 : vector<2x8x8xf32>
    "tpu.trace_start"() <{level = 10 : i32, message = "bqk,bkd->bqd"}> : () -> ()
    %cst_15 = arith.constant dense<0.000000e+00> : vector<2x8x4xf32>
    %62 = tpu.matmul %61, %50, %cst_15 {dimension_numbers = #tpu.dot_dimension_numbers<[2], [1], [1], [2], [0, 0, 0, 1, 1, 2], [0], [0]>} : vector<2x8x8xf32>, vector<2x8x4xf32>, vector<2x8x4xf32> -> vector<2x8x4xf32>
    "tpu.trace_stop"() : () -> ()
    %63 = vector.shape_cast %62 : vector<2x8x4xf32> to vector<16x4xf32>
    %64 = vector.extract_strided_slice %4 {offsets = [0, 12], sizes = [16, 4], strides = [1, 1]} : vector<16x32xf32> to vector<16x4xf32>
    %65 = vector.shape_cast %64 : vector<16x4xf32> to vector<2x8x4xf32>
    %66 = vector.extract_strided_slice %5 {offsets = [0, 12], sizes = [16, 4], strides = [1, 1]} : vector<16x32xf32> to vector<16x4xf32>
    %67 = vector.shape_cast %66 : vector<16x4xf32> to vector<2x8x4xf32>
    %68 = vector.extract_strided_slice %6 {offsets = [0, 12], sizes = [16, 4], strides = [1, 1]} : vector<16x32xf32> to vector<16x4xf32>
    %69 = vector.shape_cast %68 : vector<16x4xf32> to vector<2x8x4xf32>
    "tpu.trace_start"() <{level = 10 : i32, message = "bqd,bkd->bqk"}> : () -> ()
    %cst_16 = arith.constant dense<0.000000e+00> : vector<2x8x8xf32>
    %70 = tpu.matmul %65, %67, %cst_16 {dimension_numbers = #tpu.dot_dimension_numbers<[2], [2], [1], [1], [0, 0, 0, 1, 1, 1], [0], [0]>} : vector<2x8x4xf32>, vector<2x8x4xf32>, vector<2x8x8xf32> -> vector<2x8x8xf32>
    "tpu.trace_stop"() : () -> ()
    %cst_17 = arith.constant dense<0xFF800000> : vector<2x8xf32>
    %71 = vector.multi_reduction <maximumf>, %70, %cst_17 [2] : vector<2x8x8xf32> to vector<2x8xf32>
    %72 = vector.shape_cast %71 : vector<2x8xf32> to vector<2x8x1xf32>
    %73 = vector.broadcast %72 : vector<2x8x1xf32> to vector<2x8x8xf32>
    %74 = arith.subf %70, %73 : vector<2x8x8xf32>
    %75 = math.exp %74 : vector<2x8x8xf32>
    %cst_18 = arith.constant dense<0.000000e+00> : vector<2x8xf32>
    %76 = vector.multi_reduction <add>, %75, %cst_18 [2] : vector<2x8x8xf32> to vector<2x8xf32>
    %77 = vector.shape_cast %76 : vector<2x8xf32> to vector<2x8x1xf32>
    %78 = tpu.reciprocal %77 {approx = true} : vector<2x8x1xf32> -> vector<2x8x1xf32>
    %79 = vector.broadcast %78 : vector<2x8x1xf32> to vector<2x8x8xf32>
    %80 = arith.mulf %75, %79 : vector<2x8x8xf32>
    "tpu.trace_start"() <{level = 10 : i32, message = "bqk,bkd->bqd"}> : () -> ()
    %cst_19 = arith.constant dense<0.000000e+00> : vector<2x8x4xf32>
    %81 = tpu.matmul %80, %69, %cst_19 {dimension_numbers = #tpu.dot_dimension_numbers<[2], [1], [1], [2], [0, 0, 0, 1, 1, 2], [0], [0]>} : vector<2x8x8xf32>, vector<2x8x4xf32>, vector<2x8x4xf32> -> vector<2x8x4xf32>
    "tpu.trace_stop"() : () -> ()
    %82 = vector.shape_cast %81 : vector<2x8x4xf32> to vector<16x4xf32>
    %83 = vector.extract_strided_slice %4 {offsets = [0, 16], sizes = [16, 4], strides = [1, 1]} : vector<16x32xf32> to vector<16x4xf32>
    %84 = vector.shape_cast %83 : vector<16x4xf32> to vector<2x8x4xf32>
    %85 = vector.extract_strided_slice %5 {offsets = [0, 16], sizes = [16, 4], strides = [1, 1]} : vector<16x32xf32> to vector<16x4xf32>
    %86 = vector.shape_cast %85 : vector<16x4xf32> to vector<2x8x4xf32>
    %87 = vector.extract_strided_slice %6 {offsets = [0, 16], sizes = [16, 4], strides = [1, 1]} : vector<16x32xf32> to vector<16x4xf32>
    %88 = vector.shape_cast %87 : vector<16x4xf32> to vector<2x8x4xf32>
    "tpu.trace_start"() <{level = 10 : i32, message = "bqd,bkd->bqk"}> : () -> ()
    %cst_20 = arith.constant dense<0.000000e+00> : vector<2x8x8xf32>
    %89 = tpu.matmul %84, %86, %cst_20 {dimension_numbers = #tpu.dot_dimension_numbers<[2], [2], [1], [1], [0, 0, 0, 1, 1, 1], [0], [0]>} : vector<2x8x4xf32>, vector<2x8x4xf32>, vector<2x8x8xf32> -> vector<2x8x8xf32>
    "tpu.trace_stop"() : () -> ()
    %cst_21 = arith.constant dense<0xFF800000> : vector<2x8xf32>
    %90 = vector.multi_reduction <maximumf>, %89, %cst_21 [2] : vector<2x8x8xf32> to vector<2x8xf32>
    %91 = vector.shape_cast %90 : vector<2x8xf32> to vector<2x8x1xf32>
    %92 = vector.broadcast %91 : vector<2x8x1xf32> to vector<2x8x8xf32>
    %93 = arith.subf %89, %92 : vector<2x8x8xf32>
    %94 = math.exp %93 : vector<2x8x8xf32>
    %cst_22 = arith.constant dense<0.000000e+00> : vector<2x8xf32>
    %95 = vector.multi_reduction <add>, %94, %cst_22 [2] : vector<2x8x8xf32> to vector<2x8xf32>
    %96 = vector.shape_cast %95 : vector<2x8xf32> to vector<2x8x1xf32>
    %97 = tpu.reciprocal %96 {approx = true} : vector<2x8x1xf32> -> vector<2x8x1xf32>
    %98 = vector.broadcast %97 : vector<2x8x1xf32> to vector<2x8x8xf32>
    %99 = arith.mulf %94, %98 : vector<2x8x8xf32>
    "tpu.trace_start"() <{level = 10 : i32, message = "bqk,bkd->bqd"}> : () -> ()
    %cst_23 = arith.constant dense<0.000000e+00> : vector<2x8x4xf32>
    %100 = tpu.matmul %99, %88, %cst_23 {dimension_numbers = #tpu.dot_dimension_numbers<[2], [1], [1], [2], [0, 0, 0, 1, 1, 2], [0], [0]>} : vector<2x8x8xf32>, vector<2x8x4xf32>, vector<2x8x4xf32> -> vector<2x8x4xf32>
    "tpu.trace_stop"() : () -> ()
    %101 = vector.shape_cast %100 : vector<2x8x4xf32> to vector<16x4xf32>
    %102 = vector.extract_strided_slice %4 {offsets = [0, 20], sizes = [16, 4], strides = [1, 1]} : vector<16x32xf32> to vector<16x4xf32>
    %103 = vector.shape_cast %102 : vector<16x4xf32> to vector<2x8x4xf32>
    %104 = vector.extract_strided_slice %5 {offsets = [0, 20], sizes = [16, 4], strides = [1, 1]} : vector<16x32xf32> to vector<16x4xf32>
    %105 = vector.shape_cast %104 : vector<16x4xf32> to vector<2x8x4xf32>
    %106 = vector.extract_strided_slice %6 {offsets = [0, 20], sizes = [16, 4], strides = [1, 1]} : vector<16x32xf32> to vector<16x4xf32>
    %107 = vector.shape_cast %106 : vector<16x4xf32> to vector<2x8x4xf32>
    "tpu.trace_start"() <{level = 10 : i32, message = "bqd,bkd->bqk"}> : () -> ()
    %cst_24 = arith.constant dense<0.000000e+00> : vector<2x8x8xf32>
    %108 = tpu.matmul %103, %105, %cst_24 {dimension_numbers = #tpu.dot_dimension_numbers<[2], [2], [1], [1], [0, 0, 0, 1, 1, 1], [0], [0]>} : vector<2x8x4xf32>, vector<2x8x4xf32>, vector<2x8x8xf32> -> vector<2x8x8xf32>
    "tpu.trace_stop"() : () -> ()
    %cst_25 = arith.constant dense<0xFF800000> : vector<2x8xf32>
    %109 = vector.multi_reduction <maximumf>, %108, %cst_25 [2] : vector<2x8x8xf32> to vector<2x8xf32>
    %110 = vector.shape_cast %109 : vector<2x8xf32> to vector<2x8x1xf32>
    %111 = vector.broadcast %110 : vector<2x8x1xf32> to vector<2x8x8xf32>
    %112 = arith.subf %108, %111 : vector<2x8x8xf32>
    %113 = math.exp %112 : vector<2x8x8xf32>
    %cst_26 = arith.constant dense<0.000000e+00> : vector<2x8xf32>
    %114 = vector.multi_reduction <add>, %113, %cst_26 [2] : vector<2x8x8xf32> to vector<2x8xf32>
    %115 = vector.shape_cast %114 : vector<2x8xf32> to vector<2x8x1xf32>
    %116 = tpu.reciprocal %115 {approx = true} : vector<2x8x1xf32> -> vector<2x8x1xf32>
    %117 = vector.broadcast %116 : vector<2x8x1xf32> to vector<2x8x8xf32>
    %118 = arith.mulf %113, %117 : vector<2x8x8xf32>
    "tpu.trace_start"() <{level = 10 : i32, message = "bqk,bkd->bqd"}> : () -> ()
    %cst_27 = arith.constant dense<0.000000e+00> : vector<2x8x4xf32>
    %119 = tpu.matmul %118, %107, %cst_27 {dimension_numbers = #tpu.dot_dimension_numbers<[2], [1], [1], [2], [0, 0, 0, 1, 1, 2], [0], [0]>} : vector<2x8x8xf32>, vector<2x8x4xf32>, vector<2x8x4xf32> -> vector<2x8x4xf32>
    "tpu.trace_stop"() : () -> ()
    %120 = vector.shape_cast %119 : vector<2x8x4xf32> to vector<16x4xf32>
    %121 = vector.extract_strided_slice %4 {offsets = [0, 24], sizes = [16, 4], strides = [1, 1]} : vector<16x32xf32> to vector<16x4xf32>
    %122 = vector.shape_cast %121 : vector<16x4xf32> to vector<2x8x4xf32>
    %123 = vector.extract_strided_slice %5 {offsets = [0, 24], sizes = [16, 4], strides = [1, 1]} : vector<16x32xf32> to vector<16x4xf32>
    %124 = vector.shape_cast %123 : vector<16x4xf32> to vector<2x8x4xf32>
    %125 = vector.extract_strided_slice %6 {offsets = [0, 24], sizes = [16, 4], strides = [1, 1]} : vector<16x32xf32> to vector<16x4xf32>
    %126 = vector.shape_cast %125 : vector<16x4xf32> to vector<2x8x4xf32>
    "tpu.trace_start"() <{level = 10 : i32, message = "bqd,bkd->bqk"}> : () -> ()
    %cst_28 = arith.constant dense<0.000000e+00> : vector<2x8x8xf32>
    %127 = tpu.matmul %122, %124, %cst_28 {dimension_numbers = #tpu.dot_dimension_numbers<[2], [2], [1], [1], [0, 0, 0, 1, 1, 1], [0], [0]>} : vector<2x8x4xf32>, vector<2x8x4xf32>, vector<2x8x8xf32> -> vector<2x8x8xf32>
    "tpu.trace_stop"() : () -> ()
    %cst_29 = arith.constant dense<0xFF800000> : vector<2x8xf32>
    %128 = vector.multi_reduction <maximumf>, %127, %cst_29 [2] : vector<2x8x8xf32> to vector<2x8xf32>
    %129 = vector.shape_cast %128 : vector<2x8xf32> to vector<2x8x1xf32>
    %130 = vector.broadcast %129 : vector<2x8x1xf32> to vector<2x8x8xf32>
    %131 = arith.subf %127, %130 : vector<2x8x8xf32>
    %132 = math.exp %131 : vector<2x8x8xf32>
    %cst_30 = arith.constant dense<0.000000e+00> : vector<2x8xf32>
    %133 = vector.multi_reduction <add>, %132, %cst_30 [2] : vector<2x8x8xf32> to vector<2x8xf32>
    %134 = vector.shape_cast %133 : vector<2x8xf32> to vector<2x8x1xf32>
    %135 = tpu.reciprocal %134 {approx = true} : vector<2x8x1xf32> -> vector<2x8x1xf32>
    %136 = vector.broadcast %135 : vector<2x8x1xf32> to vector<2x8x8xf32>
    %137 = arith.mulf %132, %136 : vector<2x8x8xf32>
    "tpu.trace_start"() <{level = 10 : i32, message = "bqk,bkd->bqd"}> : () -> ()
    %cst_31 = arith.constant dense<0.000000e+00> : vector<2x8x4xf32>
    %138 = tpu.matmul %137, %126, %cst_31 {dimension_numbers = #tpu.dot_dimension_numbers<[2], [1], [1], [2], [0, 0, 0, 1, 1, 2], [0], [0]>} : vector<2x8x8xf32>, vector<2x8x4xf32>, vector<2x8x4xf32> -> vector<2x8x4xf32>
    "tpu.trace_stop"() : () -> ()
    %139 = vector.shape_cast %138 : vector<2x8x4xf32> to vector<16x4xf32>
    %140 = vector.extract_strided_slice %4 {offsets = [0, 28], sizes = [16, 4], strides = [1, 1]} : vector<16x32xf32> to vector<16x4xf32>
    %141 = vector.shape_cast %140 : vector<16x4xf32> to vector<2x8x4xf32>
    %142 = vector.extract_strided_slice %5 {offsets = [0, 28], sizes = [16, 4], strides = [1, 1]} : vector<16x32xf32> to vector<16x4xf32>
    %143 = vector.shape_cast %142 : vector<16x4xf32> to vector<2x8x4xf32>
    %144 = vector.extract_strided_slice %6 {offsets = [0, 28], sizes = [16, 4], strides = [1, 1]} : vector<16x32xf32> to vector<16x4xf32>
    %145 = vector.shape_cast %144 : vector<16x4xf32> to vector<2x8x4xf32>
    "tpu.trace_start"() <{level = 10 : i32, message = "bqd,bkd->bqk"}> : () -> ()
    %cst_32 = arith.constant dense<0.000000e+00> : vector<2x8x8xf32>
    %146 = tpu.matmul %141, %143, %cst_32 {dimension_numbers = #tpu.dot_dimension_numbers<[2], [2], [1], [1], [0, 0, 0, 1, 1, 1], [0], [0]>} : vector<2x8x4xf32>, vector<2x8x4xf32>, vector<2x8x8xf32> -> vector<2x8x8xf32>
    "tpu.trace_stop"() : () -> ()
    %cst_33 = arith.constant dense<0xFF800000> : vector<2x8xf32>
    %147 = vector.multi_reduction <maximumf>, %146, %cst_33 [2] : vector<2x8x8xf32> to vector<2x8xf32>
    %148 = vector.shape_cast %147 : vector<2x8xf32> to vector<2x8x1xf32>
    %149 = vector.broadcast %148 : vector<2x8x1xf32> to vector<2x8x8xf32>
    %150 = arith.subf %146, %149 : vector<2x8x8xf32>
    %151 = math.exp %150 : vector<2x8x8xf32>
    %cst_34 = arith.constant dense<0.000000e+00> : vector<2x8xf32>
    %152 = vector.multi_reduction <add>, %151, %cst_34 [2] : vector<2x8x8xf32> to vector<2x8xf32>
    %153 = vector.shape_cast %152 : vector<2x8xf32> to vector<2x8x1xf32>
    %154 = tpu.reciprocal %153 {approx = true} : vector<2x8x1xf32> -> vector<2x8x1xf32>
    %155 = vector.broadcast %154 : vector<2x8x1xf32> to vector<2x8x8xf32>
    %156 = arith.mulf %151, %155 : vector<2x8x8xf32>
    "tpu.trace_start"() <{level = 10 : i32, message = "bqk,bkd->bqd"}> : () -> ()
    %cst_35 = arith.constant dense<0.000000e+00> : vector<2x8x4xf32>
    %157 = tpu.matmul %156, %145, %cst_35 {dimension_numbers = #tpu.dot_dimension_numbers<[2], [1], [1], [2], [0, 0, 0, 1, 1, 2], [0], [0]>} : vector<2x8x8xf32>, vector<2x8x4xf32>, vector<2x8x4xf32> -> vector<2x8x4xf32>
    "tpu.trace_stop"() : () -> ()
    %158 = vector.shape_cast %157 : vector<2x8x4xf32> to vector<16x4xf32>
    %159 = tpu.concatenate %25, %44, %63, %82, %101, %120, %139, %158 in 1 : vector<16x4xf32>, vector<16x4xf32>, vector<16x4xf32>, vector<16x4xf32>, vector<16x4xf32>, vector<16x4xf32>, vector<16x4xf32>, vector<16x4xf32> -> vector<16x32xf32>
    %c0_36 = arith.constant 0 : index
    %c0_37 = arith.constant 0 : index
    %160 = vector.load %arg3[%c0_36, %c0_37] : memref<32x32xf32, #tpu.memory_space<vmem>>, vector<32x32xf32>
    %cst_38 = arith.constant dense<0.000000e+00> : vector<16x32xf32>
    %161 = tpu.matmul %159, %160, %cst_38 {dimension_numbers = #tpu.dot_dimension_numbers<[1], [0], [0], [1], [0, 0, 1, 1], [], []>} : vector<16x32xf32>, vector<32x32xf32>, vector<16x32xf32> -> vector<16x32xf32>
    %c0_39 = arith.constant 0 : index
    %c0_40 = arith.constant 0 : index
    %162 = vector.load %arg4[%c0_39, %c0_40] : memref<1x32xf32, #tpu.memory_space<vmem>>, vector<1x32xf32>
    %163 = vector.broadcast %162 : vector<1x32xf32> to vector<16x32xf32>
    %164 = arith.addf %161, %163 : vector<16x32xf32>
    %165 = vector.shape_cast %164 : vector<16x32xf32> to vector<2x8x32xf32>
    %c0_41 = arith.constant 0 : index
    %c0_42 = arith.constant 0 : index
    %c0_43 = arith.constant 0 : index
    %166 = vector.load %arg5[%c0_41, %c0_42, %c0_43] : memref<2x8x32xf32, #tpu.memory_space<vmem>>, vector<2x8x32xf32>
    tpu.vector_store %arg5[%c0_41, %c0_42, %c0_43], %165 {strides = array<i32>} : memref<2x8x32xf32, #tpu.memory_space<vmem>>, vector<2x8x32xf32>,
    return
  }
  func.func @transform_0(%arg0: i32) -> (i32, i32, i32) {
    %c0_i32 = arith.constant 0 : i32
    %c0_i32_0 = arith.constant 0 : i32
    %c0_i32_1 = arith.constant 0 : i32
    %c0_i32_2 = arith.constant 0 : i32
    return %c0_i32, %c0_i32_0, %c0_i32_1 : i32, i32, i32
  }
  func.func @transform_1(%arg0: i32) -> (i32, i32) {
    %c0_i32 = arith.constant 0 : i32
    %c0_i32_0 = arith.constant 0 : i32
    %c0_i32_1 = arith.constant 0 : i32
    return %c0_i32, %c0_i32_0 : i32, i32
  }
  func.func @transform_2(%arg0: i32) -> (i32, i32) {
    %c0_i32 = arith.constant 0 : i32
    %c0_i32_0 = arith.constant 0 : i32
    %c0_i32_1 = arith.constant 0 : i32
    return %c0_i32, %c0_i32_0 : i32, i32
  }
  func.func @transform_3(%arg0: i32) -> (i32, i32) {
    %c0_i32 = arith.constant 0 : i32
    %c0_i32_0 = arith.constant 0 : i32
    %c0_i32_1 = arith.constant 0 : i32
    return %c0_i32, %c0_i32_0 : i32, i32
  }
  func.func @transform_4(%arg0: i32) -> (i32, i32, i32) {
    %c0_i32 = arith.constant 0 : i32
    %c0_i32_0 = arith.constant 0 : i32
    %c0_i32_1 = arith.constant 0 : i32
    %c0_i32_2 = arith.constant 0 : i32
    return %c0_i32, %c0_i32_0, %c0_i32_1 : i32, i32, i32
  }
}

</mosaic_0001>

<llo_original>
// kernel: tpu_custom_call.1
$region0: #{tpu_custom_call.1}
  #allocation0 [shape = 'u32[]', space=smem, size = 0x4, offset = 0x4, fixed_abs, tag = 'smem constant byte address 0x4 - core index']
  #allocation1 [shape = 'u32[144,128]{1,0:T(1,128)}', space=vmem, size = 0x12000, scoped, tag = 'internal scratch']
  %s0 = inlined_call_operand.hbm [shape: f32[2,8,32], index: 0, kind: input, shape index: {}]
  %s1 = inlined_call_operand.hbm [shape: f32[32,96], index: 1, kind: input, shape index: {}]
  %s2 = inlined_call_operand.hbm [shape: f32[32,32], index: 2, kind: input, shape index: {}]
  %s3 = inlined_call_operand.vmem [shape: f32[1,32], index: 3, kind: input, shape index: {}]
  %s4 = inlined_call_operand.hbm [shape: f32[2,8,32], index: 4, kind: output, shape index: {}]
  %s5 = sld [smem:[#allocation0]]
  $region38: #{tpu_custom_call.1} parent=0
    _
  %s7 = ssub.s32 1, %s5
  %s8 = scalar_select 0, %s7, %s5
  $region1: #{tpu_custom_call.1} parent=0
    #allocation2 [shape = 'u8[8192]{0}', space=vmem, size = 0x2000, scoped, tag = 'input window, operand 0, single buffered']
    #allocation3 [shape = 's32[1]{0}', space=sflag, size = 0x4, scoped, tag = 'scoped memory for tpu_custom_call.1']
    #allocation4 [shape = 's32[1]{0}', space=sflag, size = 0x4, scoped, tag = 'scoped memory for tpu_custom_call.1']
    #allocation5 [shape = 'u8[16384]{0}', space=vmem, size = 0x4000, scoped, tag = 'input window, operand 1, single buffered']
    #allocation6 [shape = 's32[1]{0}', space=sflag, size = 0x4, scoped, tag = 'scoped memory for tpu_custom_call.1']
    #allocation7 [shape = 'u8[16384]{0}', space=vmem, size = 0x4000, scoped, tag = 'input window, operand 2, single buffered']
    #allocation8 [shape = 'u8[8192]{0}', space=vmem, size = 0x2000, scoped, tag = 'output window, operand 0, single buffered']
    %9 = vsyncpa [#allocation3], 0
    %10 = vsyncpa [#allocation6], 0
    %11 = vsyncpa [#allocation4], 0
    // Predicated region
    $region2: #{tpu_custom_call.1} parent=1 // pred_check
      _
    $region3: #{tpu_custom_call.1} parent=1 // pred_check_branch
      %13 = sbr.rel (0) target = $region5
    $region4: #{tpu_custom_call.1} parent=1 // pred_region
      %s15 = ssub.s32 256, 256
      %16 = vsyncadd [#allocation3], %s15
      %s17 = sshll.u32 [#allocation2], 4
      %s18 = int_to_ptr.vmem [resolvable:$true] %s17
      %23 = dma.hbm_to_vmem [thread:$0]  %s0, 256, %s18, [#allocation3], 128, 128, 8
    $region5: #{tpu_custom_call.1} parent=1 // pred_fallthru
      _
    // Predicated region
    $region6: #{tpu_custom_call.1} parent=1 // pred_check
      _
    $region7: #{tpu_custom_call.1} parent=1 // pred_check_branch
      %25 = sbr.rel (0) target = $region9
    $region8: #{tpu_custom_call.1} parent=1 // pred_region
      %s27 = ssub.s32 512, 512
      %28 = vsyncadd [#allocation6], %s27
      %s29 = sshll.u32 [#allocation5], 4
      %s30 = int_to_ptr.vmem [resolvable:$true] %s29
      %35 = dma.hbm_to_vmem [thread:$0]  %s1, 512, %s30, [#allocation6], 128, 128, 8
    $region9: #{tpu_custom_call.1} parent=1 // pred_fallthru
      _
    // Predicated region
    $region10: #{tpu_custom_call.1} parent=1 // pred_check
      _
    $region11: #{tpu_custom_call.1} parent=1 // pred_check_branch
      %37 = sbr.rel (0) target = $region13
    $region12: #{tpu_custom_call.1} parent=1 // pred_region
      %s39 = ssub.s32 512, 512
      %40 = vsyncadd [#allocation6], %s39
      %s41 = sshll.u32 [#allocation7], 4
      %s42 = int_to_ptr.vmem [resolvable:$true] %s41
      %47 = dma.hbm_to_vmem [thread:$0]  %s2, 512, %s42, [#allocation6], 128, 128, 8
    $region13: #{tpu_custom_call.1} parent=1 // pred_fallthru
      _
    // Predicated region
    $region14: #{tpu_custom_call.1} parent=1 // pred_check
      _
    $region15: #{tpu_custom_call.1} parent=1 // pred_check_branch
      %49 = sbr.rel (0) target = $region17
    $region16: #{tpu_custom_call.1} parent=1 // pred_region
      _
    $region17: #{tpu_custom_call.1} parent=1 // pred_fallthru
      _
    // Predicated region
    $region18: #{tpu_custom_call.1} parent=1 // pred_check
      _
    $region19: #{tpu_custom_call.1} parent=1 // pred_check_branch
      %51 = sbr.rel (0) target = $region21
    $region20: #{tpu_custom_call.1} parent=1 // pred_region
      %52 = dma.done [#allocation3], 256
    $region21: #{tpu_custom_call.1} parent=1 // pred_fallthru
      _
    // Predicated region
    $region22: #{tpu_custom_call.1} parent=1 // pred_check
      _
    $region23: #{tpu_custom_call.1} parent=1 // pred_check_branch
      %54 = sbr.rel (0) target = $region25
    $region24: #{tpu_custom_call.1} parent=1 // pred_region
      %55 = dma.done [#allocation6], 512
    $region25: #{tpu_custom_call.1} parent=1 // pred_fallthru
      _
    // Predicated region
    $region26: #{tpu_custom_call.1} parent=1 // pred_check
      _
    $region27: #{tpu_custom_call.1} parent=1 // pred_check_branch
      %57 = sbr.rel (0) target = $region29
    $region28: #{tpu_custom_call.1} parent=1 // pred_region
      %58 = dma.done [#allocation6], 512
    $region29: #{tpu_custom_call.1} parent=1 // pred_fallthru
      _
    %v59 = vld [vmem:[#allocation2] sm:$0xff]
    %v60 = vld [vmem:[#allocation2 + $0x8] sm:$0xff]
    %v61 = vld [vmem:[#allocation5] sm:$0xff]
    %v62 = vld [vmem:[#allocation5 + $0x8] sm:$0xff]
    %v63 = vld [vmem:[#allocation5 + $0x10] sm:$0xff]
    %v64 = vld [vmem:[#allocation5 + $0x18] sm:$0xff]
    %vm65 = vcmask 261120
    %v67 = vsel %vm65, %v59, 0
    %v70 = vsel %vm65, %v60, 0
    %72 = vmatprep.subr.mxu0 0.0
    %73 = vmatpush1.msra.mxu0 %v61
    %74 = vmatprep.subr.mxu0 0.0
    %75 = vmatpush1.msra.mxu0 %v62
    %76 = vmatprep.subr.mxu0 0.0
    %77 = vmatpush1.msra.mxu0 %v63
    %78 = vmatprep.subr.mxu0 0.0
    %79 = vmatpush1.msra.mxu0 %v64
    %80 = vmatprep.subr.mxu0 0.0
    %81 = vmatpush1.msra.mxu0 0.0
    %82 = vmatprep.subr.mxu0 0.0
    %83 = vmatpush1.msra.mxu0 0.0
    %84 = vmatprep.subr.mxu0 0.0
    %85 = vmatpush1.msra.mxu0 0.0
    %86 = vmatprep.subr.mxu0 0.0
    %87 = vmatpush1.msra.mxu0 0.0
    %88 = vmatprep.subr.mxu0 0.0
    %89 = vmatpush1.msra.mxu0 0.0
    %90 = vmatprep.subr.mxu0 0.0
    %91 = vmatpush1.msra.mxu0 0.0
    %92 = vmatprep.subr.mxu0 0.0
    %93 = vmatpush1.msra.mxu0 0.0
    %94 = vmatprep.subr.mxu0 0.0
    %95 = vmatpush1.msra.mxu0 0.0
    %96 = vmatprep.subr.mxu0 0.0
    %97 = vmatpush1.msra.mxu0 0.0
    %98 = vmatprep.subr.mxu0 0.0
    %99 = vmatpush1.msra.mxu0 0.0
    %100 = vmatprep.subr.mxu0 0.0
    %101 = vmatpush1.msra.mxu0 0.0
    %102 = vmatprep.subr.mxu0 0.0
    %103 = vmatpush1.msra.mxu0 0.0
    %104 = vmatprep.subr.mxu0 0.0
    %105 = vmatpush1.msra.mxu0 0.0
    %106 = vmatprep.subr.mxu0 0.0
    %107 = vmatpush1.msra.mxu0 0.0
    %108 = vmatprep.subr.mxu0 0.0
    %109 = vmatpush1.msra.mxu0 0.0
    %110 = vmatprep.subr.mxu0 0.0
    %111 = vmatpush1.msra.mxu0 0.0
    %112 = vmatprep.subr.mxu0 0.0
    %113 = vmatpush1.msra.mxu0 0.0
    %114 = vmatprep.subr.mxu0 0.0
    %115 = vmatpush1.msra.mxu0 0.0
    %116 = vmatprep.subr.mxu0 0.0
    %117 = vmatpush1.msra.mxu0 0.0
    %118 = vmatprep.subr.mxu0 0.0
    %119 = vmatpush1.msra.mxu0 0.0
    %120 = vmatprep.subr.mxu0 0.0
    %121 = vmatpush1.msra.mxu0 0.0
    %122 = vmatprep.subr.mxu0 0.0
    %123 = vmatpush1.msra.mxu0 0.0
    %124 = vmatprep.subr.mxu0 0.0
    %125 = vmatpush1.msra.mxu0 0.0
    %126 = vmatprep.subr.mxu0 0.0
    %127 = vmatpush1.msra.mxu0 0.0
    %128 = vmatprep.subr.mxu0 0.0
    %129 = vmatpush1.msra.mxu0 0.0
    %130 = vmatprep.subr.mxu0 0.0
    %131 = vmatpush1.msra.mxu0 0.0
    %132 = vmatprep.subr.mxu0 0.0
    %133 = vmatpush1.msra.mxu0 0.0
    %134 = vmatprep.subr.mxu0 0.0
    %135 = vmatpush1.msra.mxu0 0.0
    %136 = vmatprep.mubr.f32.mxu0 0.0
    %137 = vmatmul.mubr.f32.gmra.mrb[0].mxu0 %v67
    %v138 = vpop.f32.mrb[0].mxu0
    %v139 = vadd.f32 0.0, %v138
    %v140 = vpop.f32.mrb[0].mxu0
    %141 = vmatprep.mubr.f32.mxu0 0.0
    %142 = vmatmul.mubr.f32.gmra.mrb[0].mxu0 %v70
    %v143 = vpop.f32.mrb[0].mxu0
    %v144 = vadd.f32 0.0, %v143
    %v145 = vpop.f32.mrb[0].mxu0
    %146 = vdwg.mxu0
    %148 = vrot.lane.b32.xlu0 %v139, 96
    %v149 = vpop.permute.xlu0 %148
    %vm150 = vcmask 31744
    %v151 = vsel %vm150, %v139, 0
    %v153 = vsel %vm150, %v149, 0
    %155 = vmatprep.subr.mxu0 0.0
    %156 = vmatpush1.xpose.msra.mxu0 %v153
    %157 = vmatprep.subr.mxu0 0.0
    %158 = vmatpush1.xpose.msra.mxu0 0.0
    %159 = vmatprep.subr.mxu0 0.0
    %160 = vmatpush1.xpose.msra.mxu0 0.0
    %161 = vmatprep.subr.mxu0 0.0
    %162 = vmatpush1.xpose.msra.mxu0 0.0
    %163 = vmatprep.subr.mxu0 0.0
    %164 = vmatpush1.xpose.msra.mxu0 0.0
    %165 = vmatprep.subr.mxu0 0.0
    %166 = vmatpush1.xpose.msra.mxu0 0.0
    %167 = vmatprep.subr.mxu0 0.0
    %168 = vmatpush1.xpose.msra.mxu0 0.0
    %169 = vmatprep.subr.mxu0 0.0
    %170 = vmatpush1.xpose.msra.mxu0 0.0
    %171 = vmatprep.subr.mxu0 0.0
    %172 = vmatpush1.xpose.msra.mxu0 0.0
    %173 = vmatprep.subr.mxu0 0.0
    %174 = vmatpush1.xpose.msra.mxu0 0.0
    %175 = vmatprep.subr.mxu0 0.0
    %176 = vmatpush1.xpose.msra.mxu0 0.0
    %177 = vmatprep.subr.mxu0 0.0
    %178 = vmatpush1.xpose.msra.mxu0 0.0
    %179 = vmatprep.subr.mxu0 0.0
    %180 = vmatpush1.xpose.msra.mxu0 0.0
    %181 = vmatprep.subr.mxu0 0.0
    %182 = vmatpush1.xpose.msra.mxu0 0.0
    %183 = vmatprep.subr.mxu0 0.0
    %184 = vmatpush1.xpose.msra.mxu0 0.0
    %185 = vmatprep.subr.mxu0 0.0
    %186 = vmatpush1.xpose.msra.mxu0 0.0
    %187 = vmatprep.subr.mxu0 0.0
    %188 = vmatpush1.xpose.msra.mxu0 0.0
    %189 = vmatprep.subr.mxu0 0.0
    %190 = vmatpush1.xpose.msra.mxu0 0.0
    %191 = vmatprep.subr.mxu0 0.0
    %192 = vmatpush1.xpose.msra.mxu0 0.0
    %193 = vmatprep.subr.mxu0 0.0
    %194 = vmatpush1.xpose.msra.mxu0 0.0
    %195 = vmatprep.subr.mxu0 0.0
    %196 = vmatpush1.xpose.msra.mxu0 0.0
    %197 = vmatprep.subr.mxu0 0.0
    %198 = vmatpush1.xpose.msra.mxu0 0.0
    %199 = vmatprep.subr.mxu0 0.0
    %200 = vmatpush1.xpose.msra.mxu0 0.0
    %201 = vmatprep.subr.mxu0 0.0
    %202 = vmatpush1.xpose.msra.mxu0 0.0
    %203 = vmatprep.subr.mxu0 0.0
    %204 = vmatpush1.xpose.msra.mxu0 0.0
    %205 = vmatprep.subr.mxu0 0.0
    %206 = vmatpush1.xpose.msra.mxu0 0.0
    %207 = vmatprep.subr.mxu0 0.0
    %208 = vmatpush1.xpose.msra.mxu0 0.0
    %209 = vmatprep.subr.mxu0 0.0
    %210 = vmatpush1.xpose.msra.mxu0 0.0
    %211 = vmatprep.subr.mxu0 0.0
    %212 = vmatpush1.xpose.msra.mxu0 0.0
    %213 = vmatprep.subr.mxu0 0.0
    %214 = vmatpush1.xpose.msra.mxu0 0.0
    %215 = vmatprep.subr.mxu0 0.0
    %216 = vmatpush1.xpose.msra.mxu0 0.0
    %217 = vmatprep.subr.mxu0 0.0
    %218 = vmatpush1.xpose.msra.mxu0 0.0
    %219 = vmatprep.mubr.f32.mxu0 0.0
    %220 = vmatmul.mubr.f32.gmra.mrb[0].mxu0 %v151
    %v221 = vpop.f32.mrb[0].mxu0
    %v222 = vadd.f32 0.0, %v221
    %v223 = vpop.f32.mrb[0].mxu0
    %224 = vdwg.mxu0
    %226 = vrot.lane.b32.xlu0 %v144, 96
    %v227 = vpop.permute.xlu0 %226
    %v228 = vsel %vm150, %v144, 0
    %v230 = vsel %vm150, %v227, 0
    %232 = vmatprep.subr.mxu0 0.0
    %233 = vmatpush1.xpose.msra.mxu0 %v230
    %234 = vmatprep.subr.mxu0 0.0
    %235 = vmatpush1.xpose.msra.mxu0 0.0
    %236 = vmatprep.subr.mxu0 0.0
    %237 = vmatpush1.xpose.msra.mxu0 0.0
    %238 = vmatprep.subr.mxu0 0.0
    %239 = vmatpush1.xpose.msra.mxu0 0.0
    %240 = vmatprep.subr.mxu0 0.0
    %241 = vmatpush1.xpose.msra.mxu0 0.0
    %242 = vmatprep.subr.mxu0 0.0
    %243 = vmatpush1.xpose.msra.mxu0 0.0
    %244 = vmatprep.subr.mxu0 0.0
    %245 = vmatpush1.xpose.msra.mxu0 0.0
    %246 = vmatprep.subr.mxu0 0.0
    %247 = vmatpush1.xpose.msra.mxu0 0.0
    %248 = vmatprep.subr.mxu0 0.0
    %249 = vmatpush1.xpose.msra.mxu0 0.0
    %250 = vmatprep.subr.mxu0 0.0
    %251 = vmatpush1.xpose.msra.mxu0 0.0
    %252 = vmatprep.subr.mxu0 0.0
    %253 = vmatpush1.xpose.msra.mxu0 0.0
    %254 = vmatprep.subr.mxu0 0.0
    %255 = vmatpush1.xpose.msra.mxu0 0.0
    %256 = vmatprep.subr.mxu0 0.0
    %257 = vmatpush1.xpose.msra.mxu0 0.0
    %258 = vmatprep.subr.mxu0 0.0
    %259 = vmatpush1.xpose.msra.mxu0 0.0
    %260 = vmatprep.subr.mxu0 0.0
    %261 = vmatpush1.xpose.msra.mxu0 0.0
    %262 = vmatprep.subr.mxu0 0.0
    %263 = vmatpush1.xpose.msra.mxu0 0.0
    %264 = vmatprep.subr.mxu0 0.0
    %265 = vmatpush1.xpose.msra.mxu0 0.0
    %266 = vmatprep.subr.mxu0 0.0
    %267 = vmatpush1.xpose.msra.mxu0 0.0
    %268 = vmatprep.subr.mxu0 0.0
    %269 = vmatpush1.xpose.msra.mxu0 0.0
    %270 = vmatprep.subr.mxu0 0.0
    %271 = vmatpush1.xpose.msra.mxu0 0.0
    %272 = vmatprep.subr.mxu0 0.0
    %273 = vmatpush1.xpose.msra.mxu0 0.0
    %274 = vmatprep.subr.mxu0 0.0
    %275 = vmatpush1.xpose.msra.mxu0 0.0
    %276 = vmatprep.subr.mxu0 0.0
    %277 = vmatpush1.xpose.msra.mxu0 0.0
    %278 = vmatprep.subr.mxu0 0.0
    %279 = vmatpush1.xpose.msra.mxu0 0.0
    %280 = vmatprep.subr.mxu0 0.0
    %281 = vmatpush1.xpose.msra.mxu0 0.0
    %282 = vmatprep.subr.mxu0 0.0
    %283 = vmatpush1.xpose.msra.mxu0 0.0
    %284 = vmatprep.subr.mxu0 0.0
    %285 = vmatpush1.xpose.msra.mxu0 0.0
    %286 = vmatprep.subr.mxu0 0.0
    %287 = vmatpush1.xpose.msra.mxu0 0.0
    %288 = vmatprep.subr.mxu0 0.0
    %289 = vmatpush1.xpose.msra.mxu0 0.0
    %290 = vmatprep.subr.mxu0 0.0
    %291 = vmatpush1.xpose.msra.mxu0 0.0
    %292 = vmatprep.subr.mxu0 0.0
    %293 = vmatpush1.xpose.msra.mxu0 0.0
    %294 = vmatprep.subr.mxu0 0.0
    %295 = vmatpush1.xpose.msra.mxu0 0.0
    %296 = vmatprep.mubr.f32.mxu0 0.0
    %297 = vmatmul.mubr.f32.gmra.mrb[0].mxu0 %v228
    %v298 = vpop.f32.mrb[0].mxu0
    %v299 = vadd.f32 0.0, %v298
    %v300 = vpop.f32.mrb[0].mxu0
    %301 = vdwg.mxu0
    %vm302 = vcmask 64512
    %v303 = vsel %vm302, %v222, -inf
    %304 = vmax.xlane.f32.xlu0 %v303
    %v305 = vpop.xlane.xlu0 %304
    %v306 = vsel %vm302, %v299, -inf
    %307 = vmax.xlane.f32.xlu0 %v306
    %v308 = vpop.xlane.xlu0 %307
    %v309 = vsub.f32 %v222, %v305
    %v310 = vsub.f32 %v299, %v308
    %v311 = vmul.f32 %v309, 1.442695
    %v312 = vpow.pop %v311
    %v313 = vmul.f32 %v310, 1.442695
    %v314 = vpow.pop %v313
    %v315 = vsel %vm302, %v312, 0.0
    %316 = vadd.xlane.f32.xlu0 %v315
    %v317 = vpop.xlane.xlu0 %316
    %v318 = vsel %vm302, %v314, 0.0
    %319 = vadd.xlane.f32.xlu0 %v318
    %v320 = vpop.xlane.xlu0 %319
    %v321 = vrcp.pop %v317
    %v322 = vrcp.pop %v320
    %v323 = vmul.f32 %v312, %v321
    %v324 = vmul.f32 %v314, %v322
    %325 = vrot.lane.b32.xlu0 %v139, 64
    %v326 = vpop.permute.xlu0 %325
    %v329 = vsel %vm302, %v323, 0
    %331 = vmatprep.subr.mxu0 0.0
    %332 = vmatpush1.msra.mxu0 %v326
    %333 = vmatprep.subr.mxu0 0.0
    %334 = vmatpush1.msra.mxu0 0.0
    %335 = vmatprep.subr.mxu0 0.0
    %336 = vmatpush1.msra.mxu0 0.0
    %337 = vmatprep.subr.mxu0 0.0
    %338 = vmatpush1.msra.mxu0 0.0
    %339 = vmatprep.subr.mxu0 0.0
    %340 = vmatpush1.msra.mxu0 0.0
    %341 = vmatprep.subr.mxu0 0.0
    %342 = vmatpush1.msra.mxu0 0.0
    %343 = vmatprep.subr.mxu0 0.0
    %344 = vmatpush1.msra.mxu0 0.0
    %345 = vmatprep.subr.mxu0 0.0
    %346 = vmatpush1.msra.mxu0 0.0
    %347 = vmatprep.subr.mxu0 0.0
    %348 = vmatpush1.msra.mxu0 0.0
    %349 = vmatprep.subr.mxu0 0.0
    %350 = vmatpush1.msra.mxu0 0.0
    %351 = vmatprep.subr.mxu0 0.0
    %352 = vmatpush1.msra.mxu0 0.0
    %353 = vmatprep.subr.mxu0 0.0
    %354 = vmatpush1.msra.mxu0 0.0
    %355 = vmatprep.subr.mxu0 0.0
    %356 = vmatpush1.msra.mxu0 0.0
    %357 = vmatprep.subr.mxu0 0.0
    %358 = vmatpush1.msra.mxu0 0.0
    %359 = vmatprep.subr.mxu0 0.0
    %360 = vmatpush1.msra.mxu0 0.0
    %361 = vmatprep.subr.mxu0 0.0
    %362 = vmatpush1.msra.mxu0 0.0
    %363 = vmatprep.subr.mxu0 0.0
    %364 = vmatpush1.msra.mxu0 0.0
    %365 = vmatprep.subr.mxu0 0.0
    %366 = vmatpush1.msra.mxu0 0.0
    %367 = vmatprep.subr.mxu0 0.0
    %368 = vmatpush1.msra.mxu0 0.0
    %369 = vmatprep.subr.mxu0 0.0
    %370 = vmatpush1.msra.mxu0 0.0
    %371 = vmatprep.subr.mxu0 0.0
    %372 = vmatpush1.msra.mxu0 0.0
    %373 = vmatprep.subr.mxu0 0.0
    %374 = vmatpush1.msra.mxu0 0.0
    %375 = vmatprep.subr.mxu0 0.0
    %376 = vmatpush1.msra.mxu0 0.0
    %377 = vmatprep.subr.mxu0 0.0
    %378 = vmatpush1.msra.mxu0 0.0
    %379 = vmatprep.subr.mxu0 0.0
    %380 = vmatpush1.msra.mxu0 0.0
    %381 = vmatprep.subr.mxu0 0.0
    %382 = vmatpush1.msra.mxu0 0.0
    %383 = vmatprep.subr.mxu0 0.0
    %384 = vmatpush1.msra.mxu0 0.0
    %385 = vmatprep.subr.mxu0 0.0
    %386 = vmatpush1.msra.mxu0 0.0
    %387 = vmatprep.subr.mxu0 0.0
    %388 = vmatpush1.msra.mxu0 0.0
    %389 = vmatprep.subr.mxu0 0.0
    %390 = vmatpush1.msra.mxu0 0.0
    %391 = vmatprep.subr.mxu0 0.0
    %392 = vmatpush1.msra.mxu0 0.0
    %393 = vmatprep.subr.mxu0 0.0
    %394 = vmatpush1.msra.mxu0 0.0
    %395 = vmatprep.mubr.f32.mxu0 0.0
    %396 = vmatmul.mubr.f32.gmra.mrb[0].mxu0 %v329
    %v397 = vpop.f32.mrb[0].mxu0
    %v398 = vadd.f32 0.0, %v397
    %v399 = vpop.f32.mrb[0].mxu0
    %400 = vdwg.mxu0
    %401 = vrot.lane.b32.xlu0 %v144, 64
    %v402 = vpop.permute.xlu0 %401
    %v405 = vsel %vm302, %v324, 0
    %407 = vmatprep.subr.mxu0 0.0
    %408 = vmatpush1.msra.mxu0 %v402
    %409 = vmatprep.subr.mxu0 0.0
    %410 = vmatpush1.msra.mxu0 0.0
    %411 = vmatprep.subr.mxu0 0.0
    %412 = vmatpush1.msra.mxu0 0.0
    %413 = vmatprep.subr.mxu0 0.0
    %414 = vmatpush1.msra.mxu0 0.0
    %415 = vmatprep.subr.mxu0 0.0
    %416 = vmatpush1.msra.mxu0 0.0
    %417 = vmatprep.subr.mxu0 0.0
    %418 = vmatpush1.msra.mxu0 0.0
    %419 = vmatprep.subr.mxu0 0.0
    %420 = vmatpush1.msra.mxu0 0.0
    %421 = vmatprep.subr.mxu0 0.0
    %422 = vmatpush1.msra.mxu0 0.0
    %423 = vmatprep.subr.mxu0 0.0
    %424 = vmatpush1.msra.mxu0 0.0
    %425 = vmatprep.subr.mxu0 0.0
    %426 = vmatpush1.msra.mxu0 0.0
    %427 = vmatprep.subr.mxu0 0.0
    %428 = vmatpush1.msra.mxu0 0.0
    %429 = vmatprep.subr.mxu0 0.0
    %430 = vmatpush1.msra.mxu0 0.0
    %431 = vmatprep.subr.mxu0 0.0
    %432 = vmatpush1.msra.mxu0 0.0
    %433 = vmatprep.subr.mxu0 0.0
    %434 = vmatpush1.msra.mxu0 0.0
    %435 = vmatprep.subr.mxu0 0.0
    %436 = vmatpush1.msra.mxu0 0.0
    %437 = vmatprep.subr.mxu0 0.0
    %438 = vmatpush1.msra.mxu0 0.0
    %439 = vmatprep.subr.mxu0 0.0
    %440 = vmatpush1.msra.mxu0 0.0
    %441 = vmatprep.subr.mxu0 0.0
    %442 = vmatpush1.msra.mxu0 0.0
    %443 = vmatprep.subr.mxu0 0.0
    %444 = vmatpush1.msra.mxu0 0.0
    %445 = vmatprep.subr.mxu0 0.0
    %446 = vmatpush1.msra.mxu0 0.0
    %447 = vmatprep.subr.mxu0 0.0
    %448 = vmatpush1.msra.mxu0 0.0
    %449 = vmatprep.subr.mxu0 0.0
    %450 = vmatpush1.msra.mxu0 0.0
    %451 = vmatprep.subr.mxu0 0.0
    %452 = vmatpush1.msra.mxu0 0.0
    %453 = vmatprep.subr.mxu0 0.0
    %454 = vmatpush1.msra.mxu0 0.0
    %455 = vmatprep.subr.mxu0 0.0
    %456 = vmatpush1.msra.mxu0 0.0
    %457 = vmatprep.subr.mxu0 0.0
    %458 = vmatpush1.msra.mxu0 0.0
    %459 = vmatprep.subr.mxu0 0.0
    %460 = vmatpush1.msra.mxu0 0.0
    %461 = vmatprep.subr.mxu0 0.0
    %462 = vmatpush1.msra.mxu0 0.0
    %463 = vmatprep.subr.mxu0 0.0
    %464 = vmatpush1.msra.mxu0 0.0
    %465 = vmatprep.subr.mxu0 0.0
    %466 = vmatpush1.msra.mxu0 0.0
    %467 = vmatprep.subr.mxu0 0.0
    %468 = vmatpush1.msra.mxu0 0.0
    %469 = vmatprep.subr.mxu0 0.0
    %470 = vmatpush1.msra.mxu0 0.0
    %471 = vmatprep.mubr.f32.mxu0 0.0
    %472 = vmatmul.mubr.f32.gmra.mrb[0].mxu0 %v405
    %v473 = vpop.f32.mrb[0].mxu0
    %v474 = vadd.f32 0.0, %v473
    %v475 = vpop.f32.mrb[0].mxu0
    %476 = vdwg.mxu0
    %477 = vrot.lane.b32.xlu0 %v139, 124
    %v478 = vpop.permute.xlu0 %477
    %479 = vrot.lane.b32.xlu0 %v139, 92
    %v480 = vpop.permute.xlu0 %479
    %v481 = vsel %vm150, %v478, 0
    %v483 = vsel %vm150, %v480, 0
    %485 = vmatprep.subr.mxu0 0.0
    %486 = vmatpush1.xpose.msra.mxu0 %v483
    %487 = vmatprep.subr.mxu0 0.0
    %488 = vmatpush1.xpose.msra.mxu0 0.0
    %489 = vmatprep.subr.mxu0 0.0
    %490 = vmatpush1.xpose.msra.mxu0 0.0
    %491 = vmatprep.subr.mxu0 0.0
    %492 = vmatpush1.xpose.msra.mxu0 0.0
    %493 = vmatprep.subr.mxu0 0.0
    %494 = vmatpush1.xpose.msra.mxu0 0.0
    %495 = vmatprep.subr.mxu0 0.0
    %496 = vmatpush1.xpose.msra.mxu0 0.0
    %497 = vmatprep.subr.mxu0 0.0
    %498 = vmatpush1.xpose.msra.mxu0 0.0
    %499 = vmatprep.subr.mxu0 0.0
    %500 = vmatpush1.xpose.msra.mxu0 0.0
    %501 = vmatprep.subr.mxu0 0.0
    %502 = vmatpush1.xpose.msra.mxu0 0.0
    %503 = vmatprep.subr.mxu0 0.0
    %504 = vmatpush1.xpose.msra.mxu0 0.0
    %505 = vmatprep.subr.mxu0 0.0
    %506 = vmatpush1.xpose.msra.mxu0 0.0
    %507 = vmatprep.subr.mxu0 0.0
    %508 = vmatpush1.xpose.msra.mxu0 0.0
    %509 = vmatprep.subr.mxu0 0.0
    %510 = vmatpush1.xpose.msra.mxu0 0.0
    %511 = vmatprep.subr.mxu0 0.0
    %512 = vmatpush1.xpose.msra.mxu0 0.0
    %513 = vmatprep.subr.mxu0 0.0
    %514 = vmatpush1.xpose.msra.mxu0 0.0
    %515 = vmatprep.subr.mxu0 0.0
    %516 = vmatpush1.xpose.msra.mxu0 0.0
    %517 = vmatprep.subr.mxu0 0.0
    %518 = vmatpush1.xpose.msra.mxu0 0.0
    %519 = vmatprep.subr.mxu0 0.0
    %520 = vmatpush1.xpose.msra.mxu0 0.0
    %521 = vmatprep.subr.mxu0 0.0
    %522 = vmatpush1.xpose.msra.mxu0 0.0
    %523 = vmatprep.subr.mxu0 0.0
    %524 = vmatpush1.xpose.msra.mxu0 0.0
    %525 = vmatprep.subr.mxu0 0.0
    %526 = vmatpush1.xpose.msra.mxu0 0.0
    %527 = vmatprep.subr.mxu0 0.0
    %528 = vmatpush1.xpose.msra.mxu0 0.0
    %529 = vmatprep.subr.mxu0 0.0
    %530 = vmatpush1.xpose.msra.mxu0 0.0
    %531 = vmatprep.subr.mxu0 0.0
    %532 = vmatpush1.xpose.msra.mxu0 0.0
    %533 = vmatprep.subr.mxu0 0.0
    %534 = vmatpush1.xpose.msra.mxu0 0.0
    %535 = vmatprep.subr.mxu0 0.0
    %536 = vmatpush1.xpose.msra.mxu0 0.0
    %537 = vmatprep.subr.mxu0 0.0
    %538 = vmatpush1.xpose.msra.mxu0 0.0
    %539 = vmatprep.subr.mxu0 0.0
    %540 = vmatpush1.xpose.msra.mxu0 0.0
    %541 = vmatprep.subr.mxu0 0.0
    %542 = vmatpush1.xpose.msra.mxu0 0.0
    %543 = vmatprep.subr.mxu0 0.0
    %544 = vmatpush1.xpose.msra.mxu0 0.0
    %545 = vmatprep.subr.mxu0 0.0
    %546 = vmatpush1.xpose.msra.mxu0 0.0
    %547 = vmatprep.subr.mxu0 0.0
    %548 = vmatpush1.xpose.msra.mxu0 0.0
    %549 = vmatprep.mubr.f32.mxu0 0.0
    %550 = vmatmul.mubr.f32.gmra.mrb[0].mxu0 %v481
    %v551 = vpop.f32.mrb[0].mxu0
    %v552 = vadd.f32 0.0, %v551
    %v553 = vpop.f32.mrb[0].mxu0
    %554 = vdwg.mxu0
    %555 = vrot.lane.b32.xlu0 %v144, 124
    %v556 = vpop.permute.xlu0 %555
    %557 = vrot.lane.b32.xlu0 %v144, 92
    %v558 = vpop.permute.xlu0 %557
    %v559 = vsel %vm150, %v556, 0
    %v561 = vsel %vm150, %v558, 0
    %563 = vmatprep.subr.mxu0 0.0
    %564 = vmatpush1.xpose.msra.mxu0 %v561
    %565 = vmatprep.subr.mxu0 0.0
    %566 = vmatpush1.xpose.msra.mxu0 0.0
    %567 = vmatprep.subr.mxu0 0.0
    %568 = vmatpush1.xpose.msra.mxu0 0.0
    %569 = vmatprep.subr.mxu0 0.0
    %570 = vmatpush1.xpose.msra.mxu0 0.0
    %571 = vmatprep.subr.mxu0 0.0
    %572 = vmatpush1.xpose.msra.mxu0 0.0
    %573 = vmatprep.subr.mxu0 0.0
    %574 = vmatpush1.xpose.msra.mxu0 0.0
    %575 = vmatprep.subr.mxu0 0.0
    %576 = vmatpush1.xpose.msra.mxu0 0.0
    %577 = vmatprep.subr.mxu0 0.0
    %578 = vmatpush1.xpose.msra.mxu0 0.0
    %579 = vmatprep.subr.mxu0 0.0
    %580 = vmatpush1.xpose.msra.mxu0 0.0
    %581 = vmatprep.subr.mxu0 0.0
    %582 = vmatpush1.xpose.msra.mxu0 0.0
    %583 = vmatprep.subr.mxu0 0.0
    %584 = vmatpush1.xpose.msra.mxu0 0.0
    %585 = vmatprep.subr.mxu0 0.0
    %586 = vmatpush1.xpose.msra.mxu0 0.0
    %587 = vmatprep.subr.mxu0 0.0
    %588 = vmatpush1.xpose.msra.mxu0 0.0
    %589 = vmatprep.subr.mxu0 0.0
    %590 = vmatpush1.xpose.msra.mxu0 0.0
    %591 = vmatprep.subr.mxu0 0.0
    %592 = vmatpush1.xpose.msra.mxu0 0.0
    %593 = vmatprep.subr.mxu0 0.0
    %594 = vmatpush1.xpose.msra.mxu0 0.0
    %595 = vmatprep.subr.mxu0 0.0
    %596 = vmatpush1.xpose.msra.mxu0 0.0
    %597 = vmatprep.subr.mxu0 0.0
    %598 = vmatpush1.xpose.msra.mxu0 0.0
    %599 = vmatprep.subr.mxu0 0.0
    %600 = vmatpush1.xpose.msra.mxu0 0.0
    %601 = vmatprep.subr.mxu0 0.0
    %602 = vmatpush1.xpose.msra.mxu0 0.0
    %603 = vmatprep.subr.mxu0 0.0
    %604 = vmatpush1.xpose.msra.mxu0 0.0
    %605 = vmatprep.subr.mxu0 0.0
    %606 = vmatpush1.xpose.msra.mxu0 0.0
    %607 = vmatprep.subr.mxu0 0.0
    %608 = vmatpush1.xpose.msra.mxu0 0.0
    %609 = vmatprep.subr.mxu0 0.0
    %610 = vmatpush1.xpose.msra.mxu0 0.0
    %611 = vmatprep.subr.mxu0 0.0
    %612 = vmatpush1.xpose.msra.mxu0 0.0
    %613 = vmatprep.subr.mxu0 0.0
    %614 = vmatpush1.xpose.msra.mxu0 0.0
    %615 = vmatprep.subr.mxu0 0.0
    %616 = vmatpush1.xpose.msra.mxu0 0.0
    %617 = vmatprep.subr.mxu0 0.0
    %618 = vmatpush1.xpose.msra.mxu0 0.0
    %619 = vmatprep.subr.mxu0 0.0
    %620 = vmatpush1.xpose.msra.mxu0 0.0
    %621 = vmatprep.subr.mxu0 0.0
    %622 = vmatpush1.xpose.msra.mxu0 0.0
    %623 = vmatprep.subr.mxu0 0.0
    %624 = vmatpush1.xpose.msra.mxu0 0.0
    %625 = vmatprep.subr.mxu0 0.0
    %626 = vmatpush1.xpose.msra.mxu0 0.0
    %627 = vmatprep.mubr.f32.mxu0 0.0
    %628 = vmatmul.mubr.f32.gmra.mrb[0].mxu0 %v559
    %v629 = vpop.f32.mrb[0].mxu0
    %v630 = vadd.f32 0.0, %v629
    %v631 = vpop.f32.mrb[0].mxu0
    %632 = vdwg.mxu0
    %v633 = vsel %vm302, %v552, -inf
    %634 = vmax.xlane.f32.xlu0 %v633
    %v635 = vpop.xlane.xlu0 %634
    %v636 = vsel %vm302, %v630, -inf
    %637 = vmax.xlane.f32.xlu0 %v636
    %v638 = vpop.xlane.xlu0 %637
    %v639 = vsub.f32 %v552, %v635
    %v640 = vsub.f32 %v630, %v638
    %v641 = vmul.f32 %v639, 1.442695
    %v642 = vpow.pop %v641
    %v643 = vmul.f32 %v640, 1.442695
    %v644 = vpow.pop %v643
    %v645 = vsel %vm302, %v642, 0.0
    %646 = vadd.xlane.f32.xlu0 %v645
    %v647 = vpop.xlane.xlu0 %646
    %v648 = vsel %vm302, %v644, 0.0
    %649 = vadd.xlane.f32.xlu0 %v648
    %v650 = vpop.xlane.xlu0 %649
    %v651 = vrcp.pop %v647
    %v652 = vrcp.pop %v650
    %v653 = vmul.f32 %v642, %v651
    %v654 = vmul.f32 %v644, %v652
    %655 = vrot.lane.b32.xlu0 %v139, 60
    %v656 = vpop.permute.xlu0 %655
    %v659 = vsel %vm302, %v653, 0
    %661 = vmatprep.subr.mxu0 0.0
    %662 = vmatpush1.msra.mxu0 %v656
    %663 = vmatprep.subr.mxu0 0.0
    %664 = vmatpush1.msra.mxu0 0.0
    %665 = vmatprep.subr.mxu0 0.0
    %666 = vmatpush1.msra.mxu0 0.0
    %667 = vmatprep.subr.mxu0 0.0
    %668 = vmatpush1.msra.mxu0 0.0
    %669 = vmatprep.subr.mxu0 0.0
    %670 = vmatpush1.msra.mxu0 0.0
    %671 = vmatprep.subr.mxu0 0.0
    %672 = vmatpush1.msra.mxu0 0.0
    %673 = vmatprep.subr.mxu0 0.0
    %674 = vmatpush1.msra.mxu0 0.0
    %675 = vmatprep.subr.mxu0 0.0
    %676 = vmatpush1.msra.mxu0 0.0
    %677 = vmatprep.subr.mxu0 0.0
    %678 = vmatpush1.msra.mxu0 0.0
    %679 = vmatprep.subr.mxu0 0.0
    %680 = vmatpush1.msra.mxu0 0.0
    %681 = vmatprep.subr.mxu0 0.0
    %682 = vmatpush1.msra.mxu0 0.0
    %683 = vmatprep.subr.mxu0 0.0
    %684 = vmatpush1.msra.mxu0 0.0
    %685 = vmatprep.subr.mxu0 0.0
    %686 = vmatpush1.msra.mxu0 0.0
    %687 = vmatprep.subr.mxu0 0.0
    %688 = vmatpush1.msra.mxu0 0.0
    %689 = vmatprep.subr.mxu0 0.0
    %690 = vmatpush1.msra.mxu0 0.0
    %691 = vmatprep.subr.mxu0 0.0
    %692 = vmatpush1.msra.mxu0 0.0
    %693 = vmatprep.subr.mxu0 0.0
    %694 = vmatpush1.msra.mxu0 0.0
    %695 = vmatprep.subr.mxu0 0.0
    %696 = vmatpush1.msra.mxu0 0.0
    %697 = vmatprep.subr.mxu0 0.0
    %698 = vmatpush1.msra.mxu0 0.0
    %699 = vmatprep.subr.mxu0 0.0
    %700 = vmatpush1.msra.mxu0 0.0
    %701 = vmatprep.subr.mxu0 0.0
    %702 = vmatpush1.msra.mxu0 0.0
    %703 = vmatprep.subr.mxu0 0.0
    %704 = vmatpush1.msra.mxu0 0.0
    %705 = vmatprep.subr.mxu0 0.0
    %706 = vmatpush1.msra.mxu0 0.0
    %707 = vmatprep.subr.mxu0 0.0
    %708 = vmatpush1.msra.mxu0 0.0
    %709 = vmatprep.subr.mxu0 0.0
    %710 = vmatpush1.msra.mxu0 0.0
    %711 = vmatprep.subr.mxu0 0.0
    %712 = vmatpush1.msra.mxu0 0.0
    %713 = vmatprep.subr.mxu0 0.0
    %714 = vmatpush1.msra.mxu0 0.0
    %715 = vmatprep.subr.mxu0 0.0
    %716 = vmatpush1.msra.mxu0 0.0
    %717 = vmatprep.subr.mxu0 0.0
    %718 = vmatpush1.msra.mxu0 0.0
    %719 = vmatprep.subr.mxu0 0.0
    %720 = vmatpush1.msra.mxu0 0.0
    %721 = vmatprep.subr.mxu0 0.0
    %722 = vmatpush1.msra.mxu0 0.0
    %723 = vmatprep.subr.mxu0 0.0
    %724 = vmatpush1.msra.mxu0 0.0
    %725 = vmatprep.mubr.f32.mxu0 0.0
    %726 = vmatmul.mubr.f32.gmra.mrb[0].mxu0 %v659
    %v727 = vpop.f32.mrb[0].mxu0
    %v728 = vadd.f32 0.0, %v727
    %v729 = vpop.f32.mrb[0].mxu0
    %730 = vdwg.mxu0
    %731 = vrot.lane.b32.xlu0 %v144, 60
    %v732 = vpop.permute.xlu0 %731
    %v735 = vsel %vm302, %v654, 0
    %737 = vmatprep.subr.mxu0 0.0
    %738 = vmatpush1.msra.mxu0 %v732
    %739 = vmatprep.subr.mxu0 0.0
    %740 = vmatpush1.msra.mxu0 0.0
    %741 = vmatprep.subr.mxu0 0.0
    %742 = vmatpush1.msra.mxu0 0.0
    %743 = vmatprep.subr.mxu0 0.0
    %744 = vmatpush1.msra.mxu0 0.0
    %745 = vmatprep.subr.mxu0 0.0
    %746 = vmatpush1.msra.mxu0 0.0
    %747 = vmatprep.subr.mxu0 0.0
    %748 = vmatpush1.msra.mxu0 0.0
    %749 = vmatprep.subr.mxu0 0.0
    %750 = vmatpush1.msra.mxu0 0.0
    %751 = vmatprep.subr.mxu0 0.0
    %752 = vmatpush1.msra.mxu0 0.0
    %753 = vmatprep.subr.mxu0 0.0
    %754 = vmatpush1.msra.mxu0 0.0
    %755 = vmatprep.subr.mxu0 0.0
    %756 = vmatpush1.msra.mxu0 0.0
    %757 = vmatprep.subr.mxu0 0.0
    %758 = vmatpush1.msra.mxu0 0.0
    %759 = vmatprep.subr.mxu0 0.0
    %760 = vmatpush1.msra.mxu0 0.0
    %761 = vmatprep.subr.mxu0 0.0
    %762 = vmatpush1.msra.mxu0 0.0
    %763 = vmatprep.subr.mxu0 0.0
    %764 = vmatpush1.msra.mxu0 0.0
    %765 = vmatprep.subr.mxu0 0.0
    %766 = vmatpush1.msra.mxu0 0.0
    %767 = vmatprep.subr.mxu0 0.0
    %768 = vmatpush1.msra.mxu0 0.0
    %769 = vmatprep.subr.mxu0 0.0
    %770 = vmatpush1.msra.mxu0 0.0
    %771 = vmatprep.subr.mxu0 0.0
    %772 = vmatpush1.msra.mxu0 0.0
    %773 = vmatprep.subr.mxu0 0.0
    %774 = vmatpush1.msra.mxu0 0.0
    %775 = vmatprep.subr.mxu0 0.0
    %776 = vmatpush1.msra.mxu0 0.0
    %777 = vmatprep.subr.mxu0 0.0
    %778 = vmatpush1.msra.mxu0 0.0
    %779 = vmatprep.subr.mxu0 0.0
    %780 = vmatpush1.msra.mxu0 0.0
    %781 = vmatprep.subr.mxu0 0.0
    %782 = vmatpush1.msra.mxu0 0.0
    %783 = vmatprep.subr.mxu0 0.0
    %784 = vmatpush1.msra.mxu0 0.0
    %785 = vmatprep.subr.mxu0 0.0
    %786 = vmatpush1.msra.mxu0 0.0
    %787 = vmatprep.subr.mxu0 0.0
    %788 = vmatpush1.msra.mxu0 0.0
    %789 = vmatprep.subr.mxu0 0.0
    %790 = vmatpush1.msra.mxu0 0.0
    %791 = vmatprep.subr.mxu0 0.0
    %792 = vmatpush1.msra.mxu0 0.0
    %793 = vmatprep.subr.mxu0 0.0
    %794 = vmatpush1.msra.mxu0 0.0
    %795 = vmatprep.subr.mxu0 0.0
    %796 = vmatpush1.msra.mxu0 0.0
    %797 = vmatprep.subr.mxu0 0.0
    %798 = vmatpush1.msra.mxu0 0.0
    %799 = vmatprep.subr.mxu0 0.0
    %800 = vmatpush1.msra.mxu0 0.0
    %801 = vmatprep.mubr.f32.mxu0 0.0
    %802 = vmatmul.mubr.f32.gmra.mrb[0].mxu0 %v735
    %v803 = vpop.f32.mrb[0].mxu0
    %v804 = vadd.f32 0.0, %v803
    %v805 = vpop.f32.mrb[0].mxu0
    %806 = vdwg.mxu0
    %807 = vrot.lane.b32.xlu0 %v139, 120
    %v808 = vpop.permute.xlu0 %807
    %809 = vrot.lane.b32.xlu0 %v139, 88
    %v810 = vpop.permute.xlu0 %809
    %v811 = vsel %vm150, %v808, 0
    %v813 = vsel %vm150, %v810, 0
    %815 = vmatprep.subr.mxu0 0.0
    %816 = vmatpush1.xpose.msra.mxu0 %v813
    %817 = vmatprep.subr.mxu0 0.0
    %818 = vmatpush1.xpose.msra.mxu0 0.0
    %819 = vmatprep.subr.mxu0 0.0
    %820 = vmatpush1.xpose.msra.mxu0 0.0
    %821 = vmatprep.subr.mxu0 0.0
    %822 = vmatpush1.xpose.msra.mxu0 0.0
    %823 = vmatprep.subr.mxu0 0.0
    %824 = vmatpush1.xpose.msra.mxu0 0.0
    %825 = vmatprep.subr.mxu0 0.0
    %826 = vmatpush1.xpose.msra.mxu0 0.0
    %827 = vmatprep.subr.mxu0 0.0
    %828 = vmatpush1.xpose.msra.mxu0 0.0
    %829 = vmatprep.subr.mxu0 0.0
    %830 = vmatpush1.xpose.msra.mxu0 0.0
    %831 = vmatprep.subr.mxu0 0.0
    %832 = vmatpush1.xpose.msra.mxu0 0.0
    %833 = vmatprep.subr.mxu0 0.0
    %834 = vmatpush1.xpose.msra.mxu0 0.0
    %835 = vmatprep.subr.mxu0 0.0
    %836 = vmatpush1.xpose.msra.mxu0 0.0
    %837 = vmatprep.subr.mxu0 0.0
    %838 = vmatpush1.xpose.msra.mxu0 0.0
    %839 = vmatprep.subr.mxu0 0.0
    %840 = vmatpush1.xpose.msra.mxu0 0.0
    %841 = vmatprep.subr.mxu0 0.0
    %842 = vmatpush1.xpose.msra.mxu0 0.0
    %843 = vmatprep.subr.mxu0 0.0
    %844 = vmatpush1.xpose.msra.mxu0 0.0
    %845 = vmatprep.subr.mxu0 0.0
    %846 = vmatpush1.xpose.msra.mxu0 0.0
    %847 = vmatprep.subr.mxu0 0.0
    %848 = vmatpush1.xpose.msra.mxu0 0.0
    %849 = vmatprep.subr.mxu0 0.0
    %850 = vmatpush1.xpose.msra.mxu0 0.0
    %851 = vmatprep.subr.mxu0 0.0
    %852 = vmatpush1.xpose.msra.mxu0 0.0
    %853 = vmatprep.subr.mxu0 0.0
    %854 = vmatpush1.xpose.msra.mxu0 0.0
    %855 = vmatprep.subr.mxu0 0.0
    %856 = vmatpush1.xpose.msra.mxu0 0.0
    %857 = vmatprep.subr.mxu0 0.0
    %858 = vmatpush1.xpose.msra.mxu0 0.0
    %859 = vmatprep.subr.mxu0 0.0
    %860 = vmatpush1.xpose.msra.mxu0 0.0
    %861 = vmatprep.subr.mxu0 0.0
    %862 = vmatpush1.xpose.msra.mxu0 0.0
    %863 = vmatprep.subr.mxu0 0.0
    %864 = vmatpush1.xpose.msra.mxu0 0.0
    %865 = vmatprep.subr.mxu0 0.0
    %866 = vmatpush1.xpose.msra.mxu0 0.0
    %867 = vmatprep.subr.mxu0 0.0
    %868 = vmatpush1.xpose.msra.mxu0 0.0
    %869 = vmatprep.subr.mxu0 0.0
    %870 = vmatpush1.xpose.msra.mxu0 0.0
    %871 = vmatprep.subr.mxu0 0.0
    %872 = vmatpush1.xpose.msra.mxu0 0.0
    %873 = vmatprep.subr.mxu0 0.0
    %874 = vmatpush1.xpose.msra.mxu0 0.0
    %875 = vmatprep.subr.mxu0 0.0
    %876 = vmatpush1.xpose.msra.mxu0 0.0
    %877 = vmatprep.subr.mxu0 0.0
    %878 = vmatpush1.xpose.msra.mxu0 0.0
    %879 = vmatprep.mubr.f32.mxu0 0.0
    %880 = vmatmul.mubr.f32.gmra.mrb[0].mxu0 %v811
    %v881 = vpop.f32.mrb[0].mxu0
    %v882 = vadd.f32 0.0, %v881
    %v883 = vpop.f32.mrb[0].mxu0
    %884 = vdwg.mxu0
    %885 = vrot.lane.b32.xlu0 %v144, 120
    %v886 = vpop.permute.xlu0 %885
    %887 = vrot.lane.b32.xlu0 %v144, 88
    %v888 = vpop.permute.xlu0 %887
    %v889 = vsel %vm150, %v886, 0
    %v891 = vsel %vm150, %v888, 0
    %893 = vmatprep.subr.mxu0 0.0
    %894 = vmatpush1.xpose.msra.mxu0 %v891
    %895 = vmatprep.subr.mxu0 0.0
    %896 = vmatpush1.xpose.msra.mxu0 0.0
    %897 = vmatprep.subr.mxu0 0.0
    %898 = vmatpush1.xpose.msra.mxu0 0.0
    %899 = vmatprep.subr.mxu0 0.0
    %900 = vmatpush1.xpose.msra.mxu0 0.0
    %901 = vmatprep.subr.mxu0 0.0
    %902 = vmatpush1.xpose.msra.mxu0 0.0
    %903 = vmatprep.subr.mxu0 0.0
    %904 = vmatpush1.xpose.msra.mxu0 0.0
    %905 = vmatprep.subr.mxu0 0.0
    %906 = vmatpush1.xpose.msra.mxu0 0.0
    %907 = vmatprep.subr.mxu0 0.0
    %908 = vmatpush1.xpose.msra.mxu0 0.0
    %909 = vmatprep.subr.mxu0 0.0
    %910 = vmatpush1.xpose.msra.mxu0 0.0
    %911 = vmatprep.subr.mxu0 0.0
    %912 = vmatpush1.xpose.msra.mxu0 0.0
    %913 = vmatprep.subr.mxu0 0.0
    %914 = vmatpush1.xpose.msra.mxu0 0.0
    %915 = vmatprep.subr.mxu0 0.0
    %916 = vmatpush1.xpose.msra.mxu0 0.0
    %917 = vmatprep.subr.mxu0 0.0
    %918 = vmatpush1.xpose.msra.mxu0 0.0
    %919 = vmatprep.subr.mxu0 0.0
    %920 = vmatpush1.xpose.msra.mxu0 0.0
    %921 = vmatprep.subr.mxu0 0.0
    %922 = vmatpush1.xpose.msra.mxu0 0.0
    %923 = vmatprep.subr.mxu0 0.0
    %924 = vmatpush1.xpose.msra.mxu0 0.0
    %925 = vmatprep.subr.mxu0 0.0
    %926 = vmatpush1.xpose.msra.mxu0 0.0
    %927 = vmatprep.subr.mxu0 0.0
    %928 = vmatpush1.xpose.msra.mxu0 0.0
    %929 = vmatprep.subr.mxu0 0.0
    %930 = vmatpush1.xpose.msra.mxu0 0.0
    %931 = vmatprep.subr.mxu0 0.0
    %932 = vmatpush1.xpose.msra.mxu0 0.0
    %933 = vmatprep.subr.mxu0 0.0
    %934 = vmatpush1.xpose.msra.mxu0 0.0
    %935 = vmatprep.subr.mxu0 0.0
    %936 = vmatpush1.xpose.msra.mxu0 0.0
    %937 = vmatprep.subr.mxu0 0.0
    %938 = vmatpush1.xpose.msra.mxu0 0.0
    %939 = vmatprep.subr.mxu0 0.0
    %940 = vmatpush1.xpose.msra.mxu0 0.0
    %941 = vmatprep.subr.mxu0 0.0
    %942 = vmatpush1.xpose.msra.mxu0 0.0
    %943 = vmatprep.subr.mxu0 0.0
    %944 = vmatpush1.xpose.msra.mxu0 0.0
    %945 = vmatprep.subr.mxu0 0.0
    %946 = vmatpush1.xpose.msra.mxu0 0.0
    %947 = vmatprep.subr.mxu0 0.0
    %948 = vmatpush1.xpose.msra.mxu0 0.0
    %949 = vmatprep.subr.mxu0 0.0
    %950 = vmatpush1.xpose.msra.mxu0 0.0
    %951 = vmatprep.subr.mxu0 0.0
    %952 = vmatpush1.xpose.msra.mxu0 0.0
    %953 = vmatprep.subr.mxu0 0.0
    %954 = vmatpush1.xpose.msra.mxu0 0.0
    %955 = vmatprep.subr.mxu0 0.0
    %956 = vmatpush1.xpose.msra.mxu0 0.0
    %957 = vmatprep.mubr.f32.mxu0 0.0
    %958 = vmatmul.mubr.f32.gmra.mrb[0].mxu0 %v889
    %v959 = vpop.f32.mrb[0].mxu0
    %v960 = vadd.f32 0.0, %v959
    %v961 = vpop.f32.mrb[0].mxu0
    %962 = vdwg.mxu0
    %v963 = vsel %vm302, %v882, -inf
    %964 = vmax.xlane.f32.xlu0 %v963
    %v965 = vpop.xlane.xlu0 %964
    %v966 = vsel %vm302, %v960, -inf
    %967 = vmax.xlane.f32.xlu0 %v966
    %v968 = vpop.xlane.xlu0 %967
    %v969 = vsub.f32 %v882, %v965
    %v970 = vsub.f32 %v960, %v968
    %v971 = vmul.f32 %v969, 1.442695
    %v972 = vpow.pop %v971
    %v973 = vmul.f32 %v970, 1.442695
    %v974 = vpow.pop %v973
    %v975 = vsel %vm302, %v972, 0.0
    %976 = vadd.xlane.f32.xlu0 %v975
    %v977 = vpop.xlane.xlu0 %976
    %v978 = vsel %vm302, %v974, 0.0
    %979 = vadd.xlane.f32.xlu0 %v978
    %v980 = vpop.xlane.xlu0 %979
    %v981 = vrcp.pop %v977
    %v982 = vrcp.pop %v980
    %v983 = vmul.f32 %v972, %v981
    %v984 = vmul.f32 %v974, %v982
    %985 = vrot.lane.b32.xlu0 %v139, 56
    %v986 = vpop.permute.xlu0 %985
    %v989 = vsel %vm302, %v983, 0
    %991 = vmatprep.subr.mxu0 0.0
    %992 = vmatpush1.msra.mxu0 %v986
    %993 = vmatprep.subr.mxu0 0.0
    %994 = vmatpush1.msra.mxu0 0.0
    %995 = vmatprep.subr.mxu0 0.0
    %996 = vmatpush1.msra.mxu0 0.0
    %997 = vmatprep.subr.mxu0 0.0
    %998 = vmatpush1.msra.mxu0 0.0
    %999 = vmatprep.subr.mxu0 0.0
    %1000 = vmatpush1.msra.mxu0 0.0
    %1001 = vmatprep.subr.mxu0 0.0
    %1002 = vmatpush1.msra.mxu0 0.0
    %1003 = vmatprep.subr.mxu0 0.0
    %1004 = vmatpush1.msra.mxu0 0.0
    %1005 = vmatprep.subr.mxu0 0.0
    %1006 = vmatpush1.msra.mxu0 0.0
    %1007 = vmatprep.subr.mxu0 0.0
    %1008 = vmatpush1.msra.mxu0 0.0
    %1009 = vmatprep.subr.mxu0 0.0
    %1010 = vmatpush1.msra.mxu0 0.0
    %1011 = vmatprep.subr.mxu0 0.0
    %1012 = vmatpush1.msra.mxu0 0.0
    %1013 = vmatprep.subr.mxu0 0.0
    %1014 = vmatpush1.msra.mxu0 0.0
    %1015 = vmatprep.subr.mxu0 0.0
    %1016 = vmatpush1.msra.mxu0 0.0
    %1017 = vmatprep.subr.mxu0 0.0
    %1018 = vmatpush1.msra.mxu0 0.0
    %1019 = vmatprep.subr.mxu0 0.0
    %1020 = vmatpush1.msra.mxu0 0.0
    %1021 = vmatprep.subr.mxu0 0.0
    %1022 = vmatpush1.msra.mxu0 0.0
    %1023 = vmatprep.subr.mxu0 0.0
    %1024 = vmatpush1.msra.mxu0 0.0
    %1025 = vmatprep.subr.mxu0 0.0
    %1026 = vmatpush1.msra.mxu0 0.0
    %1027 = vmatprep.subr.mxu0 0.0
    %1028 = vmatpush1.msra.mxu0 0.0
    %1029 = vmatprep.subr.mxu0 0.0
    %1030 = vmatpush1.msra.mxu0 0.0
    %1031 = vmatprep.subr.mxu0 0.0
    %1032 = vmatpush1.msra.mxu0 0.0
    %1033 = vmatprep.subr.mxu0 0.0
    %1034 = vmatpush1.msra.mxu0 0.0
    %1035 = vmatprep.subr.mxu0 0.0
    %1036 = vmatpush1.msra.mxu0 0.0
    %1037 = vmatprep.subr.mxu0 0.0
    %1038 = vmatpush1.msra.mxu0 0.0
    %1039 = vmatprep.subr.mxu0 0.0
    %1040 = vmatpush1.msra.mxu0 0.0
    %1041 = vmatprep.subr.mxu0 0.0
    %1042 = vmatpush1.msra.mxu0 0.0
    %1043 = vmatprep.subr.mxu0 0.0
    %1044 = vmatpush1.msra.mxu0 0.0
    %1045 = vmatprep.subr.mxu0 0.0
    %1046 = vmatpush1.msra.mxu0 0.0
    %1047 = vmatprep.subr.mxu0 0.0
    %1048 = vmatpush1.msra.mxu0 0.0
    %1049 = vmatprep.subr.mxu0 0.0
    %1050 = vmatpush1.msra.mxu0 0.0
    %1051 = vmatprep.subr.mxu0 0.0
    %1052 = vmatpush1.msra.mxu0 0.0
    %1053 = vmatprep.subr.mxu0 0.0
    %1054 = vmatpush1.msra.mxu0 0.0
    %1055 = vmatprep.mubr.f32.mxu0 0.0
    %1056 = vmatmul.mubr.f32.gmra.mrb[0].mxu0 %v989
    %v1057 = vpop.f32.mrb[0].mxu0
    %v1058 = vadd.f32 0.0, %v1057
    %v1059 = vpop.f32.mrb[0].mxu0
    %1060 = vdwg.mxu0
    %1061 = vrot.lane.b32.xlu0 %v144, 56
    %v1062 = vpop.permute.xlu0 %1061
    %v1065 = vsel %vm302, %v984, 0
    %1067 = vmatprep.subr.mxu0 0.0
    %1068 = vmatpush1.msra.mxu0 %v1062
    %1069 = vmatprep.subr.mxu0 0.0
    %1070 = vmatpush1.msra.mxu0 0.0
    %1071 = vmatprep.subr.mxu0 0.0
    %1072 = vmatpush1.msra.mxu0 0.0
    %1073 = vmatprep.subr.mxu0 0.0
    %1074 = vmatpush1.msra.mxu0 0.0
    %1075 = vmatprep.subr.mxu0 0.0
    %1076 = vmatpush1.msra.mxu0 0.0
    %1077 = vmatprep.subr.mxu0 0.0
    %1078 = vmatpush1.msra.mxu0 0.0
    %1079 = vmatprep.subr.mxu0 0.0
    %1080 = vmatpush1.msra.mxu0 0.0
    %1081 = vmatprep.subr.mxu0 0.0
    %1082 = vmatpush1.msra.mxu0 0.0
    %1083 = vmatprep.subr.mxu0 0.0
    %1084 = vmatpush1.msra.mxu0 0.0
    %1085 = vmatprep.subr.mxu0 0.0
    %1086 = vmatpush1.msra.mxu0 0.0
    %1087 = vmatprep.subr.mxu0 0.0
    %1088 = vmatpush1.msra.mxu0 0.0
    %1089 = vmatprep.subr.mxu0 0.0
    %1090 = vmatpush1.msra.mxu0 0.0
    %1091 = vmatprep.subr.mxu0 0.0
    %1092 = vmatpush1.msra.mxu0 0.0
    %1093 = vmatprep.subr.mxu0 0.0
    %1094 = vmatpush1.msra.mxu0 0.0
    %1095 = vmatprep.subr.mxu0 0.0
    %1096 = vmatpush1.msra.mxu0 0.0
    %1097 = vmatprep.subr.mxu0 0.0
    %1098 = vmatpush1.msra.mxu0 0.0
    %1099 = vmatprep.subr.mxu0 0.0
    %1100 = vmatpush1.msra.mxu0 0.0
    %1101 = vmatprep.subr.mxu0 0.0
    %1102 = vmatpush1.msra.mxu0 0.0
    %1103 = vmatprep.subr.mxu0 0.0
    %1104 = vmatpush1.msra.mxu0 0.0
    %1105 = vmatprep.subr.mxu0 0.0
    %1106 = vmatpush1.msra.mxu0 0.0
    %1107 = vmatprep.subr.mxu0 0.0
    %1108 = vmatpush1.msra.mxu0 0.0
    %1109 = vmatprep.subr.mxu0 0.0
    %1110 = vmatpush1.msra.mxu0 0.0
    %1111 = vmatprep.subr.mxu0 0.0
    %1112 = vmatpush1.msra.mxu0 0.0
    %1113 = vmatprep.subr.mxu0 0.0
    %1114 = vmatpush1.msra.mxu0 0.0
    %1115 = vmatprep.subr.mxu0 0.0
    %1116 = vmatpush1.msra.mxu0 0.0
    %1117 = vmatprep.subr.mxu0 0.0
    %1118 = vmatpush1.msra.mxu0 0.0
    %1119 = vmatprep.subr.mxu0 0.0
    %1120 = vmatpush1.msra.mxu0 0.0
    %1121 = vmatprep.subr.mxu0 0.0
    %1122 = vmatpush1.msra.mxu0 0.0
    %1123 = vmatprep.subr.mxu0 0.0
    %1124 = vmatpush1.msra.mxu0 0.0
    %1125 = vmatprep.subr.mxu0 0.0
    %1126 = vmatpush1.msra.mxu0 0.0
    %1127 = vmatprep.subr.mxu0 0.0
    %1128 = vmatpush1.msra.mxu0 0.0
    %1129 = vmatprep.subr.mxu0 0.0
    %1130 = vmatpush1.msra.mxu0 0.0
    %1131 = vmatprep.mubr.f32.mxu0 0.0
    %1132 = vmatmul.mubr.f32.gmra.mrb[0].mxu0 %v1065
    %v1133 = vpop.f32.mrb[0].mxu0
    %v1134 = vadd.f32 0.0, %v1133
    %v1135 = vpop.f32.mrb[0].mxu0
    %1136 = vdwg.mxu0
    %1137 = vrot.lane.b32.xlu0 %v139, 116
    %v1138 = vpop.permute.xlu0 %1137
    %1139 = vrot.lane.b32.xlu0 %v139, 84
    %v1140 = vpop.permute.xlu0 %1139
    %v1141 = vsel %vm150, %v1138, 0
    %v1143 = vsel %vm150, %v1140, 0
    %1145 = vmatprep.subr.mxu0 0.0
    %1146 = vmatpush1.xpose.msra.mxu0 %v1143
    %1147 = vmatprep.subr.mxu0 0.0
    %1148 = vmatpush1.xpose.msra.mxu0 0.0
    %1149 = vmatprep.subr.mxu0 0.0
    %1150 = vmatpush1.xpose.msra.mxu0 0.0
    %1151 = vmatprep.subr.mxu0 0.0
    %1152 = vmatpush1.xpose.msra.mxu0 0.0
    %1153 = vmatprep.subr.mxu0 0.0
    %1154 = vmatpush1.xpose.msra.mxu0 0.0
    %1155 = vmatprep.subr.mxu0 0.0
    %1156 = vmatpush1.xpose.msra.mxu0 0.0
    %1157 = vmatprep.subr.mxu0 0.0
    %1158 = vmatpush1.xpose.msra.mxu0 0.0
    %1159 = vmatprep.subr.mxu0 0.0
    %1160 = vmatpush1.xpose.msra.mxu0 0.0
    %1161 = vmatprep.subr.mxu0 0.0
    %1162 = vmatpush1.xpose.msra.mxu0 0.0
    %1163 = vmatprep.subr.mxu0 0.0
    %1164 = vmatpush1.xpose.msra.mxu0 0.0
    %1165 = vmatprep.subr.mxu0 0.0
    %1166 = vmatpush1.xpose.msra.mxu0 0.0
    %1167 = vmatprep.subr.mxu0 0.0
    %1168 = vmatpush1.xpose.msra.mxu0 0.0
    %1169 = vmatprep.subr.mxu0 0.0
    %1170 = vmatpush1.xpose.msra.mxu0 0.0
    %1171 = vmatprep.subr.mxu0 0.0
    %1172 = vmatpush1.xpose.msra.mxu0 0.0
    %1173 = vmatprep.subr.mxu0 0.0
    %1174 = vmatpush1.xpose.msra.mxu0 0.0
    %1175 = vmatprep.subr.mxu0 0.0
    %1176 = vmatpush1.xpose.msra.mxu0 0.0
    %1177 = vmatprep.subr.mxu0 0.0
    %1178 = vmatpush1.xpose.msra.mxu0 0.0
    %1179 = vmatprep.subr.mxu0 0.0
    %1180 = vmatpush1.xpose.msra.mxu0 0.0
    %1181 = vmatprep.subr.mxu0 0.0
    %1182 = vmatpush1.xpose.msra.mxu0 0.0
    %1183 = vmatprep.subr.mxu0 0.0
    %1184 = vmatpush1.xpose.msra.mxu0 0.0
    %1185 = vmatprep.subr.mxu0 0.0
    %1186 = vmatpush1.xpose.msra.mxu0 0.0
    %1187 = vmatprep.subr.mxu0 0.0
    %1188 = vmatpush1.xpose.msra.mxu0 0.0
    %1189 = vmatprep.subr.mxu0 0.0
    %1190 = vmatpush1.xpose.msra.mxu0 0.0
    %1191 = vmatprep.subr.mxu0 0.0
    %1192 = vmatpush1.xpose.msra.mxu0 0.0
    %1193 = vmatprep.subr.mxu0 0.0
    %1194 = vmatpush1.xpose.msra.mxu0 0.0
    %1195 = vmatprep.subr.mxu0 0.0
    %1196 = vmatpush1.xpose.msra.mxu0 0.0
    %1197 = vmatprep.subr.mxu0 0.0
    %1198 = vmatpush1.xpose.msra.mxu0 0.0
    %1199 = vmatprep.subr.mxu0 0.0
    %1200 = vmatpush1.xpose.msra.mxu0 0.0
    %1201 = vmatprep.subr.mxu0 0.0
    %1202 = vmatpush1.xpose.msra.mxu0 0.0
    %1203 = vmatprep.subr.mxu0 0.0
    %1204 = vmatpush1.xpose.msra.mxu0 0.0
    %1205 = vmatprep.subr.mxu0 0.0
    %1206 = vmatpush1.xpose.msra.mxu0 0.0
    %1207 = vmatprep.subr.mxu0 0.0
    %1208 = vmatpush1.xpose.msra.mxu0 0.0
    %1209 = vmatprep.mubr.f32.mxu0 0.0
    %1210 = vmatmul.mubr.f32.gmra.mrb[0].mxu0 %v1141
    %v1211 = vpop.f32.mrb[0].mxu0
    %v1212 = vadd.f32 0.0, %v1211
    %v1213 = vpop.f32.mrb[0].mxu0
    %1214 = vdwg.mxu0
    %1215 = vrot.lane.b32.xlu0 %v144, 116
    %v1216 = vpop.permute.xlu0 %1215
    %1217 = vrot.lane.b32.xlu0 %v144, 84
    %v1218 = vpop.permute.xlu0 %1217
    %v1219 = vsel %vm150, %v1216, 0
    %v1221 = vsel %vm150, %v1218, 0
    %1223 = vmatprep.subr.mxu0 0.0
    %1224 = vmatpush1.xpose.msra.mxu0 %v1221
    %1225 = vmatprep.subr.mxu0 0.0
    %1226 = vmatpush1.xpose.msra.mxu0 0.0
    %1227 = vmatprep.subr.mxu0 0.0
    %1228 = vmatpush1.xpose.msra.mxu0 0.0
    %1229 = vmatprep.subr.mxu0 0.0
    %1230 = vmatpush1.xpose.msra.mxu0 0.0
    %1231 = vmatprep.subr.mxu0 0.0
    %1232 = vmatpush1.xpose.msra.mxu0 0.0
    %1233 = vmatprep.subr.mxu0 0.0
    %1234 = vmatpush1.xpose.msra.mxu0 0.0
    %1235 = vmatprep.subr.mxu0 0.0
    %1236 = vmatpush1.xpose.msra.mxu0 0.0
    %1237 = vmatprep.subr.mxu0 0.0
    %1238 = vmatpush1.xpose.msra.mxu0 0.0
    %1239 = vmatprep.subr.mxu0 0.0
    %1240 = vmatpush1.xpose.msra.mxu0 0.0
    %1241 = vmatprep.subr.mxu0 0.0
    %1242 = vmatpush1.xpose.msra.mxu0 0.0
    %1243 = vmatprep.subr.mxu0 0.0
    %1244 = vmatpush1.xpose.msra.mxu0 0.0
    %1245 = vmatprep.subr.mxu0 0.0
    %1246 = vmatpush1.xpose.msra.mxu0 0.0
    %1247 = vmatprep.subr.mxu0 0.0
    %1248 = vmatpush1.xpose.msra.mxu0 0.0
    %1249 = vmatprep.subr.mxu0 0.0
    %1250 = vmatpush1.xpose.msra.mxu0 0.0
    %1251 = vmatprep.subr.mxu0 0.0
    %1252 = vmatpush1.xpose.msra.mxu0 0.0
    %1253 = vmatprep.subr.mxu0 0.0
    %1254 = vmatpush1.xpose.msra.mxu0 0.0
    %1255 = vmatprep.subr.mxu0 0.0
    %1256 = vmatpush1.xpose.msra.mxu0 0.0
    %1257 = vmatprep.subr.mxu0 0.0
    %1258 = vmatpush1.xpose.msra.mxu0 0.0
    %1259 = vmatprep.subr.mxu0 0.0
    %1260 = vmatpush1.xpose.msra.mxu0 0.0
    %1261 = vmatprep.subr.mxu0 0.0
    %1262 = vmatpush1.xpose.msra.mxu0 0.0
    %1263 = vmatprep.subr.mxu0 0.0
    %1264 = vmatpush1.xpose.msra.mxu0 0.0
    %1265 = vmatprep.subr.mxu0 0.0
    %1266 = vmatpush1.xpose.msra.mxu0 0.0
    %1267 = vmatprep.subr.mxu0 0.0
    %1268 = vmatpush1.xpose.msra.mxu0 0.0
    %1269 = vmatprep.subr.mxu0 0.0
    %1270 = vmatpush1.xpose.msra.mxu0 0.0
    %1271 = vmatprep.subr.mxu0 0.0
    %1272 = vmatpush1.xpose.msra.mxu0 0.0
    %1273 = vmatprep.subr.mxu0 0.0
    %1274 = vmatpush1.xpose.msra.mxu0 0.0
    %1275 = vmatprep.subr.mxu0 0.0
    %1276 = vmatpush1.xpose.msra.mxu0 0.0
    %1277 = vmatprep.subr.mxu0 0.0
    %1278 = vmatpush1.xpose.msra.mxu0 0.0
    %1279 = vmatprep.subr.mxu0 0.0
    %1280 = vmatpush1.xpose.msra.mxu0 0.0
    %1281 = vmatprep.subr.mxu0 0.0
    %1282 = vmatpush1.xpose.msra.mxu0 0.0
    %1283 = vmatprep.subr.mxu0 0.0
    %1284 = vmatpush1.xpose.msra.mxu0 0.0
    %1285 = vmatprep.subr.mxu0 0.0
    %1286 = vmatpush1.xpose.msra.mxu0 0.0
    %1287 = vmatprep.mubr.f32.mxu0 0.0
    %1288 = vmatmul.mubr.f32.gmra.mrb[0].mxu0 %v1219
    %v1289 = vpop.f32.mrb[0].mxu0
    %v1290 = vadd.f32 0.0, %v1289
    %v1291 = vpop.f32.mrb[0].mxu0
    %1292 = vdwg.mxu0
    %v1293 = vsel %vm302, %v1212, -inf
    %1294 = vmax.xlane.f32.xlu0 %v1293
    %v1295 = vpop.xlane.xlu0 %1294
    %v1296 = vsel %vm302, %v1290, -inf
    %1297 = vmax.xlane.f32.xlu0 %v1296
    %v1298 = vpop.xlane.xlu0 %1297
    %v1299 = vsub.f32 %v1212, %v1295
    %v1300 = vsub.f32 %v1290, %v1298
    %v1301 = vmul.f32 %v1299, 1.442695
    %v1302 = vpow.pop %v1301
    %v1303 = vmul.f32 %v1300, 1.442695
    %v1304 = vpow.pop %v1303
    %v1305 = vsel %vm302, %v1302, 0.0
    %1306 = vadd.xlane.f32.xlu0 %v1305
    %v1307 = vpop.xlane.xlu0 %1306
    %v1308 = vsel %vm302, %v1304, 0.0
    %1309 = vadd.xlane.f32.xlu0 %v1308
    %v1310 = vpop.xlane.xlu0 %1309
    %v1311 = vrcp.pop %v1307
    %v1312 = vrcp.pop %v1310
    %v1313 = vmul.f32 %v1302, %v1311
    %v1314 = vmul.f32 %v1304, %v1312
    %1315 = vrot.lane.b32.xlu0 %v139, 52
    %v1316 = vpop.permute.xlu0 %1315
    %v1319 = vsel %vm302, %v1313, 0
    %1321 = vmatprep.subr.mxu0 0.0
    %1322 = vmatpush1.msra.mxu0 %v1316
    %1323 = vmatprep.subr.mxu0 0.0
    %1324 = vmatpush1.msra.mxu0 0.0
    %1325 = vmatprep.subr.mxu0 0.0
    %1326 = vmatpush1.msra.mxu0 0.0
    %1327 = vmatprep.subr.mxu0 0.0
    %1328 = vmatpush1.msra.mxu0 0.0
    %1329 = vmatprep.subr.mxu0 0.0
    %1330 = vmatpush1.msra.mxu0 0.0
    %1331 = vmatprep.subr.mxu0 0.0
    %1332 = vmatpush1.msra.mxu0 0.0
    %1333 = vmatprep.subr.mxu0 0.0
    %1334 = vmatpush1.msra.mxu0 0.0
    %1335 = vmatprep.subr.mxu0 0.0
    %1336 = vmatpush1.msra.mxu0 0.0
    %1337 = vmatprep.subr.mxu0 0.0
    %1338 = vmatpush1.msra.mxu0 0.0
    %1339 = vmatprep.subr.mxu0 0.0
    %1340 = vmatpush1.msra.mxu0 0.0
    %1341 = vmatprep.subr.mxu0 0.0
    %1342 = vmatpush1.msra.mxu0 0.0
    %1343 = vmatprep.subr.mxu0 0.0
    %1344 = vmatpush1.msra.mxu0 0.0
    %1345 = vmatprep.subr.mxu0 0.0
    %1346 = vmatpush1.msra.mxu0 0.0
    %1347 = vmatprep.subr.mxu0 0.0
    %1348 = vmatpush1.msra.mxu0 0.0
    %1349 = vmatprep.subr.mxu0 0.0
    %1350 = vmatpush1.msra.mxu0 0.0
    %1351 = vmatprep.subr.mxu0 0.0
    %1352 = vmatpush1.msra.mxu0 0.0
    %1353 = vmatprep.subr.mxu0 0.0
    %1354 = vmatpush1.msra.mxu0 0.0
    %1355 = vmatprep.subr.mxu0 0.0
    %1356 = vmatpush1.msra.mxu0 0.0
    %1357 = vmatprep.subr.mxu0 0.0
    %1358 = vmatpush1.msra.mxu0 0.0
    %1359 = vmatprep.subr.mxu0 0.0
    %1360 = vmatpush1.msra.mxu0 0.0
    %1361 = vmatprep.subr.mxu0 0.0
    %1362 = vmatpush1.msra.mxu0 0.0
    %1363 = vmatprep.subr.mxu0 0.0
    %1364 = vmatpush1.msra.mxu0 0.0
    %1365 = vmatprep.subr.mxu0 0.0
    %1366 = vmatpush1.msra.mxu0 0.0
    %1367 = vmatprep.subr.mxu0 0.0
    %1368 = vmatpush1.msra.mxu0 0.0
    %1369 = vmatprep.subr.mxu0 0.0
    %1370 = vmatpush1.msra.mxu0 0.0
    %1371 = vmatprep.subr.mxu0 0.0
    %1372 = vmatpush1.msra.mxu0 0.0
    %1373 = vmatprep.subr.mxu0 0.0
    %1374 = vmatpush1.msra.mxu0 0.0
    %1375 = vmatprep.subr.mxu0 0.0
    %1376 = vmatpush1.msra.mxu0 0.0
    %1377 = vmatprep.subr.mxu0 0.0
    %1378 = vmatpush1.msra.mxu0 0.0
    %1379 = vmatprep.subr.mxu0 0.0
    %1380 = vmatpush1.msra.mxu0 0.0
    %1381 = vmatprep.subr.mxu0 0.0
    %1382 = vmatpush1.msra.mxu0 0.0
    %1383 = vmatprep.subr.mxu0 0.0
    %1384 = vmatpush1.msra.mxu0 0.0
    %1385 = vmatprep.mubr.f32.mxu0 0.0
    %1386 = vmatmul.mubr.f32.gmra.mrb[0].mxu0 %v1319
    %v1387 = vpop.f32.mrb[0].mxu0
    %v1388 = vadd.f32 0.0, %v1387
    %v1389 = vpop.f32.mrb[0].mxu0
    %1390 = vdwg.mxu0
    %1391 = vrot.lane.b32.xlu0 %v144, 52
    %v1392 = vpop.permute.xlu0 %1391
    %v1395 = vsel %vm302, %v1314, 0
    %1397 = vmatprep.subr.mxu0 0.0
    %1398 = vmatpush1.msra.mxu0 %v1392
    %1399 = vmatprep.subr.mxu0 0.0
    %1400 = vmatpush1.msra.mxu0 0.0
    %1401 = vmatprep.subr.mxu0 0.0
    %1402 = vmatpush1.msra.mxu0 0.0
    %1403 = vmatprep.subr.mxu0 0.0
    %1404 = vmatpush1.msra.mxu0 0.0
    %1405 = vmatprep.subr.mxu0 0.0
    %1406 = vmatpush1.msra.mxu0 0.0
    %1407 = vmatprep.subr.mxu0 0.0
    %1408 = vmatpush1.msra.mxu0 0.0
    %1409 = vmatprep.subr.mxu0 0.0
    %1410 = vmatpush1.msra.mxu0 0.0
    %1411 = vmatprep.subr.mxu0 0.0
    %1412 = vmatpush1.msra.mxu0 0.0
    %1413 = vmatprep.subr.mxu0 0.0
    %1414 = vmatpush1.msra.mxu0 0.0
    %1415 = vmatprep.subr.mxu0 0.0
    %1416 = vmatpush1.msra.mxu0 0.0
    %1417 = vmatprep.subr.mxu0 0.0
    %1418 = vmatpush1.msra.mxu0 0.0
    %1419 = vmatprep.subr.mxu0 0.0
    %1420 = vmatpush1.msra.mxu0 0.0
    %1421 = vmatprep.subr.mxu0 0.0
    %1422 = vmatpush1.msra.mxu0 0.0
    %1423 = vmatprep.subr.mxu0 0.0
    %1424 = vmatpush1.msra.mxu0 0.0
    %1425 = vmatprep.subr.mxu0 0.0
    %1426 = vmatpush1.msra.mxu0 0.0
    %1427 = vmatprep.subr.mxu0 0.0
    %1428 = vmatpush1.msra.mxu0 0.0
    %1429 = vmatprep.subr.mxu0 0.0
    %1430 = vmatpush1.msra.mxu0 0.0
    %1431 = vmatprep.subr.mxu0 0.0
    %1432 = vmatpush1.msra.mxu0 0.0
    %1433 = vmatprep.subr.mxu0 0.0
    %1434 = vmatpush1.msra.mxu0 0.0
    %1435 = vmatprep.subr.mxu0 0.0
    %1436 = vmatpush1.msra.mxu0 0.0
    %1437 = vmatprep.subr.mxu0 0.0
    %1438 = vmatpush1.msra.mxu0 0.0
    %1439 = vmatprep.subr.mxu0 0.0
    %1440 = vmatpush1.msra.mxu0 0.0
    %1441 = vmatprep.subr.mxu0 0.0
    %1442 = vmatpush1.msra.mxu0 0.0
    %1443 = vmatprep.subr.mxu0 0.0
    %1444 = vmatpush1.msra.mxu0 0.0
    %1445 = vmatprep.subr.mxu0 0.0
    %1446 = vmatpush1.msra.mxu0 0.0
    %1447 = vmatprep.subr.mxu0 0.0
    %1448 = vmatpush1.msra.mxu0 0.0
    %1449 = vmatprep.subr.mxu0 0.0
    %1450 = vmatpush1.msra.mxu0 0.0
    %1451 = vmatprep.subr.mxu0 0.0
    %1452 = vmatpush1.msra.mxu0 0.0
    %1453 = vmatprep.subr.mxu0 0.0
    %1454 = vmatpush1.msra.mxu0 0.0
    %1455 = vmatprep.subr.mxu0 0.0
    %1456 = vmatpush1.msra.mxu0 0.0
    %1457 = vmatprep.subr.mxu0 0.0
    %1458 = vmatpush1.msra.mxu0 0.0
    %1459 = vmatprep.subr.mxu0 0.0
    %1460 = vmatpush1.msra.mxu0 0.0
    %1461 = vmatprep.mubr.f32.mxu0 0.0
    %1462 = vmatmul.mubr.f32.gmra.mrb[0].mxu0 %v1395
    %v1463 = vpop.f32.mrb[0].mxu0
    %v1464 = vadd.f32 0.0, %v1463
    %v1465 = vpop.f32.mrb[0].mxu0
    %1466 = vdwg.mxu0
    %1467 = vrot.lane.b32.xlu0 %v139, 112
    %v1468 = vpop.permute.xlu0 %1467
    %1469 = vrot.lane.b32.xlu0 %v139, 80
    %v1470 = vpop.permute.xlu0 %1469
    %v1471 = vsel %vm150, %v1468, 0
    %v1473 = vsel %vm150, %v1470, 0
    %1475 = vmatprep.subr.mxu0 0.0
    %1476 = vmatpush1.xpose.msra.mxu0 %v1473
    %1477 = vmatprep.subr.mxu0 0.0
    %1478 = vmatpush1.xpose.msra.mxu0 0.0
    %1479 = vmatprep.subr.mxu0 0.0
    %1480 = vmatpush1.xpose.msra.mxu0 0.0
    %1481 = vmatprep.subr.mxu0 0.0
    %1482 = vmatpush1.xpose.msra.mxu0 0.0
    %1483 = vmatprep.subr.mxu0 0.0
    %1484 = vmatpush1.xpose.msra.mxu0 0.0
    %1485 = vmatprep.subr.mxu0 0.0
    %1486 = vmatpush1.xpose.msra.mxu0 0.0
    %1487 = vmatprep.subr.mxu0 0.0
    %1488 = vmatpush1.xpose.msra.mxu0 0.0
    %1489 = vmatprep.subr.mxu0 0.0
    %1490 = vmatpush1.xpose.msra.mxu0 0.0
    %1491 = vmatprep.subr.mxu0 0.0
    %1492 = vmatpush1.xpose.msra.mxu0 0.0
    %1493 = vmatprep.subr.mxu0 0.0
    %1494 = vmatpush1.xpose.msra.mxu0 0.0
    %1495 = vmatprep.subr.mxu0 0.0
    %1496 = vmatpush1.xpose.msra.mxu0 0.0
    %1497 = vmatprep.subr.mxu0 0.0
    %1498 = vmatpush1.xpose.msra.mxu0 0.0
    %1499 = vmatprep.subr.mxu0 0.0
    %1500 = vmatpush1.xpose.msra.mxu0 0.0
    %1501 = vmatprep.subr.mxu0 0.0
    %1502 = vmatpush1.xpose.msra.mxu0 0.0
    %1503 = vmatprep.subr.mxu0 0.0
    %1504 = vmatpush1.xpose.msra.mxu0 0.0
    %1505 = vmatprep.subr.mxu0 0.0
    %1506 = vmatpush1.xpose.msra.mxu0 0.0
    %1507 = vmatprep.subr.mxu0 0.0
    %1508 = vmatpush1.xpose.msra.mxu0 0.0
    %1509 = vmatprep.subr.mxu0 0.0
    %1510 = vmatpush1.xpose.msra.mxu0 0.0
    %1511 = vmatprep.subr.mxu0 0.0
    %1512 = vmatpush1.xpose.msra.mxu0 0.0
    %1513 = vmatprep.subr.mxu0 0.0
    %1514 = vmatpush1.xpose.msra.mxu0 0.0
    %1515 = vmatprep.subr.mxu0 0.0
    %1516 = vmatpush1.xpose.msra.mxu0 0.0
    %1517 = vmatprep.subr.mxu0 0.0
    %1518 = vmatpush1.xpose.msra.mxu0 0.0
    %1519 = vmatprep.subr.mxu0 0.0
    %1520 = vmatpush1.xpose.msra.mxu0 0.0
    %1521 = vmatprep.subr.mxu0 0.0
    %1522 = vmatpush1.xpose.msra.mxu0 0.0
    %1523 = vmatprep.subr.mxu0 0.0
    %1524 = vmatpush1.xpose.msra.mxu0 0.0
    %1525 = vmatprep.subr.mxu0 0.0
    %1526 = vmatpush1.xpose.msra.mxu0 0.0
    %1527 = vmatprep.subr.mxu0 0.0
    %1528 = vmatpush1.xpose.msra.mxu0 0.0
    %1529 = vmatprep.subr.mxu0 0.0
    %1530 = vmatpush1.xpose.msra.mxu0 0.0
    %1531 = vmatprep.subr.mxu0 0.0
    %1532 = vmatpush1.xpose.msra.mxu0 0.0
    %1533 = vmatprep.subr.mxu0 0.0
    %1534 = vmatpush1.xpose.msra.mxu0 0.0
    %1535 = vmatprep.subr.mxu0 0.0
    %1536 = vmatpush1.xpose.msra.mxu0 0.0
    %1537 = vmatprep.subr.mxu0 0.0
    %1538 = vmatpush1.xpose.msra.mxu0 0.0
    %1539 = vmatprep.mubr.f32.mxu0 0.0
    %1540 = vmatmul.mubr.f32.gmra.mrb[0].mxu0 %v1471
    %v1541 = vpop.f32.mrb[0].mxu0
    %v1542 = vadd.f32 0.0, %v1541
    %v1543 = vpop.f32.mrb[0].mxu0
    %1544 = vdwg.mxu0
    %1545 = vrot.lane.b32.xlu0 %v144, 112
    %v1546 = vpop.permute.xlu0 %1545
    %1547 = vrot.lane.b32.xlu0 %v144, 80
    %v1548 = vpop.permute.xlu0 %1547
    %v1549 = vsel %vm150, %v1546, 0
    %v1551 = vsel %vm150, %v1548, 0
    %1553 = vmatprep.subr.mxu0 0.0
    %1554 = vmatpush1.xpose.msra.mxu0 %v1551
    %1555 = vmatprep.subr.mxu0 0.0
    %1556 = vmatpush1.xpose.msra.mxu0 0.0
    %1557 = vmatprep.subr.mxu0 0.0
    %1558 = vmatpush1.xpose.msra.mxu0 0.0
    %1559 = vmatprep.subr.mxu0 0.0
    %1560 = vmatpush1.xpose.msra.mxu0 0.0
    %1561 = vmatprep.subr.mxu0 0.0
    %1562 = vmatpush1.xpose.msra.mxu0 0.0
    %1563 = vmatprep.subr.mxu0 0.0
    %1564 = vmatpush1.xpose.msra.mxu0 0.0
    %1565 = vmatprep.subr.mxu0 0.0
    %1566 = vmatpush1.xpose.msra.mxu0 0.0
    %1567 = vmatprep.subr.mxu0 0.0
    %1568 = vmatpush1.xpose.msra.mxu0 0.0
    %1569 = vmatprep.subr.mxu0 0.0
    %1570 = vmatpush1.xpose.msra.mxu0 0.0
    %1571 = vmatprep.subr.mxu0 0.0
    %1572 = vmatpush1.xpose.msra.mxu0 0.0
    %1573 = vmatprep.subr.mxu0 0.0
    %1574 = vmatpush1.xpose.msra.mxu0 0.0
    %1575 = vmatprep.subr.mxu0 0.0
    %1576 = vmatpush1.xpose.msra.mxu0 0.0
    %1577 = vmatprep.subr.mxu0 0.0
    %1578 = vmatpush1.xpose.msra.mxu0 0.0
    %1579 = vmatprep.subr.mxu0 0.0
    %1580 = vmatpush1.xpose.msra.mxu0 0.0
    %1581 = vmatprep.subr.mxu0 0.0
    %1582 = vmatpush1.xpose.msra.mxu0 0.0
    %1583 = vmatprep.subr.mxu0 0.0
    %1584 = vmatpush1.xpose.msra.mxu0 0.0
    %1585 = vmatprep.subr.mxu0 0.0
    %1586 = vmatpush1.xpose.msra.mxu0 0.0
    %1587 = vmatprep.subr.mxu0 0.0
    %1588 = vmatpush1.xpose.msra.mxu0 0.0
    %1589 = vmatprep.subr.mxu0 0.0
    %1590 = vmatpush1.xpose.msra.mxu0 0.0
    %1591 = vmatprep.subr.mxu0 0.0
    %1592 = vmatpush1.xpose.msra.mxu0 0.0
    %1593 = vmatprep.subr.mxu0 0.0
    %1594 = vmatpush1.xpose.msra.mxu0 0.0
    %1595 = vmatprep.subr.mxu0 0.0
    %1596 = vmatpush1.xpose.msra.mxu0 0.0
    %1597 = vmatprep.subr.mxu0 0.0
    %1598 = vmatpush1.xpose.msra.mxu0 0.0
    %1599 = vmatprep.subr.mxu0 0.0
    %1600 = vmatpush1.xpose.msra.mxu0 0.0
    %1601 = vmatprep.subr.mxu0 0.0
    %1602 = vmatpush1.xpose.msra.mxu0 0.0
    %1603 = vmatprep.subr.mxu0 0.0
    %1604 = vmatpush1.xpose.msra.mxu0 0.0
    %1605 = vmatprep.subr.mxu0 0.0
    %1606 = vmatpush1.xpose.msra.mxu0 0.0
    %1607 = vmatprep.subr.mxu0 0.0
    %1608 = vmatpush1.xpose.msra.mxu0 0.0
    %1609 = vmatprep.subr.mxu0 0.0
    %1610 = vmatpush1.xpose.msra.mxu0 0.0
    %1611 = vmatprep.subr.mxu0 0.0
    %1612 = vmatpush1.xpose.msra.mxu0 0.0
    %1613 = vmatprep.subr.mxu0 0.0
    %1614 = vmatpush1.xpose.msra.mxu0 0.0
    %1615 = vmatprep.subr.mxu0 0.0
    %1616 = vmatpush1.xpose.msra.mxu0 0.0
    %1617 = vmatprep.mubr.f32.mxu0 0.0
    %1618 = vmatmul.mubr.f32.gmra.mrb[0].mxu0 %v1549
    %v1619 = vpop.f32.mrb[0].mxu0
    %v1620 = vadd.f32 0.0, %v1619
    %v1621 = vpop.f32.mrb[0].mxu0
    %1622 = vdwg.mxu0
    %v1623 = vsel %vm302, %v1542, -inf
    %1624 = vmax.xlane.f32.xlu0 %v1623
    %v1625 = vpop.xlane.xlu0 %1624
    %v1626 = vsel %vm302, %v1620, -inf
    %1627 = vmax.xlane.f32.xlu0 %v1626
    %v1628 = vpop.xlane.xlu0 %1627
    %v1629 = vsub.f32 %v1542, %v1625
    %v1630 = vsub.f32 %v1620, %v1628
    %v1631 = vmul.f32 %v1629, 1.442695
    %v1632 = vpow.pop %v1631
    %v1633 = vmul.f32 %v1630, 1.442695
    %v1634 = vpow.pop %v1633
    %v1635 = vsel %vm302, %v1632, 0.0
    %1636 = vadd.xlane.f32.xlu0 %v1635
    %v1637 = vpop.xlane.xlu0 %1636
    %v1638 = vsel %vm302, %v1634, 0.0
    %1639 = vadd.xlane.f32.xlu0 %v1638
    %v1640 = vpop.xlane.xlu0 %1639
    %v1641 = vrcp.pop %v1637
    %v1642 = vrcp.pop %v1640
    %v1643 = vmul.f32 %v1632, %v1641
    %v1644 = vmul.f32 %v1634, %v1642
    %1645 = vrot.lane.b32.xlu0 %v139, 48
    %v1646 = vpop.permute.xlu0 %1645
    %v1649 = vsel %vm302, %v1643, 0
    %1651 = vmatprep.subr.mxu0 0.0
    %1652 = vmatpush1.msra.mxu0 %v1646
    %1653 = vmatprep.subr.mxu0 0.0
    %1654 = vmatpush1.msra.mxu0 0.0
    %1655 = vmatprep.subr.mxu0 0.0
    %1656 = vmatpush1.msra.mxu0 0.0
    %1657 = vmatprep.subr.mxu0 0.0
    %1658 = vmatpush1.msra.mxu0 0.0
    %1659 = vmatprep.subr.mxu0 0.0
    %1660 = vmatpush1.msra.mxu0 0.0
    %1661 = vmatprep.subr.mxu0 0.0
    %1662 = vmatpush1.msra.mxu0 0.0
    %1663 = vmatprep.subr.mxu0 0.0
    %1664 = vmatpush1.msra.mxu0 0.0
    %1665 = vmatprep.subr.mxu0 0.0
    %1666 = vmatpush1.msra.mxu0 0.0
    %1667 = vmatprep.subr.mxu0 0.0
    %1668 = vmatpush1.msra.mxu0 0.0
    %1669 = vmatprep.subr.mxu0 0.0
    %1670 = vmatpush1.msra.mxu0 0.0
    %1671 = vmatprep.subr.mxu0 0.0
    %1672 = vmatpush1.msra.mxu0 0.0
    %1673 = vmatprep.subr.mxu0 0.0
    %1674 = vmatpush1.msra.mxu0 0.0
    %1675 = vmatprep.subr.mxu0 0.0
    %1676 = vmatpush1.msra.mxu0 0.0
    %1677 = vmatprep.subr.mxu0 0.0
    %1678 = vmatpush1.msra.mxu0 0.0
    %1679 = vmatprep.subr.mxu0 0.0
    %1680 = vmatpush1.msra.mxu0 0.0
    %1681 = vmatprep.subr.mxu0 0.0
    %1682 = vmatpush1.msra.mxu0 0.0
    %1683 = vmatprep.subr.mxu0 0.0
    %1684 = vmatpush1.msra.mxu0 0.0
    %1685 = vmatprep.subr.mxu0 0.0
    %1686 = vmatpush1.msra.mxu0 0.0
    %1687 = vmatprep.subr.mxu0 0.0
    %1688 = vmatpush1.msra.mxu0 0.0
    %1689 = vmatprep.subr.mxu0 0.0
    %1690 = vmatpush1.msra.mxu0 0.0
    %1691 = vmatprep.subr.mxu0 0.0
    %1692 = vmatpush1.msra.mxu0 0.0
    %1693 = vmatprep.subr.mxu0 0.0
    %1694 = vmatpush1.msra.mxu0 0.0
    %1695 = vmatprep.subr.mxu0 0.0
    %1696 = vmatpush1.msra.mxu0 0.0
    %1697 = vmatprep.subr.mxu0 0.0
    %1698 = vmatpush1.msra.mxu0 0.0
    %1699 = vmatprep.subr.mxu0 0.0
    %1700 = vmatpush1.msra.mxu0 0.0
    %1701 = vmatprep.subr.mxu0 0.0
    %1702 = vmatpush1.msra.mxu0 0.0
    %1703 = vmatprep.subr.mxu0 0.0
    %1704 = vmatpush1.msra.mxu0 0.0
    %1705 = vmatprep.subr.mxu0 0.0
    %1706 = vmatpush1.msra.mxu0 0.0
    %1707 = vmatprep.subr.mxu0 0.0
    %1708 = vmatpush1.msra.mxu0 0.0
    %1709 = vmatprep.subr.mxu0 0.0
    %1710 = vmatpush1.msra.mxu0 0.0
    %1711 = vmatprep.subr.mxu0 0.0
    %1712 = vmatpush1.msra.mxu0 0.0
    %1713 = vmatprep.subr.mxu0 0.0
    %1714 = vmatpush1.msra.mxu0 0.0
    %1715 = vmatprep.mubr.f32.mxu0 0.0
    %1716 = vmatmul.mubr.f32.gmra.mrb[0].mxu0 %v1649
    %v1717 = vpop.f32.mrb[0].mxu0
    %v1718 = vadd.f32 0.0, %v1717
    %v1719 = vpop.f32.mrb[0].mxu0
    %1720 = vdwg.mxu0
    %1721 = vrot.lane.b32.xlu0 %v144, 48
    %v1722 = vpop.permute.xlu0 %1721
    %v1725 = vsel %vm302, %v1644, 0
    %1727 = vmatprep.subr.mxu0 0.0
    %1728 = vmatpush1.msra.mxu0 %v1722
    %1729 = vmatprep.subr.mxu0 0.0
    %1730 = vmatpush1.msra.mxu0 0.0
    %1731 = vmatprep.subr.mxu0 0.0
    %1732 = vmatpush1.msra.mxu0 0.0
    %1733 = vmatprep.subr.mxu0 0.0
    %1734 = vmatpush1.msra.mxu0 0.0
    %1735 = vmatprep.subr.mxu0 0.0
    %1736 = vmatpush1.msra.mxu0 0.0
    %1737 = vmatprep.subr.mxu0 0.0
    %1738 = vmatpush1.msra.mxu0 0.0
    %1739 = vmatprep.subr.mxu0 0.0
    %1740 = vmatpush1.msra.mxu0 0.0
    %1741 = vmatprep.subr.mxu0 0.0
    %1742 = vmatpush1.msra.mxu0 0.0
    %1743 = vmatprep.subr.mxu0 0.0
    %1744 = vmatpush1.msra.mxu0 0.0
    %1745 = vmatprep.subr.mxu0 0.0
    %1746 = vmatpush1.msra.mxu0 0.0
    %1747 = vmatprep.subr.mxu0 0.0
    %1748 = vmatpush1.msra.mxu0 0.0
    %1749 = vmatprep.subr.mxu0 0.0
    %1750 = vmatpush1.msra.mxu0 0.0
    %1751 = vmatprep.subr.mxu0 0.0
    %1752 = vmatpush1.msra.mxu0 0.0
    %1753 = vmatprep.subr.mxu0 0.0
    %1754 = vmatpush1.msra.mxu0 0.0
    %1755 = vmatprep.subr.mxu0 0.0
    %1756 = vmatpush1.msra.mxu0 0.0
    %1757 = vmatprep.subr.mxu0 0.0
    %1758 = vmatpush1.msra.mxu0 0.0
    %1759 = vmatprep.subr.mxu0 0.0
    %1760 = vmatpush1.msra.mxu0 0.0
    %1761 = vmatprep.subr.mxu0 0.0
    %1762 = vmatpush1.msra.mxu0 0.0
    %1763 = vmatprep.subr.mxu0 0.0
    %1764 = vmatpush1.msra.mxu0 0.0
    %1765 = vmatprep.subr.mxu0 0.0
    %1766 = vmatpush1.msra.mxu0 0.0
    %1767 = vmatprep.subr.mxu0 0.0
    %1768 = vmatpush1.msra.mxu0 0.0
    %1769 = vmatprep.subr.mxu0 0.0
    %1770 = vmatpush1.msra.mxu0 0.0
    %1771 = vmatprep.subr.mxu0 0.0
    %1772 = vmatpush1.msra.mxu0 0.0
    %1773 = vmatprep.subr.mxu0 0.0
    %1774 = vmatpush1.msra.mxu0 0.0
    %1775 = vmatprep.subr.mxu0 0.0
    %1776 = vmatpush1.msra.mxu0 0.0
    %1777 = vmatprep.subr.mxu0 0.0
    %1778 = vmatpush1.msra.mxu0 0.0
    %1779 = vmatprep.subr.mxu0 0.0
    %1780 = vmatpush1.msra.mxu0 0.0
    %1781 = vmatprep.subr.mxu0 0.0
    %1782 = vmatpush1.msra.mxu0 0.0
    %1783 = vmatprep.subr.mxu0 0.0
    %1784 = vmatpush1.msra.mxu0 0.0
    %1785 = vmatprep.subr.mxu0 0.0
    %1786 = vmatpush1.msra.mxu0 0.0
    %1787 = vmatprep.subr.mxu0 0.0
    %1788 = vmatpush1.msra.mxu0 0.0
    %1789 = vmatprep.subr.mxu0 0.0
    %1790 = vmatpush1.msra.mxu0 0.0
    %1791 = vmatprep.mubr.f32.mxu0 0.0
    %1792 = vmatmul.mubr.f32.gmra.mrb[0].mxu0 %v1725
    %v1793 = vpop.f32.mrb[0].mxu0
    %v1794 = vadd.f32 0.0, %v1793
    %v1795 = vpop.f32.mrb[0].mxu0
    %1796 = vdwg.mxu0
    %1797 = vrot.lane.b32.xlu0 %v139, 108
    %v1798 = vpop.permute.xlu0 %1797
    %1799 = vrot.lane.b32.xlu0 %v139, 76
    %v1800 = vpop.permute.xlu0 %1799
    %v1801 = vsel %vm150, %v1798, 0
    %v1803 = vsel %vm150, %v1800, 0
    %1805 = vmatprep.subr.mxu0 0.0
    %1806 = vmatpush1.xpose.msra.mxu0 %v1803
    %1807 = vmatprep.subr.mxu0 0.0
    %1808 = vmatpush1.xpose.msra.mxu0 0.0
    %1809 = vmatprep.subr.mxu0 0.0
    %1810 = vmatpush1.xpose.msra.mxu0 0.0
    %1811 = vmatprep.subr.mxu0 0.0
    %1812 = vmatpush1.xpose.msra.mxu0 0.0
    %1813 = vmatprep.subr.mxu0 0.0
    %1814 = vmatpush1.xpose.msra.mxu0 0.0
    %1815 = vmatprep.subr.mxu0 0.0
    %1816 = vmatpush1.xpose.msra.mxu0 0.0
    %1817 = vmatprep.subr.mxu0 0.0
    %1818 = vmatpush1.xpose.msra.mxu0 0.0
    %1819 = vmatprep.subr.mxu0 0.0
    %1820 = vmatpush1.xpose.msra.mxu0 0.0
    %1821 = vmatprep.subr.mxu0 0.0
    %1822 = vmatpush1.xpose.msra.mxu0 0.0
    %1823 = vmatprep.subr.mxu0 0.0
    %1824 = vmatpush1.xpose.msra.mxu0 0.0
    %1825 = vmatprep.subr.mxu0 0.0
    %1826 = vmatpush1.xpose.msra.mxu0 0.0
    %1827 = vmatprep.subr.mxu0 0.0
    %1828 = vmatpush1.xpose.msra.mxu0 0.0
    %1829 = vmatprep.subr.mxu0 0.0
    %1830 = vmatpush1.xpose.msra.mxu0 0.0
    %1831 = vmatprep.subr.mxu0 0.0
    %1832 = vmatpush1.xpose.msra.mxu0 0.0
    %1833 = vmatprep.subr.mxu0 0.0
    %1834 = vmatpush1.xpose.msra.mxu0 0.0
    %1835 = vmatprep.subr.mxu0 0.0
    %1836 = vmatpush1.xpose.msra.mxu0 0.0
    %1837 = vmatprep.subr.mxu0 0.0
    %1838 = vmatpush1.xpose.msra.mxu0 0.0
    %1839 = vmatprep.subr.mxu0 0.0
    %1840 = vmatpush1.xpose.msra.mxu0 0.0
    %1841 = vmatprep.subr.mxu0 0.0
    %1842 = vmatpush1.xpose.msra.mxu0 0.0
    %1843 = vmatprep.subr.mxu0 0.0
    %1844 = vmatpush1.xpose.msra.mxu0 0.0
    %1845 = vmatprep.subr.mxu0 0.0
    %1846 = vmatpush1.xpose.msra.mxu0 0.0
    %1847 = vmatprep.subr.mxu0 0.0
    %1848 = vmatpush1.xpose.msra.mxu0 0.0
    %1849 = vmatprep.subr.mxu0 0.0
    %1850 = vmatpush1.xpose.msra.mxu0 0.0
    %1851 = vmatprep.subr.mxu0 0.0
    %1852 = vmatpush1.xpose.msra.mxu0 0.0
    %1853 = vmatprep.subr.mxu0 0.0
    %1854 = vmatpush1.xpose.msra.mxu0 0.0
    %1855 = vmatprep.subr.mxu0 0.0
    %1856 = vmatpush1.xpose.msra.mxu0 0.0
    %1857 = vmatprep.subr.mxu0 0.0
    %1858 = vmatpush1.xpose.msra.mxu0 0.0
    %1859 = vmatprep.subr.mxu0 0.0
    %1860 = vmatpush1.xpose.msra.mxu0 0.0
    %1861 = vmatprep.subr.mxu0 0.0
    %1862 = vmatpush1.xpose.msra.mxu0 0.0
    %1863 = vmatprep.subr.mxu0 0.0
    %1864 = vmatpush1.xpose.msra.mxu0 0.0
    %1865 = vmatprep.subr.mxu0 0.0
    %1866 = vmatpush1.xpose.msra.mxu0 0.0
    %1867 = vmatprep.subr.mxu0 0.0
    %1868 = vmatpush1.xpose.msra.mxu0 0.0
    %1869 = vmatprep.mubr.f32.mxu0 0.0
    %1870 = vmatmul.mubr.f32.gmra.mrb[0].mxu0 %v1801
    %v1871 = vpop.f32.mrb[0].mxu0
    %v1872 = vadd.f32 0.0, %v1871
    %v1873 = vpop.f32.mrb[0].mxu0
    %1874 = vdwg.mxu0
    %1875 = vrot.lane.b32.xlu0 %v144, 108
    %v1876 = vpop.permute.xlu0 %1875
    %1877 = vrot.lane.b32.xlu0 %v144, 76
    %v1878 = vpop.permute.xlu0 %1877
    %v1879 = vsel %vm150, %v1876, 0
    %v1881 = vsel %vm150, %v1878, 0
    %1883 = vmatprep.subr.mxu0 0.0
    %1884 = vmatpush1.xpose.msra.mxu0 %v1881
    %1885 = vmatprep.subr.mxu0 0.0
    %1886 = vmatpush1.xpose.msra.mxu0 0.0
    %1887 = vmatprep.subr.mxu0 0.0
    %1888 = vmatpush1.xpose.msra.mxu0 0.0
    %1889 = vmatprep.subr.mxu0 0.0
    %1890 = vmatpush1.xpose.msra.mxu0 0.0
    %1891 = vmatprep.subr.mxu0 0.0
    %1892 = vmatpush1.xpose.msra.mxu0 0.0
    %1893 = vmatprep.subr.mxu0 0.0
    %1894 = vmatpush1.xpose.msra.mxu0 0.0
    %1895 = vmatprep.subr.mxu0 0.0
    %1896 = vmatpush1.xpose.msra.mxu0 0.0
    %1897 = vmatprep.subr.mxu0 0.0
    %1898 = vmatpush1.xpose.msra.mxu0 0.0
    %1899 = vmatprep.subr.mxu0 0.0
    %1900 = vmatpush1.xpose.msra.mxu0 0.0
    %1901 = vmatprep.subr.mxu0 0.0
    %1902 = vmatpush1.xpose.msra.mxu0 0.0
    %1903 = vmatprep.subr.mxu0 0.0
    %1904 = vmatpush1.xpose.msra.mxu0 0.0
    %1905 = vmatprep.subr.mxu0 0.0
    %1906 = vmatpush1.xpose.msra.mxu0 0.0
    %1907 = vmatprep.subr.mxu0 0.0
    %1908 = vmatpush1.xpose.msra.mxu0 0.0
    %1909 = vmatprep.subr.mxu0 0.0
    %1910 = vmatpush1.xpose.msra.mxu0 0.0
    %1911 = vmatprep.subr.mxu0 0.0
    %1912 = vmatpush1.xpose.msra.mxu0 0.0
    %1913 = vmatprep.subr.mxu0 0.0
    %1914 = vmatpush1.xpose.msra.mxu0 0.0
    %1915 = vmatprep.subr.mxu0 0.0
    %1916 = vmatpush1.xpose.msra.mxu0 0.0
    %1917 = vmatprep.subr.mxu0 0.0
    %1918 = vmatpush1.xpose.msra.mxu0 0.0
    %1919 = vmatprep.subr.mxu0 0.0
    %1920 = vmatpush1.xpose.msra.mxu0 0.0
    %1921 = vmatprep.subr.mxu0 0.0
    %1922 = vmatpush1.xpose.msra.mxu0 0.0
    %1923 = vmatprep.subr.mxu0 0.0
    %1924 = vmatpush1.xpose.msra.mxu0 0.0
    %1925 = vmatprep.subr.mxu0 0.0
    %1926 = vmatpush1.xpose.msra.mxu0 0.0
    %1927 = vmatprep.subr.mxu0 0.0
    %1928 = vmatpush1.xpose.msra.mxu0 0.0
    %1929 = vmatprep.subr.mxu0 0.0
    %1930 = vmatpush1.xpose.msra.mxu0 0.0
    %1931 = vmatprep.subr.mxu0 0.0
    %1932 = vmatpush1.xpose.msra.mxu0 0.0
    %1933 = vmatprep.subr.mxu0 0.0
    %1934 = vmatpush1.xpose.msra.mxu0 0.0
    %1935 = vmatprep.subr.mxu0 0.0
    %1936 = vmatpush1.xpose.msra.mxu0 0.0
    %1937 = vmatprep.subr.mxu0 0.0
    %1938 = vmatpush1.xpose.msra.mxu0 0.0
    %1939 = vmatprep.subr.mxu0 0.0
    %1940 = vmatpush1.xpose.msra.mxu0 0.0
    %1941 = vmatprep.subr.mxu0 0.0
    %1942 = vmatpush1.xpose.msra.mxu0 0.0
    %1943 = vmatprep.subr.mxu0 0.0
    %1944 = vmatpush1.xpose.msra.mxu0 0.0
    %1945 = vmatprep.subr.mxu0 0.0
    %1946 = vmatpush1.xpose.msra.mxu0 0.0
    %1947 = vmatprep.mubr.f32.mxu0 0.0
    %1948 = vmatmul.mubr.f32.gmra.mrb[0].mxu0 %v1879
    %v1949 = vpop.f32.mrb[0].mxu0
    %v1950 = vadd.f32 0.0, %v1949
    %v1951 = vpop.f32.mrb[0].mxu0
    %1952 = vdwg.mxu0
    %v1953 = vsel %vm302, %v1872, -inf
    %1954 = vmax.xlane.f32.xlu0 %v1953
    %v1955 = vpop.xlane.xlu0 %1954
    %v1956 = vsel %vm302, %v1950, -inf
    %1957 = vmax.xlane.f32.xlu0 %v1956
    %v1958 = vpop.xlane.xlu0 %1957
    %v1959 = vsub.f32 %v1872, %v1955
    %v1960 = vsub.f32 %v1950, %v1958
    %v1961 = vmul.f32 %v1959, 1.442695
    %v1962 = vpow.pop %v1961
    %v1963 = vmul.f32 %v1960, 1.442695
    %v1964 = vpow.pop %v1963
    %v1965 = vsel %vm302, %v1962, 0.0
    %1966 = vadd.xlane.f32.xlu0 %v1965
    %v1967 = vpop.xlane.xlu0 %1966
    %v1968 = vsel %vm302, %v1964, 0.0
    %1969 = vadd.xlane.f32.xlu0 %v1968
    %v1970 = vpop.xlane.xlu0 %1969
    %v1971 = vrcp.pop %v1967
    %v1972 = vrcp.pop %v1970
    %v1973 = vmul.f32 %v1962, %v1971
    %v1974 = vmul.f32 %v1964, %v1972
    %1975 = vrot.lane.b32.xlu0 %v139, 44
    %v1976 = vpop.permute.xlu0 %1975
    %v1979 = vsel %vm302, %v1973, 0
    %1981 = vmatprep.subr.mxu0 0.0
    %1982 = vmatpush1.msra.mxu0 %v1976
    %1983 = vmatprep.subr.mxu0 0.0
    %1984 = vmatpush1.msra.mxu0 0.0
    %1985 = vmatprep.subr.mxu0 0.0
    %1986 = vmatpush1.msra.mxu0 0.0
    %1987 = vmatprep.subr.mxu0 0.0
    %1988 = vmatpush1.msra.mxu0 0.0
    %1989 = vmatprep.subr.mxu0 0.0
    %1990 = vmatpush1.msra.mxu0 0.0
    %1991 = vmatprep.subr.mxu0 0.0
    %1992 = vmatpush1.msra.mxu0 0.0
    %1993 = vmatprep.subr.mxu0 0.0
    %1994 = vmatpush1.msra.mxu0 0.0
    %1995 = vmatprep.subr.mxu0 0.0
    %1996 = vmatpush1.msra.mxu0 0.0
    %1997 = vmatprep.subr.mxu0 0.0
    %1998 = vmatpush1.msra.mxu0 0.0
    %1999 = vmatprep.subr.mxu0 0.0
    %2000 = vmatpush1.msra.mxu0 0.0
    %2001 = vmatprep.subr.mxu0 0.0
    %2002 = vmatpush1.msra.mxu0 0.0
    %2003 = vmatprep.subr.mxu0 0.0
    %2004 = vmatpush1.msra.mxu0 0.0
    %2005 = vmatprep.subr.mxu0 0.0
    %2006 = vmatpush1.msra.mxu0 0.0
    %2007 = vmatprep.subr.mxu0 0.0
    %2008 = vmatpush1.msra.mxu0 0.0
    %2009 = vmatprep.subr.mxu0 0.0
    %2010 = vmatpush1.msra.mxu0 0.0
    %2011 = vmatprep.subr.mxu0 0.0
    %2012 = vmatpush1.msra.mxu0 0.0
    %2013 = vmatprep.subr.mxu0 0.0
    %2014 = vmatpush1.msra.mxu0 0.0
    %2015 = vmatprep.subr.mxu0 0.0
    %2016 = vmatpush1.msra.mxu0 0.0
    %2017 = vmatprep.subr.mxu0 0.0
    %2018 = vmatpush1.msra.mxu0 0.0
    %2019 = vmatprep.subr.mxu0 0.0
    %2020 = vmatpush1.msra.mxu0 0.0
    %2021 = vmatprep.subr.mxu0 0.0
    %2022 = vmatpush1.msra.mxu0 0.0
    %2023 = vmatprep.subr.mxu0 0.0
    %2024 = vmatpush1.msra.mxu0 0.0
    %2025 = vmatprep.subr.mxu0 0.0
    %2026 = vmatpush1.msra.mxu0 0.0
    %2027 = vmatprep.subr.mxu0 0.0
    %2028 = vmatpush1.msra.mxu0 0.0
    %2029 = vmatprep.subr.mxu0 0.0
    %2030 = vmatpush1.msra.mxu0 0.0
    %2031 = vmatprep.subr.mxu0 0.0
    %2032 = vmatpush1.msra.mxu0 0.0
    %2033 = vmatprep.subr.mxu0 0.0
    %2034 = vmatpush1.msra.mxu0 0.0
    %2035 = vmatprep.subr.mxu0 0.0
    %2036 = vmatpush1.msra.mxu0 0.0
    %2037 = vmatprep.subr.mxu0 0.0
    %2038 = vmatpush1.msra.mxu0 0.0
    %2039 = vmatprep.subr.mxu0 0.0
    %2040 = vmatpush1.msra.mxu0 0.0
    %2041 = vmatprep.subr.mxu0 0.0
    %2042 = vmatpush1.msra.mxu0 0.0
    %2043 = vmatprep.subr.mxu0 0.0
    %2044 = vmatpush1.msra.mxu0 0.0
    %2045 = vmatprep.mubr.f32.mxu0 0.0
    %2046 = vmatmul.mubr.f32.gmra.mrb[0].mxu0 %v1979
    %v2047 = vpop.f32.mrb[0].mxu0
    %v2048 = vadd.f32 0.0, %v2047
    %v2049 = vpop.f32.mrb[0].mxu0
    %2050 = vdwg.mxu0
    %2051 = vrot.lane.b32.xlu0 %v144, 44
    %v2052 = vpop.permute.xlu0 %2051
    %v2055 = vsel %vm302, %v1974, 0
    %2057 = vmatprep.subr.mxu0 0.0
    %2058 = vmatpush1.msra.mxu0 %v2052
    %2059 = vmatprep.subr.mxu0 0.0
    %2060 = vmatpush1.msra.mxu0 0.0
    %2061 = vmatprep.subr.mxu0 0.0
    %2062 = vmatpush1.msra.mxu0 0.0
    %2063 = vmatprep.subr.mxu0 0.0
    %2064 = vmatpush1.msra.mxu0 0.0
    %2065 = vmatprep.subr.mxu0 0.0
    %2066 = vmatpush1.msra.mxu0 0.0
    %2067 = vmatprep.subr.mxu0 0.0
    %2068 = vmatpush1.msra.mxu0 0.0
    %2069 = vmatprep.subr.mxu0 0.0
    %2070 = vmatpush1.msra.mxu0 0.0
    %2071 = vmatprep.subr.mxu0 0.0
    %2072 = vmatpush1.msra.mxu0 0.0
    %2073 = vmatprep.subr.mxu0 0.0
    %2074 = vmatpush1.msra.mxu0 0.0
    %2075 = vmatprep.subr.mxu0 0.0
    %2076 = vmatpush1.msra.mxu0 0.0
    %2077 = vmatprep.subr.mxu0 0.0
    %2078 = vmatpush1.msra.mxu0 0.0
    %2079 = vmatprep.subr.mxu0 0.0
    %2080 = vmatpush1.msra.mxu0 0.0
    %2081 = vmatprep.subr.mxu0 0.0
    %2082 = vmatpush1.msra.mxu0 0.0
    %2083 = vmatprep.subr.mxu0 0.0
    %2084 = vmatpush1.msra.mxu0 0.0
    %2085 = vmatprep.subr.mxu0 0.0
    %2086 = vmatpush1.msra.mxu0 0.0
    %2087 = vmatprep.subr.mxu0 0.0
    %2088 = vmatpush1.msra.mxu0 0.0
    %2089 = vmatprep.subr.mxu0 0.0
    %2090 = vmatpush1.msra.mxu0 0.0
    %2091 = vmatprep.subr.mxu0 0.0
    %2092 = vmatpush1.msra.mxu0 0.0
    %2093 = vmatprep.subr.mxu0 0.0
    %2094 = vmatpush1.msra.mxu0 0.0
    %2095 = vmatprep.subr.mxu0 0.0
    %2096 = vmatpush1.msra.mxu0 0.0
    %2097 = vmatprep.subr.mxu0 0.0
    %2098 = vmatpush1.msra.mxu0 0.0
    %2099 = vmatprep.subr.mxu0 0.0
    %2100 = vmatpush1.msra.mxu0 0.0
    %2101 = vmatprep.subr.mxu0 0.0
    %2102 = vmatpush1.msra.mxu0 0.0
    %2103 = vmatprep.subr.mxu0 0.0
    %2104 = vmatpush1.msra.mxu0 0.0
    %2105 = vmatprep.subr.mxu0 0.0
    %2106 = vmatpush1.msra.mxu0 0.0
    %2107 = vmatprep.subr.mxu0 0.0
    %2108 = vmatpush1.msra.mxu0 0.0
    %2109 = vmatprep.subr.mxu0 0.0
    %2110 = vmatpush1.msra.mxu0 0.0
    %2111 = vmatprep.subr.mxu0 0.0
    %2112 = vmatpush1.msra.mxu0 0.0
    %2113 = vmatprep.subr.mxu0 0.0
    %2114 = vmatpush1.msra.mxu0 0.0
    %2115 = vmatprep.subr.mxu0 0.0
    %2116 = vmatpush1.msra.mxu0 0.0
    %2117 = vmatprep.subr.mxu0 0.0
    %2118 = vmatpush1.msra.mxu0 0.0
    %2119 = vmatprep.subr.mxu0 0.0
    %2120 = vmatpush1.msra.mxu0 0.0
    %2121 = vmatprep.mubr.f32.mxu0 0.0
    %2122 = vmatmul.mubr.f32.gmra.mrb[0].mxu0 %v2055
    %v2123 = vpop.f32.mrb[0].mxu0
    %v2124 = vadd.f32 0.0, %v2123
    %v2125 = vpop.f32.mrb[0].mxu0
    %2126 = vdwg.mxu0
    %2127 = vrot.lane.b32.xlu0 %v139, 104
    %v2128 = vpop.permute.xlu0 %2127
    %2129 = vrot.lane.b32.xlu0 %v139, 72
    %v2130 = vpop.permute.xlu0 %2129
    %v2131 = vsel %vm150, %v2128, 0
    %v2133 = vsel %vm150, %v2130, 0
    %2135 = vmatprep.subr.mxu0 0.0
    %2136 = vmatpush1.xpose.msra.mxu0 %v2133
    %2137 = vmatprep.subr.mxu0 0.0
    %2138 = vmatpush1.xpose.msra.mxu0 0.0
    %2139 = vmatprep.subr.mxu0 0.0
    %2140 = vmatpush1.xpose.msra.mxu0 0.0
    %2141 = vmatprep.subr.mxu0 0.0
    %2142 = vmatpush1.xpose.msra.mxu0 0.0
    %2143 = vmatprep.subr.mxu0 0.0
    %2144 = vmatpush1.xpose.msra.mxu0 0.0
    %2145 = vmatprep.subr.mxu0 0.0
    %2146 = vmatpush1.xpose.msra.mxu0 0.0
    %2147 = vmatprep.subr.mxu0 0.0
    %2148 = vmatpush1.xpose.msra.mxu0 0.0
    %2149 = vmatprep.subr.mxu0 0.0
    %2150 = vmatpush1.xpose.msra.mxu0 0.0
    %2151 = vmatprep.subr.mxu0 0.0
    %2152 = vmatpush1.xpose.msra.mxu0 0.0
    %2153 = vmatprep.subr.mxu0 0.0
    %2154 = vmatpush1.xpose.msra.mxu0 0.0
    %2155 = vmatprep.subr.mxu0 0.0
    %2156 = vmatpush1.xpose.msra.mxu0 0.0
    %2157 = vmatprep.subr.mxu0 0.0
    %2158 = vmatpush1.xpose.msra.mxu0 0.0
    %2159 = vmatprep.subr.mxu0 0.0
    %2160 = vmatpush1.xpose.msra.mxu0 0.0
    %2161 = vmatprep.subr.mxu0 0.0
    %2162 = vmatpush1.xpose.msra.mxu0 0.0
    %2163 = vmatprep.subr.mxu0 0.0
    %2164 = vmatpush1.xpose.msra.mxu0 0.0
    %2165 = vmatprep.subr.mxu0 0.0
    %2166 = vmatpush1.xpose.msra.mxu0 0.0
    %2167 = vmatprep.subr.mxu0 0.0
    %2168 = vmatpush1.xpose.msra.mxu0 0.0
    %2169 = vmatprep.subr.mxu0 0.0
    %2170 = vmatpush1.xpose.msra.mxu0 0.0
    %2171 = vmatprep.subr.mxu0 0.0
    %2172 = vmatpush1.xpose.msra.mxu0 0.0
    %2173 = vmatprep.subr.mxu0 0.0
    %2174 = vmatpush1.xpose.msra.mxu0 0.0
    %2175 = vmatprep.subr.mxu0 0.0
    %2176 = vmatpush1.xpose.msra.mxu0 0.0
    %2177 = vmatprep.subr.mxu0 0.0
    %2178 = vmatpush1.xpose.msra.mxu0 0.0
    %2179 = vmatprep.subr.mxu0 0.0
    %2180 = vmatpush1.xpose.msra.mxu0 0.0
    %2181 = vmatprep.subr.mxu0 0.0
    %2182 = vmatpush1.xpose.msra.mxu0 0.0
    %2183 = vmatprep.subr.mxu0 0.0
    %2184 = vmatpush1.xpose.msra.mxu0 0.0
    %2185 = vmatprep.subr.mxu0 0.0
    %2186 = vmatpush1.xpose.msra.mxu0 0.0
    %2187 = vmatprep.subr.mxu0 0.0
    %2188 = vmatpush1.xpose.msra.mxu0 0.0
    %2189 = vmatprep.subr.mxu0 0.0
    %2190 = vmatpush1.xpose.msra.mxu0 0.0
    %2191 = vmatprep.subr.mxu0 0.0
    %2192 = vmatpush1.xpose.msra.mxu0 0.0
    %2193 = vmatprep.subr.mxu0 0.0
    %2194 = vmatpush1.xpose.msra.mxu0 0.0
    %2195 = vmatprep.subr.mxu0 0.0
    %2196 = vmatpush1.xpose.msra.mxu0 0.0
    %2197 = vmatprep.subr.mxu0 0.0
    %2198 = vmatpush1.xpose.msra.mxu0 0.0
    %2199 = vmatprep.mubr.f32.mxu0 0.0
    %2200 = vmatmul.mubr.f32.gmra.mrb[0].mxu0 %v2131
    %v2201 = vpop.f32.mrb[0].mxu0
    %v2202 = vadd.f32 0.0, %v2201
    %v2203 = vpop.f32.mrb[0].mxu0
    %2204 = vdwg.mxu0
    %2205 = vrot.lane.b32.xlu0 %v144, 104
    %v2206 = vpop.permute.xlu0 %2205
    %2207 = vrot.lane.b32.xlu0 %v144, 72
    %v2208 = vpop.permute.xlu0 %2207
    %v2209 = vsel %vm150, %v2206, 0
    %v2211 = vsel %vm150, %v2208, 0
    %2213 = vmatprep.subr.mxu0 0.0
    %2214 = vmatpush1.xpose.msra.mxu0 %v2211
    %2215 = vmatprep.subr.mxu0 0.0
    %2216 = vmatpush1.xpose.msra.mxu0 0.0
    %2217 = vmatprep.subr.mxu0 0.0
    %2218 = vmatpush1.xpose.msra.mxu0 0.0
    %2219 = vmatprep.subr.mxu0 0.0
    %2220 = vmatpush1.xpose.msra.mxu0 0.0
    %2221 = vmatprep.subr.mxu0 0.0
    %2222 = vmatpush1.xpose.msra.mxu0 0.0
    %2223 = vmatprep.subr.mxu0 0.0
    %2224 = vmatpush1.xpose.msra.mxu0 0.0
    %2225 = vmatprep.subr.mxu0 0.0
    %2226 = vmatpush1.xpose.msra.mxu0 0.0
    %2227 = vmatprep.subr.mxu0 0.0
    %2228 = vmatpush1.xpose.msra.mxu0 0.0
    %2229 = vmatprep.subr.mxu0 0.0
    %2230 = vmatpush1.xpose.msra.mxu0 0.0
    %2231 = vmatprep.subr.mxu0 0.0
    %2232 = vmatpush1.xpose.msra.mxu0 0.0
    %2233 = vmatprep.subr.mxu0 0.0
    %2234 = vmatpush1.xpose.msra.mxu0 0.0
    %2235 = vmatprep.subr.mxu0 0.0
    %2236 = vmatpush1.xpose.msra.mxu0 0.0
    %2237 = vmatprep.subr.mxu0 0.0
    %2238 = vmatpush1.xpose.msra.mxu0 0.0
    %2239 = vmatprep.subr.mxu0 0.0
    %2240 = vmatpush1.xpose.msra.mxu0 0.0
    %2241 = vmatprep.subr.mxu0 0.0
    %2242 = vmatpush1.xpose.msra.mxu0 0.0
    %2243 = vmatprep.subr.mxu0 0.0
    %2244 = vmatpush1.xpose.msra.mxu0 0.0
    %2245 = vmatprep.subr.mxu0 0.0
    %2246 = vmatpush1.xpose.msra.mxu0 0.0
    %2247 = vmatprep.subr.mxu0 0.0
    %2248 = vmatpush1.xpose.msra.mxu0 0.0
    %2249 = vmatprep.subr.mxu0 0.0
    %2250 = vmatpush1.xpose.msra.mxu0 0.0
    %2251 = vmatprep.subr.mxu0 0.0
    %2252 = vmatpush1.xpose.msra.mxu0 0.0
    %2253 = vmatprep.subr.mxu0 0.0
    %2254 = vmatpush1.xpose.msra.mxu0 0.0
    %2255 = vmatprep.subr.mxu0 0.0
    %2256 = vmatpush1.xpose.msra.mxu0 0.0
    %2257 = vmatprep.subr.mxu0 0.0
    %2258 = vmatpush1.xpose.msra.mxu0 0.0
    %2259 = vmatprep.subr.mxu0 0.0
    %2260 = vmatpush1.xpose.msra.mxu0 0.0
    %2261 = vmatprep.subr.mxu0 0.0
    %2262 = vmatpush1.xpose.msra.mxu0 0.0
    %2263 = vmatprep.subr.mxu0 0.0
    %2264 = vmatpush1.xpose.msra.mxu0 0.0
    %2265 = vmatprep.subr.mxu0 0.0
    %2266 = vmatpush1.xpose.msra.mxu0 0.0
    %2267 = vmatprep.subr.mxu0 0.0
    %2268 = vmatpush1.xpose.msra.mxu0 0.0
    %2269 = vmatprep.subr.mxu0 0.0
    %2270 = vmatpush1.xpose.msra.mxu0 0.0
    %2271 = vmatprep.subr.mxu0 0.0
    %2272 = vmatpush1.xpose.msra.mxu0 0.0
    %2273 = vmatprep.subr.mxu0 0.0
    %2274 = vmatpush1.xpose.msra.mxu0 0.0
    %2275 = vmatprep.subr.mxu0 0.0
    %2276 = vmatpush1.xpose.msra.mxu0 0.0
    %2277 = vmatprep.mubr.f32.mxu0 0.0
    %2278 = vmatmul.mubr.f32.gmra.mrb[0].mxu0 %v2209
    %v2279 = vpop.f32.mrb[0].mxu0
    %v2280 = vadd.f32 0.0, %v2279
    %v2281 = vpop.f32.mrb[0].mxu0
    %2282 = vdwg.mxu0
    %v2283 = vsel %vm302, %v2202, -inf
    %2284 = vmax.xlane.f32.xlu0 %v2283
    %v2285 = vpop.xlane.xlu0 %2284
    %v2286 = vsel %vm302, %v2280, -inf
    %2287 = vmax.xlane.f32.xlu0 %v2286
    %v2288 = vpop.xlane.xlu0 %2287
    %v2289 = vsub.f32 %v2202, %v2285
    %v2290 = vsub.f32 %v2280, %v2288
    %v2291 = vmul.f32 %v2289, 1.442695
    %v2292 = vpow.pop %v2291
    %v2293 = vmul.f32 %v2290, 1.442695
    %v2294 = vpow.pop %v2293
    %v2295 = vsel %vm302, %v2292, 0.0
    %2296 = vadd.xlane.f32.xlu0 %v2295
    %v2297 = vpop.xlane.xlu0 %2296
    %v2298 = vsel %vm302, %v2294, 0.0
    %2299 = vadd.xlane.f32.xlu0 %v2298
    %v2300 = vpop.xlane.xlu0 %2299
    %v2301 = vrcp.pop %v2297
    %v2302 = vrcp.pop %v2300
    %v2303 = vmul.f32 %v2292, %v2301
    %v2304 = vmul.f32 %v2294, %v2302
    %2305 = vrot.lane.b32.xlu0 %v139, 40
    %v2306 = vpop.permute.xlu0 %2305
    %v2309 = vsel %vm302, %v2303, 0
    %2311 = vmatprep.subr.mxu0 0.0
    %2312 = vmatpush1.msra.mxu0 %v2306
    %2313 = vmatprep.subr.mxu0 0.0
    %2314 = vmatpush1.msra.mxu0 0.0
    %2315 = vmatprep.subr.mxu0 0.0
    %2316 = vmatpush1.msra.mxu0 0.0
    %2317 = vmatprep.subr.mxu0 0.0
    %2318 = vmatpush1.msra.mxu0 0.0
    %2319 = vmatprep.subr.mxu0 0.0
    %2320 = vmatpush1.msra.mxu0 0.0
    %2321 = vmatprep.subr.mxu0 0.0
    %2322 = vmatpush1.msra.mxu0 0.0
    %2323 = vmatprep.subr.mxu0 0.0
    %2324 = vmatpush1.msra.mxu0 0.0
    %2325 = vmatprep.subr.mxu0 0.0
    %2326 = vmatpush1.msra.mxu0 0.0
    %2327 = vmatprep.subr.mxu0 0.0
    %2328 = vmatpush1.msra.mxu0 0.0
    %2329 = vmatprep.subr.mxu0 0.0
    %2330 = vmatpush1.msra.mxu0 0.0
    %2331 = vmatprep.subr.mxu0 0.0
    %2332 = vmatpush1.msra.mxu0 0.0
    %2333 = vmatprep.subr.mxu0 0.0
    %2334 = vmatpush1.msra.mxu0 0.0
    %2335 = vmatprep.subr.mxu0 0.0
    %2336 = vmatpush1.msra.mxu0 0.0
    %2337 = vmatprep.subr.mxu0 0.0
    %2338 = vmatpush1.msra.mxu0 0.0
    %2339 = vmatprep.subr.mxu0 0.0
    %2340 = vmatpush1.msra.mxu0 0.0
    %2341 = vmatprep.subr.mxu0 0.0
    %2342 = vmatpush1.msra.mxu0 0.0
    %2343 = vmatprep.subr.mxu0 0.0
    %2344 = vmatpush1.msra.mxu0 0.0
    %2345 = vmatprep.subr.mxu0 0.0
    %2346 = vmatpush1.msra.mxu0 0.0
    %2347 = vmatprep.subr.mxu0 0.0
    %2348 = vmatpush1.msra.mxu0 0.0
    %2349 = vmatprep.subr.mxu0 0.0
    %2350 = vmatpush1.msra.mxu0 0.0
    %2351 = vmatprep.subr.mxu0 0.0
    %2352 = vmatpush1.msra.mxu0 0.0
    %2353 = vmatprep.subr.mxu0 0.0
    %2354 = vmatpush1.msra.mxu0 0.0
    %2355 = vmatprep.subr.mxu0 0.0
    %2356 = vmatpush1.msra.mxu0 0.0
    %2357 = vmatprep.subr.mxu0 0.0
    %2358 = vmatpush1.msra.mxu0 0.0
    %2359 = vmatprep.subr.mxu0 0.0
    %2360 = vmatpush1.msra.mxu0 0.0
    %2361 = vmatprep.subr.mxu0 0.0
    %2362 = vmatpush1.msra.mxu0 0.0
    %2363 = vmatprep.subr.mxu0 0.0
    %2364 = vmatpush1.msra.mxu0 0.0
    %2365 = vmatprep.subr.mxu0 0.0
    %2366 = vmatpush1.msra.mxu0 0.0
    %2367 = vmatprep.subr.mxu0 0.0
    %2368 = vmatpush1.msra.mxu0 0.0
    %2369 = vmatprep.subr.mxu0 0.0
    %2370 = vmatpush1.msra.mxu0 0.0
    %2371 = vmatprep.subr.mxu0 0.0
    %2372 = vmatpush1.msra.mxu0 0.0
    %2373 = vmatprep.subr.mxu0 0.0
    %2374 = vmatpush1.msra.mxu0 0.0
    %2375 = vmatprep.mubr.f32.mxu0 0.0
    %2376 = vmatmul.mubr.f32.gmra.mrb[0].mxu0 %v2309
    %v2377 = vpop.f32.mrb[0].mxu0
    %v2378 = vadd.f32 0.0, %v2377
    %v2379 = vpop.f32.mrb[0].mxu0
    %2380 = vdwg.mxu0
    %2381 = vrot.lane.b32.xlu0 %v144, 40
    %v2382 = vpop.permute.xlu0 %2381
    %v2385 = vsel %vm302, %v2304, 0
    %2387 = vmatprep.subr.mxu0 0.0
    %2388 = vmatpush1.msra.mxu0 %v2382
    %2389 = vmatprep.subr.mxu0 0.0
    %2390 = vmatpush1.msra.mxu0 0.0
    %2391 = vmatprep.subr.mxu0 0.0
    %2392 = vmatpush1.msra.mxu0 0.0
    %2393 = vmatprep.subr.mxu0 0.0
    %2394 = vmatpush1.msra.mxu0 0.0
    %2395 = vmatprep.subr.mxu0 0.0
    %2396 = vmatpush1.msra.mxu0 0.0
    %2397 = vmatprep.subr.mxu0 0.0
    %2398 = vmatpush1.msra.mxu0 0.0
    %2399 = vmatprep.subr.mxu0 0.0
    %2400 = vmatpush1.msra.mxu0 0.0
    %2401 = vmatprep.subr.mxu0 0.0
    %2402 = vmatpush1.msra.mxu0 0.0
    %2403 = vmatprep.subr.mxu0 0.0
    %2404 = vmatpush1.msra.mxu0 0.0
    %2405 = vmatprep.subr.mxu0 0.0
    %2406 = vmatpush1.msra.mxu0 0.0
    %2407 = vmatprep.subr.mxu0 0.0
    %2408 = vmatpush1.msra.mxu0 0.0
    %2409 = vmatprep.subr.mxu0 0.0
    %2410 = vmatpush1.msra.mxu0 0.0
    %2411 = vmatprep.subr.mxu0 0.0
    %2412 = vmatpush1.msra.mxu0 0.0
    %2413 = vmatprep.subr.mxu0 0.0
    %2414 = vmatpush1.msra.mxu0 0.0
    %2415 = vmatprep.subr.mxu0 0.0
    %2416 = vmatpush1.msra.mxu0 0.0
    %2417 = vmatprep.subr.mxu0 0.0
    %2418 = vmatpush1.msra.mxu0 0.0
    %2419 = vmatprep.subr.mxu0 0.0
    %2420 = vmatpush1.msra.mxu0 0.0
    %2421 = vmatprep.subr.mxu0 0.0
    %2422 = vmatpush1.msra.mxu0 0.0
    %2423 = vmatprep.subr.mxu0 0.0
    %2424 = vmatpush1.msra.mxu0 0.0
    %2425 = vmatprep.subr.mxu0 0.0
    %2426 = vmatpush1.msra.mxu0 0.0
    %2427 = vmatprep.subr.mxu0 0.0
    %2428 = vmatpush1.msra.mxu0 0.0
    %2429 = vmatprep.subr.mxu0 0.0
    %2430 = vmatpush1.msra.mxu0 0.0
    %2431 = vmatprep.subr.mxu0 0.0
    %2432 = vmatpush1.msra.mxu0 0.0
    %2433 = vmatprep.subr.mxu0 0.0
    %2434 = vmatpush1.msra.mxu0 0.0
    %2435 = vmatprep.subr.mxu0 0.0
    %2436 = vmatpush1.msra.mxu0 0.0
    %2437 = vmatprep.subr.mxu0 0.0
    %2438 = vmatpush1.msra.mxu0 0.0
    %2439 = vmatprep.subr.mxu0 0.0
    %2440 = vmatpush1.msra.mxu0 0.0
    %2441 = vmatprep.subr.mxu0 0.0
    %2442 = vmatpush1.msra.mxu0 0.0
    %2443 = vmatprep.subr.mxu0 0.0
    %2444 = vmatpush1.msra.mxu0 0.0
    %2445 = vmatprep.subr.mxu0 0.0
    %2446 = vmatpush1.msra.mxu0 0.0
    %2447 = vmatprep.subr.mxu0 0.0
    %2448 = vmatpush1.msra.mxu0 0.0
    %2449 = vmatprep.subr.mxu0 0.0
    %2450 = vmatpush1.msra.mxu0 0.0
    %2451 = vmatprep.mubr.f32.mxu0 0.0
    %2452 = vmatmul.mubr.f32.gmra.mrb[0].mxu0 %v2385
    %v2453 = vpop.f32.mrb[0].mxu0
    %v2454 = vadd.f32 0.0, %v2453
    %v2455 = vpop.f32.mrb[0].mxu0
    %2456 = vdwg.mxu0
    %2457 = vrot.lane.b32.xlu0 %v139, 100
    %v2458 = vpop.permute.xlu0 %2457
    %2459 = vrot.lane.b32.xlu0 %v139, 68
    %v2460 = vpop.permute.xlu0 %2459
    %v2461 = vsel %vm150, %v2458, 0
    %v2463 = vsel %vm150, %v2460, 0
    %2465 = vmatprep.subr.mxu0 0.0
    %2466 = vmatpush1.xpose.msra.mxu0 %v2463
    %2467 = vmatprep.subr.mxu0 0.0
    %2468 = vmatpush1.xpose.msra.mxu0 0.0
    %2469 = vmatprep.subr.mxu0 0.0
    %2470 = vmatpush1.xpose.msra.mxu0 0.0
    %2471 = vmatprep.subr.mxu0 0.0
    %2472 = vmatpush1.xpose.msra.mxu0 0.0
    %2473 = vmatprep.subr.mxu0 0.0
    %2474 = vmatpush1.xpose.msra.mxu0 0.0
    %2475 = vmatprep.subr.mxu0 0.0
    %2476 = vmatpush1.xpose.msra.mxu0 0.0
    %2477 = vmatprep.subr.mxu0 0.0
    %2478 = vmatpush1.xpose.msra.mxu0 0.0
    %2479 = vmatprep.subr.mxu0 0.0
    %2480 = vmatpush1.xpose.msra.mxu0 0.0
    %2481 = vmatprep.subr.mxu0 0.0
    %2482 = vmatpush1.xpose.msra.mxu0 0.0
    %2483 = vmatprep.subr.mxu0 0.0
    %2484 = vmatpush1.xpose.msra.mxu0 0.0
    %2485 = vmatprep.subr.mxu0 0.0
    %2486 = vmatpush1.xpose.msra.mxu0 0.0
    %2487 = vmatprep.subr.mxu0 0.0
    %2488 = vmatpush1.xpose.msra.mxu0 0.0
    %2489 = vmatprep.subr.mxu0 0.0
    %2490 = vmatpush1.xpose.msra.mxu0 0.0
    %2491 = vmatprep.subr.mxu0 0.0
    %2492 = vmatpush1.xpose.msra.mxu0 0.0
    %2493 = vmatprep.subr.mxu0 0.0
    %2494 = vmatpush1.xpose.msra.mxu0 0.0
    %2495 = vmatprep.subr.mxu0 0.0
    %2496 = vmatpush1.xpose.msra.mxu0 0.0
    %2497 = vmatprep.subr.mxu0 0.0
    %2498 = vmatpush1.xpose.msra.mxu0 0.0
    %2499 = vmatprep.subr.mxu0 0.0
    %2500 = vmatpush1.xpose.msra.mxu0 0.0
    %2501 = vmatprep.subr.mxu0 0.0
    %2502 = vmatpush1.xpose.msra.mxu0 0.0
    %2503 = vmatprep.subr.mxu0 0.0
    %2504 = vmatpush1.xpose.msra.mxu0 0.0
    %2505 = vmatprep.subr.mxu0 0.0
    %2506 = vmatpush1.xpose.msra.mxu0 0.0
    %2507 = vmatprep.subr.mxu0 0.0
    %2508 = vmatpush1.xpose.msra.mxu0 0.0
    %2509 = vmatprep.subr.mxu0 0.0
    %2510 = vmatpush1.xpose.msra.mxu0 0.0
    %2511 = vmatprep.subr.mxu0 0.0
    %2512 = vmatpush1.xpose.msra.mxu0 0.0
    %2513 = vmatprep.subr.mxu0 0.0
    %2514 = vmatpush1.xpose.msra.mxu0 0.0
    %2515 = vmatprep.subr.mxu0 0.0
    %2516 = vmatpush1.xpose.msra.mxu0 0.0
    %2517 = vmatprep.subr.mxu0 0.0
    %2518 = vmatpush1.xpose.msra.mxu0 0.0
    %2519 = vmatprep.subr.mxu0 0.0
    %2520 = vmatpush1.xpose.msra.mxu0 0.0
    %2521 = vmatprep.subr.mxu0 0.0
    %2522 = vmatpush1.xpose.msra.mxu0 0.0
    %2523 = vmatprep.subr.mxu0 0.0
    %2524 = vmatpush1.xpose.msra.mxu0 0.0
    %2525 = vmatprep.subr.mxu0 0.0
    %2526 = vmatpush1.xpose.msra.mxu0 0.0
    %2527 = vmatprep.subr.mxu0 0.0
    %2528 = vmatpush1.xpose.msra.mxu0 0.0
    %2529 = vmatprep.mubr.f32.mxu0 0.0
    %2530 = vmatmul.mubr.f32.gmra.mrb[0].mxu0 %v2461
    %v2531 = vpop.f32.mrb[0].mxu0
    %v2532 = vadd.f32 0.0, %v2531
    %v2533 = vpop.f32.mrb[0].mxu0
    %2534 = vdwg.mxu0
    %2535 = vrot.lane.b32.xlu0 %v144, 100
    %v2536 = vpop.permute.xlu0 %2535
    %2537 = vrot.lane.b32.xlu0 %v144, 68
    %v2538 = vpop.permute.xlu0 %2537
    %v2539 = vsel %vm150, %v2536, 0
    %v2541 = vsel %vm150, %v2538, 0
    %2543 = vmatprep.subr.mxu0 0.0
    %2544 = vmatpush1.xpose.msra.mxu0 %v2541
    %2545 = vmatprep.subr.mxu0 0.0
    %2546 = vmatpush1.xpose.msra.mxu0 0.0
    %2547 = vmatprep.subr.mxu0 0.0
    %2548 = vmatpush1.xpose.msra.mxu0 0.0
    %2549 = vmatprep.subr.mxu0 0.0
    %2550 = vmatpush1.xpose.msra.mxu0 0.0
    %2551 = vmatprep.subr.mxu0 0.0
    %2552 = vmatpush1.xpose.msra.mxu0 0.0
    %2553 = vmatprep.subr.mxu0 0.0
    %2554 = vmatpush1.xpose.msra.mxu0 0.0
    %2555 = vmatprep.subr.mxu0 0.0
    %2556 = vmatpush1.xpose.msra.mxu0 0.0
    %2557 = vmatprep.subr.mxu0 0.0
    %2558 = vmatpush1.xpose.msra.mxu0 0.0
    %2559 = vmatprep.subr.mxu0 0.0
    %2560 = vmatpush1.xpose.msra.mxu0 0.0
    %2561 = vmatprep.subr.mxu0 0.0
    %2562 = vmatpush1.xpose.msra.mxu0 0.0
    %2563 = vmatprep.subr.mxu0 0.0
    %2564 = vmatpush1.xpose.msra.mxu0 0.0
    %2565 = vmatprep.subr.mxu0 0.0
    %2566 = vmatpush1.xpose.msra.mxu0 0.0
    %2567 = vmatprep.subr.mxu0 0.0
    %2568 = vmatpush1.xpose.msra.mxu0 0.0
    %2569 = vmatprep.subr.mxu0 0.0
    %2570 = vmatpush1.xpose.msra.mxu0 0.0
    %2571 = vmatprep.subr.mxu0 0.0
    %2572 = vmatpush1.xpose.msra.mxu0 0.0
    %2573 = vmatprep.subr.mxu0 0.0
    %2574 = vmatpush1.xpose.msra.mxu0 0.0
    %2575 = vmatprep.subr.mxu0 0.0
    %2576 = vmatpush1.xpose.msra.mxu0 0.0
    %2577 = vmatprep.subr.mxu0 0.0
    %2578 = vmatpush1.xpose.msra.mxu0 0.0
    %2579 = vmatprep.subr.mxu0 0.0
    %2580 = vmatpush1.xpose.msra.mxu0 0.0
    %2581 = vmatprep.subr.mxu0 0.0
    %2582 = vmatpush1.xpose.msra.mxu0 0.0
    %2583 = vmatprep.subr.mxu0 0.0
    %2584 = vmatpush1.xpose.msra.mxu0 0.0
    %2585 = vmatprep.subr.mxu0 0.0
    %2586 = vmatpush1.xpose.msra.mxu0 0.0
    %2587 = vmatprep.subr.mxu0 0.0
    %2588 = vmatpush1.xpose.msra.mxu0 0.0
    %2589 = vmatprep.subr.mxu0 0.0
    %2590 = vmatpush1.xpose.msra.mxu0 0.0
    %2591 = vmatprep.subr.mxu0 0.0
    %2592 = vmatpush1.xpose.msra.mxu0 0.0
    %2593 = vmatprep.subr.mxu0 0.0
    %2594 = vmatpush1.xpose.msra.mxu0 0.0
    %2595 = vmatprep.subr.mxu0 0.0
    %2596 = vmatpush1.xpose.msra.mxu0 0.0
    %2597 = vmatprep.subr.mxu0 0.0
    %2598 = vmatpush1.xpose.msra.mxu0 0.0
    %2599 = vmatprep.subr.mxu0 0.0
    %2600 = vmatpush1.xpose.msra.mxu0 0.0
    %2601 = vmatprep.subr.mxu0 0.0
    %2602 = vmatpush1.xpose.msra.mxu0 0.0
    %2603 = vmatprep.subr.mxu0 0.0
    %2604 = vmatpush1.xpose.msra.mxu0 0.0
    %2605 = vmatprep.subr.mxu0 0.0
    %2606 = vmatpush1.xpose.msra.mxu0 0.0
    %2607 = vmatprep.mubr.f32.mxu0 0.0
    %2608 = vmatmul.mubr.f32.gmra.mrb[0].mxu0 %v2539
    %v2609 = vpop.f32.mrb[0].mxu0
    %v2610 = vadd.f32 0.0, %v2609
    %v2611 = vpop.f32.mrb[0].mxu0
    %2612 = vdwg.mxu0
    %v2613 = vsel %vm302, %v2532, -inf
    %2614 = vmax.xlane.f32.xlu0 %v2613
    %v2615 = vpop.xlane.xlu0 %2614
    %v2616 = vsel %vm302, %v2610, -inf
    %2617 = vmax.xlane.f32.xlu0 %v2616
    %v2618 = vpop.xlane.xlu0 %2617
    %v2619 = vsub.f32 %v2532, %v2615
    %v2620 = vsub.f32 %v2610, %v2618
    %v2621 = vmul.f32 %v2619, 1.442695
    %v2622 = vpow.pop %v2621
    %v2623 = vmul.f32 %v2620, 1.442695
    %v2624 = vpow.pop %v2623
    %v2625 = vsel %vm302, %v2622, 0.0
    %2626 = vadd.xlane.f32.xlu0 %v2625
    %v2627 = vpop.xlane.xlu0 %2626
    %v2628 = vsel %vm302, %v2624, 0.0
    %2629 = vadd.xlane.f32.xlu0 %v2628
    %v2630 = vpop.xlane.xlu0 %2629
    %v2631 = vrcp.pop %v2627
    %v2632 = vrcp.pop %v2630
    %v2633 = vmul.f32 %v2622, %v2631
    %v2634 = vmul.f32 %v2624, %v2632
    %2635 = vrot.lane.b32.xlu0 %v139, 36
    %v2636 = vpop.permute.xlu0 %2635
    %v2639 = vsel %vm302, %v2633, 0
    %2641 = vmatprep.subr.mxu0 0.0
    %2642 = vmatpush1.msra.mxu0 %v2636
    %2643 = vmatprep.subr.mxu0 0.0
    %2644 = vmatpush1.msra.mxu0 0.0
    %2645 = vmatprep.subr.mxu0 0.0
    %2646 = vmatpush1.msra.mxu0 0.0
    %2647 = vmatprep.subr.mxu0 0.0
    %2648 = vmatpush1.msra.mxu0 0.0
    %2649 = vmatprep.subr.mxu0 0.0
    %2650 = vmatpush1.msra.mxu0 0.0
    %2651 = vmatprep.subr.mxu0 0.0
    %2652 = vmatpush1.msra.mxu0 0.0
    %2653 = vmatprep.subr.mxu0 0.0
    %2654 = vmatpush1.msra.mxu0 0.0
    %2655 = vmatprep.subr.mxu0 0.0
    %2656 = vmatpush1.msra.mxu0 0.0
    %2657 = vmatprep.subr.mxu0 0.0
    %2658 = vmatpush1.msra.mxu0 0.0
    %2659 = vmatprep.subr.mxu0 0.0
    %2660 = vmatpush1.msra.mxu0 0.0
    %2661 = vmatprep.subr.mxu0 0.0
    %2662 = vmatpush1.msra.mxu0 0.0
    %2663 = vmatprep.subr.mxu0 0.0
    %2664 = vmatpush1.msra.mxu0 0.0
    %2665 = vmatprep.subr.mxu0 0.0
    %2666 = vmatpush1.msra.mxu0 0.0
    %2667 = vmatprep.subr.mxu0 0.0
    %2668 = vmatpush1.msra.mxu0 0.0
    %2669 = vmatprep.subr.mxu0 0.0
    %2670 = vmatpush1.msra.mxu0 0.0
    %2671 = vmatprep.subr.mxu0 0.0
    %2672 = vmatpush1.msra.mxu0 0.0
    %2673 = vmatprep.subr.mxu0 0.0
    %2674 = vmatpush1.msra.mxu0 0.0
    %2675 = vmatprep.subr.mxu0 0.0
    %2676 = vmatpush1.msra.mxu0 0.0
    %2677 = vmatprep.subr.mxu0 0.0
    %2678 = vmatpush1.msra.mxu0 0.0
    %2679 = vmatprep.subr.mxu0 0.0
    %2680 = vmatpush1.msra.mxu0 0.0
    %2681 = vmatprep.subr.mxu0 0.0
    %2682 = vmatpush1.msra.mxu0 0.0
    %2683 = vmatprep.subr.mxu0 0.0
    %2684 = vmatpush1.msra.mxu0 0.0
    %2685 = vmatprep.subr.mxu0 0.0
    %2686 = vmatpush1.msra.mxu0 0.0
    %2687 = vmatprep.subr.mxu0 0.0
    %2688 = vmatpush1.msra.mxu0 0.0
    %2689 = vmatprep.subr.mxu0 0.0
    %2690 = vmatpush1.msra.mxu0 0.0
    %2691 = vmatprep.subr.mxu0 0.0
    %2692 = vmatpush1.msra.mxu0 0.0
    %2693 = vmatprep.subr.mxu0 0.0
    %2694 = vmatpush1.msra.mxu0 0.0
    %2695 = vmatprep.subr.mxu0 0.0
    %2696 = vmatpush1.msra.mxu0 0.0
    %2697 = vmatprep.subr.mxu0 0.0
    %2698 = vmatpush1.msra.mxu0 0.0
    %2699 = vmatprep.subr.mxu0 0.0
    %2700 = vmatpush1.msra.mxu0 0.0
    %2701 = vmatprep.subr.mxu0 0.0
    %2702 = vmatpush1.msra.mxu0 0.0
    %2703 = vmatprep.subr.mxu0 0.0
    %2704 = vmatpush1.msra.mxu0 0.0
    %2705 = vmatprep.mubr.f32.mxu0 0.0
    %2706 = vmatmul.mubr.f32.gmra.mrb[0].mxu0 %v2639
    %v2707 = vpop.f32.mrb[0].mxu0
    %v2708 = vadd.f32 0.0, %v2707
    %v2709 = vpop.f32.mrb[0].mxu0
    %2710 = vdwg.mxu0
    %2711 = vrot.lane.b32.xlu0 %v144, 36
    %v2712 = vpop.permute.xlu0 %2711
    %v2715 = vsel %vm302, %v2634, 0
    %2717 = vmatprep.subr.mxu0 0.0
    %2718 = vmatpush1.msra.mxu0 %v2712
    %2719 = vmatprep.subr.mxu0 0.0
    %2720 = vmatpush1.msra.mxu0 0.0
    %2721 = vmatprep.subr.mxu0 0.0
    %2722 = vmatpush1.msra.mxu0 0.0
    %2723 = vmatprep.subr.mxu0 0.0
    %2724 = vmatpush1.msra.mxu0 0.0
    %2725 = vmatprep.subr.mxu0 0.0
    %2726 = vmatpush1.msra.mxu0 0.0
    %2727 = vmatprep.subr.mxu0 0.0
    %2728 = vmatpush1.msra.mxu0 0.0
    %2729 = vmatprep.subr.mxu0 0.0
    %2730 = vmatpush1.msra.mxu0 0.0
    %2731 = vmatprep.subr.mxu0 0.0
    %2732 = vmatpush1.msra.mxu0 0.0
    %2733 = vmatprep.subr.mxu0 0.0
    %2734 = vmatpush1.msra.mxu0 0.0
    %2735 = vmatprep.subr.mxu0 0.0
    %2736 = vmatpush1.msra.mxu0 0.0
    %2737 = vmatprep.subr.mxu0 0.0
    %2738 = vmatpush1.msra.mxu0 0.0
    %2739 = vmatprep.subr.mxu0 0.0
    %2740 = vmatpush1.msra.mxu0 0.0
    %2741 = vmatprep.subr.mxu0 0.0
    %2742 = vmatpush1.msra.mxu0 0.0
    %2743 = vmatprep.subr.mxu0 0.0
    %2744 = vmatpush1.msra.mxu0 0.0
    %2745 = vmatprep.subr.mxu0 0.0
    %2746 = vmatpush1.msra.mxu0 0.0
    %2747 = vmatprep.subr.mxu0 0.0
    %2748 = vmatpush1.msra.mxu0 0.0
    %2749 = vmatprep.subr.mxu0 0.0
    %2750 = vmatpush1.msra.mxu0 0.0
    %2751 = vmatprep.subr.mxu0 0.0
    %2752 = vmatpush1.msra.mxu0 0.0
    %2753 = vmatprep.subr.mxu0 0.0
    %2754 = vmatpush1.msra.mxu0 0.0
    %2755 = vmatprep.subr.mxu0 0.0
    %2756 = vmatpush1.msra.mxu0 0.0
    %2757 = vmatprep.subr.mxu0 0.0
    %2758 = vmatpush1.msra.mxu0 0.0
    %2759 = vmatprep.subr.mxu0 0.0
    %2760 = vmatpush1.msra.mxu0 0.0
    %2761 = vmatprep.subr.mxu0 0.0
    %2762 = vmatpush1.msra.mxu0 0.0
    %2763 = vmatprep.subr.mxu0 0.0
    %2764 = vmatpush1.msra.mxu0 0.0
    %2765 = vmatprep.subr.mxu0 0.0
    %2766 = vmatpush1.msra.mxu0 0.0
    %2767 = vmatprep.subr.mxu0 0.0
    %2768 = vmatpush1.msra.mxu0 0.0
    %2769 = vmatprep.subr.mxu0 0.0
    %2770 = vmatpush1.msra.mxu0 0.0
    %2771 = vmatprep.subr.mxu0 0.0
    %2772 = vmatpush1.msra.mxu0 0.0
    %2773 = vmatprep.subr.mxu0 0.0
    %2774 = vmatpush1.msra.mxu0 0.0
    %2775 = vmatprep.subr.mxu0 0.0
    %2776 = vmatpush1.msra.mxu0 0.0
    %2777 = vmatprep.subr.mxu0 0.0
    %2778 = vmatpush1.msra.mxu0 0.0
    %2779 = vmatprep.subr.mxu0 0.0
    %2780 = vmatpush1.msra.mxu0 0.0
    %2781 = vmatprep.mubr.f32.mxu0 0.0
    %2782 = vmatmul.mubr.f32.gmra.mrb[0].mxu0 %v2715
    %v2783 = vpop.f32.mrb[0].mxu0
    %v2784 = vadd.f32 0.0, %v2783
    %v2785 = vpop.f32.mrb[0].mxu0
    %2786 = vdwg.mxu0
    %2789 = vrot.lane.b32.xlu0 %v728, 4
    %v2790 = vpop.permute.xlu0 %2789
    %2791 = vrot.lane.b32.xlu0 %v804, 4
    %v2792 = vpop.permute.xlu0 %2791
    %2797 = vrot.lane.b32.xlu0 %v1058, 8
    %v2798 = vpop.permute.xlu0 %2797
    %2799 = vrot.lane.b32.xlu0 %v1134, 8
    %v2800 = vpop.permute.xlu0 %2799
    %2805 = vrot.lane.b32.xlu0 %v1388, 12
    %v2806 = vpop.permute.xlu0 %2805
    %2807 = vrot.lane.b32.xlu0 %v1464, 12
    %v2808 = vpop.permute.xlu0 %2807
    %2813 = vrot.lane.b32.xlu0 %v1718, 16
    %v2814 = vpop.permute.xlu0 %2813
    %2815 = vrot.lane.b32.xlu0 %v1794, 16
    %v2816 = vpop.permute.xlu0 %2815
    %2821 = vrot.lane.b32.xlu0 %v2048, 20
    %v2822 = vpop.permute.xlu0 %2821
    %2823 = vrot.lane.b32.xlu0 %v2124, 20
    %v2824 = vpop.permute.xlu0 %2823
    %2829 = vrot.lane.b32.xlu0 %v2378, 24
    %v2830 = vpop.permute.xlu0 %2829
    %2831 = vrot.lane.b32.xlu0 %v2454, 24
    %v2832 = vpop.permute.xlu0 %2831
    %2837 = vrot.lane.b32.xlu0 %v2708, 28
    %v2838 = vpop.permute.xlu0 %2837
    %2839 = vrot.lane.b32.xlu0 %v2784, 28
    %v2840 = vpop.permute.xlu0 %2839
    %v2843 = vsel %vm150, %v398, %v2790
    %v2844 = vsel %vm150, %v474, %v2792
    %v2845 = vsel %vm302, %v2843, %v2798
    %v2846 = vsel %vm302, %v2844, %v2800
    %vm2847 = vcmask 97280
    %v2848 = vsel %vm2847, %v2845, %v2806
    %v2849 = vsel %vm2847, %v2846, %v2808
    %vm2850 = vcmask 130048
    %v2851 = vsel %vm2850, %v2848, %v2814
    %v2852 = vsel %vm2850, %v2849, %v2816
    %vm2853 = vcmask 162816
    %v2854 = vsel %vm2853, %v2851, %v2822
    %v2855 = vsel %vm2853, %v2852, %v2824
    %vm2856 = vcmask 195584
    %v2857 = vsel %vm2856, %v2854, %v2830
    %v2858 = vsel %vm2856, %v2855, %v2832
    %vm2859 = vcmask 228352
    %v2860 = vsel %vm2859, %v2857, %v2838
    %v2861 = vsel %vm2859, %v2858, %v2840
    %v2862 = vld [vmem:[#allocation7] sm:$0xff]
    %v2863 = vld [vmem:[#allocation7 + $0x8] sm:$0xff]
    %v2864 = vld [vmem:[#allocation7 + $0x10] sm:$0xff]
    %v2865 = vld [vmem:[#allocation7 + $0x18] sm:$0xff]
    %v2866 = vld [vmem:[%s3] sm:$0x1]
    %v2868 = vlaneseq
    %v2869 = vshrl.u32 %v2868, 7
    %v2870 = vsub.s32 0, %v2869
    %v2871 = vrot.slane %v2866, %v2870
    %v2874 = vsel %vm65, %v2860, 0
    %v2877 = vsel %vm65, %v2861, 0
    %2879 = vmatprep.subr.mxu0 0.0
    %2880 = vmatpush1.msra.mxu0 %v2862
    %2881 = vmatprep.subr.mxu0 0.0
    %2882 = vmatpush1.msra.mxu0 %v2863
    %2883 = vmatprep.subr.mxu0 0.0
    %2884 = vmatpush1.msra.mxu0 %v2864
    %2885 = vmatprep.subr.mxu0 0.0
    %2886 = vmatpush1.msra.mxu0 %v2865
    %2887 = vmatprep.subr.mxu0 0.0
    %2888 = vmatpush1.msra.mxu0 0.0
    %2889 = vmatprep.subr.mxu0 0.0
    %2890 = vmatpush1.msra.mxu0 0.0
    %2891 = vmatprep.subr.mxu0 0.0
    %2892 = vmatpush1.msra.mxu0 0.0
    %2893 = vmatprep.subr.mxu0 0.0
    %2894 = vmatpush1.msra.mxu0 0.0
    %2895 = vmatprep.subr.mxu0 0.0
    %2896 = vmatpush1.msra.mxu0 0.0
    %2897 = vmatprep.subr.mxu0 0.0
    %2898 = vmatpush1.msra.mxu0 0.0
    %2899 = vmatprep.subr.mxu0 0.0
    %2900 = vmatpush1.msra.mxu0 0.0
    %2901 = vmatprep.subr.mxu0 0.0
    %2902 = vmatpush1.msra.mxu0 0.0
    %2903 = vmatprep.subr.mxu0 0.0
    %2904 = vmatpush1.msra.mxu0 0.0
    %2905 = vmatprep.subr.mxu0 0.0
    %2906 = vmatpush1.msra.mxu0 0.0
    %2907 = vmatprep.subr.mxu0 0.0
    %2908 = vmatpush1.msra.mxu0 0.0
    %2909 = vmatprep.subr.mxu0 0.0
    %2910 = vmatpush1.msra.mxu0 0.0
    %2911 = vmatprep.subr.mxu0 0.0
    %2912 = vmatpush1.msra.mxu0 0.0
    %2913 = vmatprep.subr.mxu0 0.0
    %2914 = vmatpush1.msra.mxu0 0.0
    %2915 = vmatprep.subr.mxu0 0.0
    %2916 = vmatpush1.msra.mxu0 0.0
    %2917 = vmatprep.subr.mxu0 0.0
    %2918 = vmatpush1.msra.mxu0 0.0
    %2919 = vmatprep.subr.mxu0 0.0
    %2920 = vmatpush1.msra.mxu0 0.0
    %2921 = vmatprep.subr.mxu0 0.0
    %2922 = vmatpush1.msra.mxu0 0.0
    %2923 = vmatprep.subr.mxu0 0.0
    %2924 = vmatpush1.msra.mxu0 0.0
    %2925 = vmatprep.subr.mxu0 0.0
    %2926 = vmatpush1.msra.mxu0 0.0
    %2927 = vmatprep.subr.mxu0 0.0
    %2928 = vmatpush1.msra.mxu0 0.0
    %2929 = vmatprep.subr.mxu0 0.0
    %2930 = vmatpush1.msra.mxu0 0.0
    %2931 = vmatprep.subr.mxu0 0.0
    %2932 = vmatpush1.msra.mxu0 0.0
    %2933 = vmatprep.subr.mxu0 0.0
    %2934 = vmatpush1.msra.mxu0 0.0
    %2935 = vmatprep.subr.mxu0 0.0
    %2936 = vmatpush1.msra.mxu0 0.0
    %2937 = vmatprep.subr.mxu0 0.0
    %2938 = vmatpush1.msra.mxu0 0.0
    %2939 = vmatprep.subr.mxu0 0.0
    %2940 = vmatpush1.msra.mxu0 0.0
    %2941 = vmatprep.subr.mxu0 0.0
    %2942 = vmatpush1.msra.mxu0 0.0
    %2943 = vmatprep.mubr.f32.mxu0 0.0
    %2944 = vmatmul.mubr.f32.gmra.mrb[0].mxu0 %v2874
    %v2945 = vpop.f32.mrb[0].mxu0
    %v2946 = vadd.f32 %v2871, %v2945
    %v2947 = vpop.f32.mrb[0].mxu0
    %2948 = vmatprep.mubr.f32.mxu0 0.0
    %2949 = vmatmul.mubr.f32.gmra.mrb[0].mxu0 %v2877
    %v2950 = vpop.f32.mrb[0].mxu0
    %v2951 = vadd.f32 %v2871, %v2950
    %v2952 = vpop.f32.mrb[0].mxu0
    %2953 = vdwg.mxu0
    %2954 = vst.msk [vmem:[#allocation8] sm:$0xff] %vm65, %v2946
    %2955 = vst.msk [vmem:[#allocation8 + $0x8] sm:$0xff] %vm65, %v2951
    // Predicated region
    $region30: #{tpu_custom_call.1} parent=1 // pred_check
      _
    $region31: #{tpu_custom_call.1} parent=1 // pred_check_branch
      %2957 = sbr.rel (0) target = $region33
    $region32: #{tpu_custom_call.1} parent=1 // pred_region
      %s2959 = ssub.s32 256, 256
      %2960 = vsyncadd [#allocation4], %s2959
      %s2961 = sshll.u32 [#allocation8], 4
      %s2962 = int_to_ptr.vmem [resolvable:$true] %s2961
      %2967 = dma.vmem_to_hbm [thread:$0]  %s2962, 256, %s4, [#allocation4], 128, 128, 8
    $region33: #{tpu_custom_call.1} parent=1 // pred_fallthru
      _
    // Predicated region
    $region34: #{tpu_custom_call.1} parent=1 // pred_check
      _
    $region35: #{tpu_custom_call.1} parent=1 // pred_check_branch
      %2969 = sbr.rel (0) target = $region37
    $region36: #{tpu_custom_call.1} parent=1 // pred_region
      %2970 = dma.done [#allocation4], 256
    $region37: #{tpu_custom_call.1} parent=1 // pred_fallthru
      _
    %2971 = vsyncpa [#allocation3], 1
    %2972 = vsyncpa [#allocation6], 1
    %2973 = vsyncpa [#allocation4], 1

</llo_original>
